<compile_context>
chip_gen: v5e
topology: v5e:2x2
jax: 0.10.0
libtpu: 0.0.40
codegen_flags: <defaults>
</compile_context>

<pallas_src>
import functools
import numpy as np
import jax
import jax.numpy as jnp
from jax import lax
from jax.experimental import pallas as pl
from jax.experimental.pallas import tpu as pltpu


# ----------------------------------------------------------------------------
# Grouping glue (plain JAX) — faithful ports of the PyTorch helpers
# TODO(synk): FPS / ball-query / gather preprocessing stays in plain JAX (serial
# data-dependent loop + sort); at realistic sizes this dominates wall-clock over
# the fused kernel and would need its own dedicated treatment.
# ----------------------------------------------------------------------------
def square_distance(src, dst):
    # src [B,S,3], dst [B,N,3] -> [B,S,N]
    return jnp.sum((src[:, :, None, :] - dst[:, None, :, :]) ** 2, axis=-1)


def index_points(points, idx):
    # points [B,N,C], idx [B,...] -> [B,...,C]
    return jax.vmap(lambda p, i: p[i])(points, idx)


def farthest_point_sample(xyz, npoint, start_idx):
    # xyz [B,N,3]; start_idx [B] (deterministic replacement for torch.randint)
    B, N, _ = xyz.shape
    centroids0 = jnp.zeros((B, npoint), jnp.int32)
    distance0 = jnp.full((B, N), 1e10, jnp.float32)

    def body(i, state):
        centroids, distance, farthest = state
        centroids = centroids.at[:, i].set(farthest)
        centroid = jax.vmap(lambda p, f: p[f])(xyz, farthest)[:, None, :]  # [B,1,3]
        dist = jnp.sum((xyz - centroid) ** 2, axis=-1)
        distance = jnp.minimum(distance, dist)
        farthest = jnp.argmax(distance, axis=-1).astype(jnp.int32)
        return centroids, distance, farthest

    centroids, _, _ = lax.fori_loop(
        0, npoint, body, (centroids0, distance0, start_idx.astype(jnp.int32))
    )
    return centroids


def query_ball_point(radius, nsample, xyz, new_xyz):
    # xyz [B,N,3], new_xyz [B,S,3] -> idx [B,S,nsample]
    B, N, _ = xyz.shape
    S = new_xyz.shape[1]
    sqrdists = square_distance(new_xyz, xyz)                      # [B,S,N]
    group_idx = jnp.broadcast_to(jnp.arange(N, dtype=jnp.int32), (B, S, N))
    group_idx = jnp.where(sqrdists > radius ** 2, N, group_idx)
    group_idx = jnp.sort(group_idx, axis=-1)[:, :, :nsample]
    group_first = group_idx[:, :, 0:1]
    group_idx = jnp.where(group_idx == N, group_first, group_idx)
    return group_idx


def xyz2sphere(xyz):
    # xyz [...,3] -> [rho, theta/pi, phi/(2pi)+0.5]
    # NOTE: divides by rho before masking; forward values are correct, gradients
    # through rho==0 would be NaN (not an issue for this forward-only port).
    rho = jnp.sqrt(jnp.sum(xyz ** 2, axis=-1, keepdims=True))
    theta = jnp.arccos(xyz[..., 2:3] / rho)
    phi = jnp.arctan2(xyz[..., 1:2], xyz[..., 0:1])
    theta = jnp.where(rho == 0.0, 0.0, theta)
    theta = theta / np.pi
    phi = phi / (2.0 * np.pi) + 0.5
    return jnp.concatenate([rho, theta, phi], axis=-1)


def sample_and_group(npoint, radius, nsample, center, normal, feature, start_idx,
                     return_normal=True, return_polar=True):
    # center/normal [B,N,3], feature [B,N,D]
    fps_idx = farthest_point_sample(center, npoint, start_idx)
    new_center = index_points(center, fps_idx)                    # [B,S,3]
    new_normal = index_points(normal, fps_idx)                    # [B,S,3]
    idx = query_ball_point(radius, nsample, center, new_center)   # [B,S,K]
    group_normal = index_points(normal, idx)                      # [B,S,K,3]
    group_center = index_points(center, idx)                      # [B,S,K,3]
    group_center_norm = group_center - new_center[:, :, None, :]
    if return_polar:
        group_polar = xyz2sphere(group_center_norm)
        group_center_norm = jnp.concatenate([group_center_norm, group_polar], axis=-1)
    if feature is not None:
        group_feature = index_points(feature, idx)
        if return_normal:
            new_feature = jnp.concatenate(
                [group_center_norm, group_normal, group_feature], axis=-1)
        else:
            new_feature = jnp.concatenate([group_center_norm, group_feature], axis=-1)
    else:
        new_feature = jnp.concatenate([group_center_norm, group_normal], axis=-1)
    return new_center, new_normal, new_feature


# ----------------------------------------------------------------------------
# Pallas kernel: fused [1x1 conv -> BN(eval) -> ReLU] * L  +  max over nsample
#   input  block : [tile_g*K, Cin_pad]  bf16 (pre-flattened in wrapper)
#   output block : [C_out, tile_g]      f32  (channel-first => lane-dense stores)
# ----------------------------------------------------------------------------
def _make_mlp_max_kernel(num_layers, nsample):
    def kernel(*refs):
        x_ref = refs[0]
        o_ref = refs[-1]
        params = refs[1:-1]                         # (w, scale, shift) per layer
        rows, _ = x_ref.shape
        tg = rows // nsample
        h = x_ref[...]                              # bf16 [rows, Cin_pad]
        for l in range(num_layers):
            w_ref, s_ref, t_ref = params[3 * l:3 * l + 3]
            acc = jnp.dot(h, w_ref[...], preferred_element_type=jnp.float32)
            acc = jnp.maximum(acc * s_ref[...] + t_ref[...], 0.0)   # BN+ReLU in f32
            h = acc.astype(jnp.bfloat16) if l + 1 < num_layers else acc
        c = h.shape[-1]
        m = jnp.max(h.reshape(tg, nsample, c), axis=1)              # [tg, c] f32
        o_ref[...] = jnp.transpose(m, (1, 0)).astype(o_ref.dtype)   # [c, tg] lane-dense
    return kernel


def mlp_max_pallas(x2d, layer_params, nsample, tile_g=256):
    """x2d: [G*nsample, Cin_pad] bf16.
    layer_params: list of (W [Ci,Co] bf16, scale [1,Co] f32, shift [1,Co] f32).
    Returns [C_last, G] float32 (channel-first)."""
    GK, cin = x2d.shape
    assert GK % nsample == 0
    G = GK // nsample
    num_layers = len(layer_params)
    c_out = layer_params[-1][0].shape[1]

    # Lane-dense output wants tile_g to be a multiple of 128; don't over-pad tiny G.
    tile_g = max(128, min(tile_g, pl.cdiv(G, 128) * 128))
    G_pad = pl.cdiv(G, tile_g) * tile_g
    if G_pad != G:
        x2d = jnp.pad(x2d, ((0, (G_pad - G) * nsample), (0, 0)))

    in_specs = [pl.BlockSpec((tile_g * nsample, cin), lambda i: (i, 0))]
    flat_params = []
    for (w, s, t) in layer_params:
        ci, co = w.shape
        in_specs.append(pl.BlockSpec((ci, co), lambda i: (0, 0)))
        in_specs.append(pl.BlockSpec((1, co), lambda i: (0, 0)))
        in_specs.append(pl.BlockSpec((1, co), lambda i: (0, 0)))
        flat_params.extend([w, s, t])

    out = pl.pallas_call(
        _make_mlp_max_kernel(num_layers, nsample),
        out_shape=jax.ShapeDtypeStruct((c_out, G_pad), jnp.float32),
        grid_spec=pltpu.PrefetchScalarGridSpec(
            num_scalar_prefetch=0,
            grid=(G_pad // tile_g,),
            in_specs=in_specs,
            out_specs=pl.BlockSpec((c_out, tile_g), lambda i: (0, i)),
        ),
        compiler_params=pltpu.CompilerParams(
            dimension_semantics=("parallel",),
            vmem_limit_bytes=32 * 1024 * 1024,   # well within v7x 64 MiB physical
        ),
    )(x2d, *flat_params)
    return out[:, :G]


# ----------------------------------------------------------------------------
# SurfaceAbstraction forward (group_all=False, return_polar=True, return_normal=True)
# ----------------------------------------------------------------------------
def surface_abstraction_forward(center, normal, feature, params, *,
                                npoint, radius, nsample, start_idx, tile_g=256):
    """center/normal: [B,3,N]; feature: [B,D,N] (PyTorch channel-first inputs)."""
    center_t = jnp.transpose(center, (0, 2, 1))    # [B,N,3]
    normal_t = jnp.transpose(normal, (0, 2, 1))    # [B,N,3]
    feature_t = jnp.transpose(feature, (0, 2, 1)) if feature is not None else None

    new_center, new_normal, new_feature = sample_and_group(
        npoint, radius, nsample, center_t, normal_t, feature_t, start_idx,
        return_normal=True, return_polar=True)     # new_feature [B,S,K,Cin]

    B, S, K, Cin = new_feature.shape

    # Pad Cin (13) up to a 16-aligned contraction dim; pad the first layer's W rows
    # with zeros to match (mathematically identical).
    cin_pad = max(16, -(-Cin // 16) * 16)
    if cin_pad != Cin:
        new_feature = jnp.pad(
            new_feature, ((0, 0), (0, 0), (0, 0), (0, cin_pad - Cin)))
    # Flatten G=B*S and K in the wrapper (no in-kernel input reshape); bf16 for MXU.
    x2d = new_feature.reshape(B * S * K, cin_pad).astype(jnp.bfloat16)

    # Fold Conv2d bias + eval-mode BatchNorm into per-channel scale/shift (f32);
    # weights in bf16 for the MXU.
    # TODO(synk): training-mode BatchNorm (batch statistics) not implemented; eval mode used.
    layer_params = []
    last_pad = cin_pad
    for (w, b, gamma, beta, rmean, rvar) in params:
        ci, co = w.shape
        scale = (gamma / jnp.sqrt(rvar + 1e-5)).astype(jnp.float32)     # [Co]
        shift = ((b - rmean) * scale + beta).astype(jnp.float32)        # [Co]
        w_p = jnp.pad(w, ((0, last_pad - ci), (0, 0))) if ci != last_pad else w
        layer_params.append((w_p.astype(jnp.bfloat16),
                             scale[None, :], shift[None, :]))
        last_pad = co

    out = mlp_max_pallas(x2d, layer_params, nsample=K, tile_g=tile_g)   # [C_last, B*S]
    c_last = out.shape[0]
    new_feature_out = jnp.transpose(out.reshape(c_last, B, S), (1, 0, 2))  # [B,C,S]

    new_center_out = jnp.transpose(new_center, (0, 2, 1))  # [B,3,S]
    new_normal_out = jnp.transpose(new_normal, (0, 2, 1))  # [B,3,S]
    return new_center_out, new_normal_out, new_feature_out


# ----------------------------------------------------------------------------
# Pure-JAX reference for the MLP+max hot path (same bf16-matmul / f32-accumulate recipe)
# ----------------------------------------------------------------------------
def mlp_max_ref(x2d_f32, layer_params_f32, nsample):
    h = x2d_f32.astype(jnp.bfloat16)
    n = len(layer_params_f32)
    for i, (w, s, t) in enumerate(layer_params_f32):
        acc = jnp.dot(h, w.astype(jnp.bfloat16), preferred_element_type=jnp.float32)
        acc = jnp.maximum(acc * s + t, 0.0)
        h = acc.astype(jnp.bfloat16) if i + 1 < n else acc
    G = x2d_f32.shape[0] // nsample
    return jnp.max(h.reshape(G, nsample, -1), axis=1)


if __name__ == "__main__":
    key = jax.random.PRNGKey(0)
    B, N, D = 2, 64, 4
    npoint, radius, nsample = 16, 0.3, 16
    mlp = [32, 64]
    in_channel = 3 + 3 + 3 + D  # center_norm(3) + polar(3) + normal(3) + feature(D) = 13

    ks = jax.random.split(key, 16)
    center = jax.random.uniform(ks[0], (B, 3, N), jnp.float32)           # [B,3,N]
    normal = jax.random.normal(ks[1], (B, 3, N), jnp.float32)            # [B,3,N]
    feature = jax.random.normal(ks[2], (B, D, N), jnp.float32)           # [B,D,N]
    start_idx = jax.random.randint(ks[3], (B,), 0, N)                    # FPS start

    # Deterministic parameter init: Conv2d(1x1) weight/bias + BatchNorm2d params.
    params = []
    last_c = in_channel
    kidx = 4
    for out_c in mlp:
        w = 0.1 * jax.random.normal(ks[kidx], (last_c, out_c), jnp.float32); kidx += 1
        b = 0.05 * jax.random.normal(ks[kidx], (out_c,), jnp.float32); kidx += 1
        gamma = 1.0 + 0.1 * jax.random.normal(ks[kidx], (out_c,), jnp.float32); kidx += 1
        beta = 0.1 * jax.random.normal(ks[kidx], (out_c,), jnp.float32); kidx += 1
        rmean = 0.05 * jax.random.normal(ks[kidx], (out_c,), jnp.float32); kidx += 1
        rvar = jnp.abs(1.0 + 0.1 * jax.random.normal(ks[kidx], (out_c,), jnp.float32)); kidx += 1
        params.append((w, b, gamma, beta, rmean, rvar))
        last_c = out_c

    fwd = jax.jit(functools.partial(
        surface_abstraction_forward,
        npoint=npoint, radius=radius, nsample=nsample,
        start_idx=start_idx, tile_g=256))
    new_center, new_normal, new_feature = fwd(center, normal, feature, params)
    jax.block_until_ready((new_center, new_normal, new_feature))

    # sanity: shapes + kernel vs pure-JAX reference for the hot path
    assert new_center.shape == (B, 3, npoint)
    assert new_normal.shape == (B, 3, npoint)
    assert new_feature.shape == (B, mlp[-1], npoint)

    center_t = jnp.transpose(center, (0, 2, 1))
    normal_t = jnp.transpose(normal, (0, 2, 1))
    feature_t = jnp.transpose(feature, (0, 2, 1))
    _, _, nf = sample_and_group(npoint, radius, nsample, center_t, normal_t,
                                feature_t, start_idx)
    x2d = nf.reshape(B * npoint * nsample, in_channel).astype(jnp.float32)
    lp = []
    for (w, b, gamma, beta, rmean, rvar) in params:
        scale = gamma / jnp.sqrt(rvar + 1e-5)
        shift = (b - rmean) * scale + beta
        lp.append((w, scale[None, :], shift[None, :]))
    ref = jnp.transpose(mlp_max_ref(x2d, lp, nsample).reshape(B, npoint, mlp[-1]),
                        (0, 2, 1))
    np.testing.assert_allclose(np.asarray(new_feature), np.asarray(ref),
                               rtol=5e-3, atol=5e-3)

    print("KERNEL_OK")
</pallas_src>

<mosaic_0001>
module attributes {stable_mosaic.version = 11 : i64} {
  func.func @kernel(%arg0: i32, %arg1: memref<2048x16xbf16, #tpu.memory_space<vmem>>, %arg2: memref<16x32xbf16, #tpu.memory_space<vmem>>, %arg3: memref<1x32xf32, #tpu.memory_space<vmem>>, %arg4: memref<1x32xf32, #tpu.memory_space<vmem>>, %arg5: memref<32x64xbf16, #tpu.memory_space<vmem>>, %arg6: memref<1x64xf32, #tpu.memory_space<vmem>>, %arg7: memref<1x64xf32, #tpu.memory_space<vmem>>, %arg8: memref<64x128xf32, #tpu.memory_space<vmem>>) attributes {dimension_semantics = [#tpu.dimension_semantics<parallel>], iteration_bounds = array<i64: 1>, scalar_prefetch = 0 : i64, scratch_operands = 0 : i64, tpu.core_type = #tpu.core_type<tc>, window_params = [{transform_indices = @transform_0, window_bounds = array<i64: 2048, 16>}, {pipeline_mode = #tpu.pipeline_mode<synchronous>, transform_indices = @transform_1, window_bounds = array<i64: 16, 32>}, {pipeline_mode = #tpu.pipeline_mode<synchronous>, transform_indices = @transform_2, window_bounds = array<i64: 1, 32>}, {pipeline_mode = #tpu.pipeline_mode<synchronous>, transform_indices = @transform_3, window_bounds = array<i64: 1, 32>}, {pipeline_mode = #tpu.pipeline_mode<synchronous>, transform_indices = @transform_4, window_bounds = array<i64: 32, 64>}, {pipeline_mode = #tpu.pipeline_mode<synchronous>, transform_indices = @transform_5, window_bounds = array<i64: 1, 64>}, {pipeline_mode = #tpu.pipeline_mode<synchronous>, transform_indices = @transform_6, window_bounds = array<i64: 1, 64>}, {transform_indices = @transform_7, window_bounds = array<i64: 64, 128>}]} {
    %c0 = arith.constant 0 : index
    %c0_0 = arith.constant 0 : index
    %0 = vector.load %arg1[%c0, %c0_0] : memref<2048x16xbf16, #tpu.memory_space<vmem>>, vector<2048x16xbf16>
    %c0_1 = arith.constant 0 : index
    %c0_2 = arith.constant 0 : index
    %1 = vector.load %arg2[%c0_1, %c0_2] : memref<16x32xbf16, #tpu.memory_space<vmem>>, vector<16x32xbf16>
    %cst = arith.constant dense<0.000000e+00> : vector<2048x32xf32>
    %2 = tpu.matmul %0, %1, %cst {dimension_numbers = #tpu.dot_dimension_numbers<[1], [0], [0], [1], [0, 0, 1, 1], [], []>} : vector<2048x16xbf16>, vector<16x32xbf16>, vector<2048x32xf32> -> vector<2048x32xf32>
    %c0_3 = arith.constant 0 : index
    %c0_4 = arith.constant 0 : index
    %3 = vector.load %arg3[%c0_3, %c0_4] : memref<1x32xf32, #tpu.memory_space<vmem>>, vector<1x32xf32>
    %4 = vector.broadcast %3 : vector<1x32xf32> to vector<2048x32xf32>
    %5 = arith.mulf %2, %4 : vector<2048x32xf32>
    %c0_5 = arith.constant 0 : index
    %c0_6 = arith.constant 0 : index
    %6 = vector.load %arg4[%c0_5, %c0_6] : memref<1x32xf32, #tpu.memory_space<vmem>>, vector<1x32xf32>
    %7 = vector.broadcast %6 : vector<1x32xf32> to vector<2048x32xf32>
    %8 = arith.addf %5, %7 : vector<2048x32xf32>
    %cst_7 = arith.constant 0.000000e+00 : f32
    %9 = vector.broadcast %cst_7 : f32 to vector<2048x32xf32>
    %10 = arith.maximumf %8, %9 : vector<2048x32xf32>
    %11 = arith.truncf %10 : vector<2048x32xf32> to vector<2048x32xbf16>
    %c0_8 = arith.constant 0 : index
    %c0_9 = arith.constant 0 : index
    %12 = vector.load %arg5[%c0_8, %c0_9] : memref<32x64xbf16, #tpu.memory_space<vmem>>, vector<32x64xbf16>
    %cst_10 = arith.constant dense<0.000000e+00> : vector<2048x64xf32>
    %13 = tpu.matmul %11, %12, %cst_10 {dimension_numbers = #tpu.dot_dimension_numbers<[1], [0], [0], [1], [0, 0, 1, 1], [], []>} : vector<2048x32xbf16>, vector<32x64xbf16>, vector<2048x64xf32> -> vector<2048x64xf32>
    %c0_11 = arith.constant 0 : index
    %c0_12 = arith.constant 0 : index
    %14 = vector.load %arg6[%c0_11, %c0_12] : memref<1x64xf32, #tpu.memory_space<vmem>>, vector<1x64xf32>
    %15 = vector.broadcast %14 : vector<1x64xf32> to vector<2048x64xf32>
    %16 = arith.mulf %13, %15 : vector<2048x64xf32>
    %c0_13 = arith.constant 0 : index
    %c0_14 = arith.constant 0 : index
    %17 = vector.load %arg7[%c0_13, %c0_14] : memref<1x64xf32, #tpu.memory_space<vmem>>, vector<1x64xf32>
    %18 = vector.broadcast %17 : vector<1x64xf32> to vector<2048x64xf32>
    %19 = arith.addf %16, %18 : vector<2048x64xf32>
    %cst_15 = arith.constant 0.000000e+00 : f32
    %20 = vector.broadcast %cst_15 : f32 to vector<2048x64xf32>
    %21 = arith.maximumf %19, %20 : vector<2048x64xf32>
    %22 = vector.shape_cast %21 : vector<2048x64xf32> to vector<128x16x64xf32>
    %cst_16 = arith.constant dense<0xFF800000> : vector<128x64xf32>
    %23 = vector.multi_reduction <maximumf>, %22, %cst_16 [1] : vector<128x16x64xf32> to vector<128x64xf32>
    %24 = tpu.transpose %23, [1, 0] : vector<128x64xf32> -> vector<64x128xf32>
    %c0_17 = arith.constant 0 : index
    %c0_18 = arith.constant 0 : index
    %25 = vector.load %arg8[%c0_17, %c0_18] : memref<64x128xf32, #tpu.memory_space<vmem>>, vector<64x128xf32>
    tpu.vector_store %arg8[%c0_17, %c0_18], %24 {strides = array<i32>} : memref<64x128xf32, #tpu.memory_space<vmem>>, vector<64x128xf32>,
    return
  }
  func.func @transform_0(%arg0: i32) -> (i32, i32) {
    %c0_i32 = arith.constant 0 : i32
    %c0_i32_0 = arith.constant 0 : i32
    return %arg0, %c0_i32 : i32, i32
  }
  func.func @transform_1(%arg0: i32) -> (i32, i32) {
    %c0_i32 = arith.constant 0 : i32
    %c0_i32_0 = arith.constant 0 : i32
    %c0_i32_1 = arith.constant 0 : i32
    return %c0_i32, %c0_i32_0 : i32, i32
  }
  func.func @transform_2(%arg0: i32) -> (i32, i32) {
    %c0_i32 = arith.constant 0 : i32
    %c0_i32_0 = arith.constant 0 : i32
    %c0_i32_1 = arith.constant 0 : i32
    return %c0_i32, %c0_i32_0 : i32, i32
  }
  func.func @transform_3(%arg0: i32) -> (i32, i32) {
    %c0_i32 = arith.constant 0 : i32
    %c0_i32_0 = arith.constant 0 : i32
    %c0_i32_1 = arith.constant 0 : i32
    return %c0_i32, %c0_i32_0 : i32, i32
  }
  func.func @transform_4(%arg0: i32) -> (i32, i32) {
    %c0_i32 = arith.constant 0 : i32
    %c0_i32_0 = arith.constant 0 : i32
    %c0_i32_1 = arith.constant 0 : i32
    return %c0_i32, %c0_i32_0 : i32, i32
  }
  func.func @transform_5(%arg0: i32) -> (i32, i32) {
    %c0_i32 = arith.constant 0 : i32
    %c0_i32_0 = arith.constant 0 : i32
    %c0_i32_1 = arith.constant 0 : i32
    return %c0_i32, %c0_i32_0 : i32, i32
  }
  func.func @transform_6(%arg0: i32) -> (i32, i32) {
    %c0_i32 = arith.constant 0 : i32
    %c0_i32_0 = arith.constant 0 : i32
    %c0_i32_1 = arith.constant 0 : i32
    return %c0_i32, %c0_i32_0 : i32, i32
  }
  func.func @transform_7(%arg0: i32) -> (i32, i32) {
    %c0_i32 = arith.constant 0 : i32
    %c0_i32_0 = arith.constant 0 : i32
    return %c0_i32, %arg0 : i32, i32
  }
}

</mosaic_0001>

<llo_original>
// kernel: custom-call.12
$region0: #{custom-call.12}
  %s0 = inlined_call_operand.vmem [shape: f32[2,64], index: 0, kind: output, shape index: {}]

// kernel: surface_abstraction_forward.1
$region0: #{surface_abstraction_forward.1}
  #allocation0 [shape = 'u32[]', space=smem, size = 0x4, offset = 0x4, fixed_abs, tag = 'smem constant byte address 0x4 - core index']
  #allocation1 [shape = 'u32[72,128]{1,0:T(1,128)}', space=vmem, size = 0x9000, scoped, tag = 'internal scratch']
  %s0 = inlined_call_operand.vmem [shape: bf16[2048,16], index: 0, kind: input, shape index: {}]
  %s1 = inlined_call_operand.vmem [shape: bf16[16,32], index: 1, kind: input, shape index: {}]
  %s2 = inlined_call_operand.vmem [shape: f32[1,32], index: 2, kind: input, shape index: {}]
  %s3 = inlined_call_operand.vmem [shape: f32[1,32], index: 3, kind: input, shape index: {}]
  %s4 = inlined_call_operand.vmem [shape: bf16[32,64], index: 4, kind: input, shape index: {}]
  %s5 = inlined_call_operand.vmem [shape: f32[1,64], index: 5, kind: input, shape index: {}]
  %s6 = inlined_call_operand.vmem [shape: f32[1,64], index: 6, kind: input, shape index: {}]
  %s7 = inlined_call_operand.vmem [shape: f32[64,128], index: 7, kind: output, shape index: {}]
  %s8 = sld [smem:[#allocation0]]
  $region38: #{surface_abstraction_forward.1} parent=0
    _
  %s10 = ssub.s32 1, %s8
  %s11 = scalar_select 0, %s10, %s8
  // Predicated region
  $region2: #{surface_abstraction_forward.1} parent=0 // pred_check
    _
  $region3: #{surface_abstraction_forward.1} parent=0 // pred_check_branch
    %13 = sbr.rel (0) target = $region5
  $region4: #{surface_abstraction_forward.1} parent=0 // pred_region
    _
  $region5: #{surface_abstraction_forward.1} parent=0 // pred_fallthru
    _
  // Predicated region
  $region6: #{surface_abstraction_forward.1} parent=0 // pred_check
    _
  $region7: #{surface_abstraction_forward.1} parent=0 // pred_check_branch
    %15 = sbr.rel (0) target = $region9
  $region8: #{surface_abstraction_forward.1} parent=0 // pred_region
    _
  $region9: #{surface_abstraction_forward.1} parent=0 // pred_fallthru
    _
  // Predicated region
  $region10: #{surface_abstraction_forward.1} parent=0 // pred_check
    _
  $region11: #{surface_abstraction_forward.1} parent=0 // pred_check_branch
    %17 = sbr.rel (0) target = $region13
  $region12: #{surface_abstraction_forward.1} parent=0 // pred_region
    _
  $region13: #{surface_abstraction_forward.1} parent=0 // pred_fallthru
    _
  // Predicated region
  $region14: #{surface_abstraction_forward.1} parent=0 // pred_check
    _
  $region15: #{surface_abstraction_forward.1} parent=0 // pred_check_branch
    %19 = sbr.rel (0) target = $region17
  $region16: #{surface_abstraction_forward.1} parent=0 // pred_region
    _
  $region17: #{surface_abstraction_forward.1} parent=0 // pred_fallthru
    _
  // Predicated region
  $region18: #{surface_abstraction_forward.1} parent=0 // pred_check
    _
  $region19: #{surface_abstraction_forward.1} parent=0 // pred_check_branch
    %21 = sbr.rel (0) target = $region21
  $region20: #{surface_abstraction_forward.1} parent=0 // pred_region
    _
  $region21: #{surface_abstraction_forward.1} parent=0 // pred_fallthru
    _
  // Predicated region
  $region22: #{surface_abstraction_forward.1} parent=0 // pred_check
    _
  $region23: #{surface_abstraction_forward.1} parent=0 // pred_check_branch
    %23 = sbr.rel (0) target = $region25
  $region24: #{surface_abstraction_forward.1} parent=0 // pred_region
    _
  $region25: #{surface_abstraction_forward.1} parent=0 // pred_fallthru
    _
  // Predicated region
  $region26: #{surface_abstraction_forward.1} parent=0 // pred_check
    _
  $region27: #{surface_abstraction_forward.1} parent=0 // pred_check_branch
    %25 = sbr.rel (0) target = $region29
  $region28: #{surface_abstraction_forward.1} parent=0 // pred_region
    _
  $region29: #{surface_abstraction_forward.1} parent=0 // pred_fallthru
    _
  %v27 = vld [vmem:[%s0] sm:$0xf]
  %v28 = vld [vmem:[%s0 + $0x4] sm:$0xf]
  %v29 = vld [vmem:[%s0 + $0x8] sm:$0xf]
  %v30 = vld [vmem:[%s0 + $0xc] sm:$0xf]
  %v31 = vld [vmem:[%s0 + $0x10] sm:$0xf]
  %v32 = vld [vmem:[%s0 + $0x14] sm:$0xf]
  %v33 = vld [vmem:[%s0 + $0x18] sm:$0xf]
  %v34 = vld [vmem:[%s0 + $0x1c] sm:$0xf]
  %v35 = vld [vmem:[%s0 + $0x20] sm:$0xf]
  %v36 = vld [vmem:[%s0 + $0x24] sm:$0xf]
  %v37 = vld [vmem:[%s0 + $0x28] sm:$0xf]
  %v38 = vld [vmem:[%s0 + $0x2c] sm:$0xf]
  %v39 = vld [vmem:[%s0 + $0x30] sm:$0xf]
  %v40 = vld [vmem:[%s0 + $0x34] sm:$0xf]
  %v41 = vld [vmem:[%s0 + $0x38] sm:$0xf]
  %v42 = vld [vmem:[%s0 + $0x3c] sm:$0xf]
  %v43 = vld [vmem:[%s0 + $0x40] sm:$0xf]
  %v44 = vld [vmem:[%s0 + $0x44] sm:$0xf]
  %v45 = vld [vmem:[%s0 + $0x48] sm:$0xf]
  %v46 = vld [vmem:[%s0 + $0x4c] sm:$0xf]
  %v47 = vld [vmem:[%s0 + $0x50] sm:$0xf]
  %v48 = vld [vmem:[%s0 + $0x54] sm:$0xf]
  %v49 = vld [vmem:[%s0 + $0x58] sm:$0xf]
  %v50 = vld [vmem:[%s0 + $0x5c] sm:$0xf]
  %v51 = vld [vmem:[%s0 + $0x60] sm:$0xf]
  %v52 = vld [vmem:[%s0 + $0x64] sm:$0xf]
  %v53 = vld [vmem:[%s0 + $0x68] sm:$0xf]
  %v54 = vld [vmem:[%s0 + $0x6c] sm:$0xf]
  %v55 = vld [vmem:[%s0 + $0x70] sm:$0xf]
  %v56 = vld [vmem:[%s0 + $0x74] sm:$0xf]
  %v57 = vld [vmem:[%s0 + $0x78] sm:$0xf]
  %v58 = vld [vmem:[%s0 + $0x7c] sm:$0xf]
  %v59 = vld [vmem:[%s0 + $0x80] sm:$0xf]
  %v60 = vld [vmem:[%s0 + $0x84] sm:$0xf]
  %v61 = vld [vmem:[%s0 + $0x88] sm:$0xf]
  %v62 = vld [vmem:[%s0 + $0x8c] sm:$0xf]
  %v63 = vld [vmem:[%s0 + $0x90] sm:$0xf]
  %v64 = vld [vmem:[%s0 + $0x94] sm:$0xf]
  %v65 = vld [vmem:[%s0 + $0x98] sm:$0xf]
  %v66 = vld [vmem:[%s0 + $0x9c] sm:$0xf]
  %v67 = vld [vmem:[%s0 + $0xa0] sm:$0xf]
  %v68 = vld [vmem:[%s0 + $0xa4] sm:$0xf]
  %v69 = vld [vmem:[%s0 + $0xa8] sm:$0xf]
  %v70 = vld [vmem:[%s0 + $0xac] sm:$0xf]
  %v71 = vld [vmem:[%s0 + $0xb0] sm:$0xf]
  %v72 = vld [vmem:[%s0 + $0xb4] sm:$0xf]
  %v73 = vld [vmem:[%s0 + $0xb8] sm:$0xf]
  %v74 = vld [vmem:[%s0 + $0xbc] sm:$0xf]
  %v75 = vld [vmem:[%s0 + $0xc0] sm:$0xf]
  %v76 = vld [vmem:[%s0 + $0xc4] sm:$0xf]
  %v77 = vld [vmem:[%s0 + $0xc8] sm:$0xf]
  %v78 = vld [vmem:[%s0 + $0xcc] sm:$0xf]
  %v79 = vld [vmem:[%s0 + $0xd0] sm:$0xf]
  %v80 = vld [vmem:[%s0 + $0xd4] sm:$0xf]
  %v81 = vld [vmem:[%s0 + $0xd8] sm:$0xf]
  %v82 = vld [vmem:[%s0 + $0xdc] sm:$0xf]
  %v83 = vld [vmem:[%s0 + $0xe0] sm:$0xf]
  %v84 = vld [vmem:[%s0 + $0xe4] sm:$0xf]
  %v85 = vld [vmem:[%s0 + $0xe8] sm:$0xf]
  %v86 = vld [vmem:[%s0 + $0xec] sm:$0xf]
  %v87 = vld [vmem:[%s0 + $0xf0] sm:$0xf]
  %v88 = vld [vmem:[%s0 + $0xf4] sm:$0xf]
  %v89 = vld [vmem:[%s0 + $0xf8] sm:$0xf]
  %v90 = vld [vmem:[%s0 + $0xfc] sm:$0xf]
  %v91 = vld [vmem:[%s0 + $0x100] sm:$0xf]
  %v92 = vld [vmem:[%s0 + $0x104] sm:$0xf]
  %v93 = vld [vmem:[%s0 + $0x108] sm:$0xf]
  %v94 = vld [vmem:[%s0 + $0x10c] sm:$0xf]
  %v95 = vld [vmem:[%s0 + $0x110] sm:$0xf]
  %v96 = vld [vmem:[%s0 + $0x114] sm:$0xf]
  %v97 = vld [vmem:[%s0 + $0x118] sm:$0xf]
  %v98 = vld [vmem:[%s0 + $0x11c] sm:$0xf]
  %v99 = vld [vmem:[%s0 + $0x120] sm:$0xf]
  %v100 = vld [vmem:[%s0 + $0x124] sm:$0xf]
  %v101 = vld [vmem:[%s0 + $0x128] sm:$0xf]
  %v102 = vld [vmem:[%s0 + $0x12c] sm:$0xf]
  %v103 = vld [vmem:[%s0 + $0x130] sm:$0xf]
  %v104 = vld [vmem:[%s0 + $0x134] sm:$0xf]
  %v105 = vld [vmem:[%s0 + $0x138] sm:$0xf]
  %v106 = vld [vmem:[%s0 + $0x13c] sm:$0xf]
  %v107 = vld [vmem:[%s0 + $0x140] sm:$0xf]
  %v108 = vld [vmem:[%s0 + $0x144] sm:$0xf]
  %v109 = vld [vmem:[%s0 + $0x148] sm:$0xf]
  %v110 = vld [vmem:[%s0 + $0x14c] sm:$0xf]
  %v111 = vld [vmem:[%s0 + $0x150] sm:$0xf]
  %v112 = vld [vmem:[%s0 + $0x154] sm:$0xf]
  %v113 = vld [vmem:[%s0 + $0x158] sm:$0xf]
  %v114 = vld [vmem:[%s0 + $0x15c] sm:$0xf]
  %v115 = vld [vmem:[%s0 + $0x160] sm:$0xf]
  %v116 = vld [vmem:[%s0 + $0x164] sm:$0xf]
  %v117 = vld [vmem:[%s0 + $0x168] sm:$0xf]
  %v118 = vld [vmem:[%s0 + $0x16c] sm:$0xf]
  %v119 = vld [vmem:[%s0 + $0x170] sm:$0xf]
  %v120 = vld [vmem:[%s0 + $0x174] sm:$0xf]
  %v121 = vld [vmem:[%s0 + $0x178] sm:$0xf]
  %v122 = vld [vmem:[%s0 + $0x17c] sm:$0xf]
  %v123 = vld [vmem:[%s0 + $0x180] sm:$0xf]
  %v124 = vld [vmem:[%s0 + $0x184] sm:$0xf]
  %v125 = vld [vmem:[%s0 + $0x188] sm:$0xf]
  %v126 = vld [vmem:[%s0 + $0x18c] sm:$0xf]
  %v127 = vld [vmem:[%s0 + $0x190] sm:$0xf]
  %v128 = vld [vmem:[%s0 + $0x194] sm:$0xf]
  %v129 = vld [vmem:[%s0 + $0x198] sm:$0xf]
  %v130 = vld [vmem:[%s0 + $0x19c] sm:$0xf]
  %v131 = vld [vmem:[%s0 + $0x1a0] sm:$0xf]
  %v132 = vld [vmem:[%s0 + $0x1a4] sm:$0xf]
  %v133 = vld [vmem:[%s0 + $0x1a8] sm:$0xf]
  %v134 = vld [vmem:[%s0 + $0x1ac] sm:$0xf]
  %v135 = vld [vmem:[%s0 + $0x1b0] sm:$0xf]
  %v136 = vld [vmem:[%s0 + $0x1b4] sm:$0xf]
  %v137 = vld [vmem:[%s0 + $0x1b8] sm:$0xf]
  %v138 = vld [vmem:[%s0 + $0x1bc] sm:$0xf]
  %v139 = vld [vmem:[%s0 + $0x1c0] sm:$0xf]
  %v140 = vld [vmem:[%s0 + $0x1c4] sm:$0xf]
  %v141 = vld [vmem:[%s0 + $0x1c8] sm:$0xf]
  %v142 = vld [vmem:[%s0 + $0x1cc] sm:$0xf]
  %v143 = vld [vmem:[%s0 + $0x1d0] sm:$0xf]
  %v144 = vld [vmem:[%s0 + $0x1d4] sm:$0xf]
  %v145 = vld [vmem:[%s0 + $0x1d8] sm:$0xf]
  %v146 = vld [vmem:[%s0 + $0x1dc] sm:$0xf]
  %v147 = vld [vmem:[%s0 + $0x1e0] sm:$0xf]
  %v148 = vld [vmem:[%s0 + $0x1e4] sm:$0xf]
  %v149 = vld [vmem:[%s0 + $0x1e8] sm:$0xf]
  %v150 = vld [vmem:[%s0 + $0x1ec] sm:$0xf]
  %v151 = vld [vmem:[%s0 + $0x1f0] sm:$0xf]
  %v152 = vld [vmem:[%s0 + $0x1f4] sm:$0xf]
  %v153 = vld [vmem:[%s0 + $0x1f8] sm:$0xf]
  %v154 = vld [vmem:[%s0 + $0x1fc] sm:$0xf]
  %v155 = vld [vmem:[%s0 + $0x200] sm:$0xf]
  %v156 = vld [vmem:[%s0 + $0x204] sm:$0xf]
  %v157 = vld [vmem:[%s0 + $0x208] sm:$0xf]
  %v158 = vld [vmem:[%s0 + $0x20c] sm:$0xf]
  %v159 = vld [vmem:[%s0 + $0x210] sm:$0xf]
  %v160 = vld [vmem:[%s0 + $0x214] sm:$0xf]
  %v161 = vld [vmem:[%s0 + $0x218] sm:$0xf]
  %v162 = vld [vmem:[%s0 + $0x21c] sm:$0xf]
  %v163 = vld [vmem:[%s0 + $0x220] sm:$0xf]
  %v164 = vld [vmem:[%s0 + $0x224] sm:$0xf]
  %v165 = vld [vmem:[%s0 + $0x228] sm:$0xf]
  %v166 = vld [vmem:[%s0 + $0x22c] sm:$0xf]
  %v167 = vld [vmem:[%s0 + $0x230] sm:$0xf]
  %v168 = vld [vmem:[%s0 + $0x234] sm:$0xf]
  %v169 = vld [vmem:[%s0 + $0x238] sm:$0xf]
  %v170 = vld [vmem:[%s0 + $0x23c] sm:$0xf]
  %v171 = vld [vmem:[%s0 + $0x240] sm:$0xf]
  %v172 = vld [vmem:[%s0 + $0x244] sm:$0xf]
  %v173 = vld [vmem:[%s0 + $0x248] sm:$0xf]
  %v174 = vld [vmem:[%s0 + $0x24c] sm:$0xf]
  %v175 = vld [vmem:[%s0 + $0x250] sm:$0xf]
  %v176 = vld [vmem:[%s0 + $0x254] sm:$0xf]
  %v177 = vld [vmem:[%s0 + $0x258] sm:$0xf]
  %v178 = vld [vmem:[%s0 + $0x25c] sm:$0xf]
  %v179 = vld [vmem:[%s0 + $0x260] sm:$0xf]
  %v180 = vld [vmem:[%s0 + $0x264] sm:$0xf]
  %v181 = vld [vmem:[%s0 + $0x268] sm:$0xf]
  %v182 = vld [vmem:[%s0 + $0x26c] sm:$0xf]
  %v183 = vld [vmem:[%s0 + $0x270] sm:$0xf]
  %v184 = vld [vmem:[%s0 + $0x274] sm:$0xf]
  %v185 = vld [vmem:[%s0 + $0x278] sm:$0xf]
  %v186 = vld [vmem:[%s0 + $0x27c] sm:$0xf]
  %v187 = vld [vmem:[%s0 + $0x280] sm:$0xf]
  %v188 = vld [vmem:[%s0 + $0x284] sm:$0xf]
  %v189 = vld [vmem:[%s0 + $0x288] sm:$0xf]
  %v190 = vld [vmem:[%s0 + $0x28c] sm:$0xf]
  %v191 = vld [vmem:[%s0 + $0x290] sm:$0xf]
  %v192 = vld [vmem:[%s0 + $0x294] sm:$0xf]
  %v193 = vld [vmem:[%s0 + $0x298] sm:$0xf]
  %v194 = vld [vmem:[%s0 + $0x29c] sm:$0xf]
  %v195 = vld [vmem:[%s0 + $0x2a0] sm:$0xf]
  %v196 = vld [vmem:[%s0 + $0x2a4] sm:$0xf]
  %v197 = vld [vmem:[%s0 + $0x2a8] sm:$0xf]
  %v198 = vld [vmem:[%s0 + $0x2ac] sm:$0xf]
  %v199 = vld [vmem:[%s0 + $0x2b0] sm:$0xf]
  %v200 = vld [vmem:[%s0 + $0x2b4] sm:$0xf]
  %v201 = vld [vmem:[%s0 + $0x2b8] sm:$0xf]
  %v202 = vld [vmem:[%s0 + $0x2bc] sm:$0xf]
  %v203 = vld [vmem:[%s0 + $0x2c0] sm:$0xf]
  %v204 = vld [vmem:[%s0 + $0x2c4] sm:$0xf]
  %v205 = vld [vmem:[%s0 + $0x2c8] sm:$0xf]
  %v206 = vld [vmem:[%s0 + $0x2cc] sm:$0xf]
  %v207 = vld [vmem:[%s0 + $0x2d0] sm:$0xf]
  %v208 = vld [vmem:[%s0 + $0x2d4] sm:$0xf]
  %v209 = vld [vmem:[%s0 + $0x2d8] sm:$0xf]
  %v210 = vld [vmem:[%s0 + $0x2dc] sm:$0xf]
  %v211 = vld [vmem:[%s0 + $0x2e0] sm:$0xf]
  %v212 = vld [vmem:[%s0 + $0x2e4] sm:$0xf]
  %v213 = vld [vmem:[%s0 + $0x2e8] sm:$0xf]
  %v214 = vld [vmem:[%s0 + $0x2ec] sm:$0xf]
  %v215 = vld [vmem:[%s0 + $0x2f0] sm:$0xf]
  %v216 = vld [vmem:[%s0 + $0x2f4] sm:$0xf]
  %v217 = vld [vmem:[%s0 + $0x2f8] sm:$0xf]
  %v218 = vld [vmem:[%s0 + $0x2fc] sm:$0xf]
  %v219 = vld [vmem:[%s0 + $0x300] sm:$0xf]
  %v220 = vld [vmem:[%s0 + $0x304] sm:$0xf]
  %v221 = vld [vmem:[%s0 + $0x308] sm:$0xf]
  %v222 = vld [vmem:[%s0 + $0x30c] sm:$0xf]
  %v223 = vld [vmem:[%s0 + $0x310] sm:$0xf]
  %v224 = vld [vmem:[%s0 + $0x314] sm:$0xf]
  %v225 = vld [vmem:[%s0 + $0x318] sm:$0xf]
  %v226 = vld [vmem:[%s0 + $0x31c] sm:$0xf]
  %v227 = vld [vmem:[%s0 + $0x320] sm:$0xf]
  %v228 = vld [vmem:[%s0 + $0x324] sm:$0xf]
  %v229 = vld [vmem:[%s0 + $0x328] sm:$0xf]
  %v230 = vld [vmem:[%s0 + $0x32c] sm:$0xf]
  %v231 = vld [vmem:[%s0 + $0x330] sm:$0xf]
  %v232 = vld [vmem:[%s0 + $0x334] sm:$0xf]
  %v233 = vld [vmem:[%s0 + $0x338] sm:$0xf]
  %v234 = vld [vmem:[%s0 + $0x33c] sm:$0xf]
  %v235 = vld [vmem:[%s0 + $0x340] sm:$0xf]
  %v236 = vld [vmem:[%s0 + $0x344] sm:$0xf]
  %v237 = vld [vmem:[%s0 + $0x348] sm:$0xf]
  %v238 = vld [vmem:[%s0 + $0x34c] sm:$0xf]
  %v239 = vld [vmem:[%s0 + $0x350] sm:$0xf]
  %v240 = vld [vmem:[%s0 + $0x354] sm:$0xf]
  %v241 = vld [vmem:[%s0 + $0x358] sm:$0xf]
  %v242 = vld [vmem:[%s0 + $0x35c] sm:$0xf]
  %v243 = vld [vmem:[%s0 + $0x360] sm:$0xf]
  %v244 = vld [vmem:[%s0 + $0x364] sm:$0xf]
  %v245 = vld [vmem:[%s0 + $0x368] sm:$0xf]
  %v246 = vld [vmem:[%s0 + $0x36c] sm:$0xf]
  %v247 = vld [vmem:[%s0 + $0x370] sm:$0xf]
  %v248 = vld [vmem:[%s0 + $0x374] sm:$0xf]
  %v249 = vld [vmem:[%s0 + $0x378] sm:$0xf]
  %v250 = vld [vmem:[%s0 + $0x37c] sm:$0xf]
  %v251 = vld [vmem:[%s0 + $0x380] sm:$0xf]
  %v252 = vld [vmem:[%s0 + $0x384] sm:$0xf]
  %v253 = vld [vmem:[%s0 + $0x388] sm:$0xf]
  %v254 = vld [vmem:[%s0 + $0x38c] sm:$0xf]
  %v255 = vld [vmem:[%s0 + $0x390] sm:$0xf]
  %v256 = vld [vmem:[%s0 + $0x394] sm:$0xf]
  %v257 = vld [vmem:[%s0 + $0x398] sm:$0xf]
  %v258 = vld [vmem:[%s0 + $0x39c] sm:$0xf]
  %v259 = vld [vmem:[%s0 + $0x3a0] sm:$0xf]
  %v260 = vld [vmem:[%s0 + $0x3a4] sm:$0xf]
  %v261 = vld [vmem:[%s0 + $0x3a8] sm:$0xf]
  %v262 = vld [vmem:[%s0 + $0x3ac] sm:$0xf]
  %v263 = vld [vmem:[%s0 + $0x3b0] sm:$0xf]
  %v264 = vld [vmem:[%s0 + $0x3b4] sm:$0xf]
  %v265 = vld [vmem:[%s0 + $0x3b8] sm:$0xf]
  %v266 = vld [vmem:[%s0 + $0x3bc] sm:$0xf]
  %v267 = vld [vmem:[%s0 + $0x3c0] sm:$0xf]
  %v268 = vld [vmem:[%s0 + $0x3c4] sm:$0xf]
  %v269 = vld [vmem:[%s0 + $0x3c8] sm:$0xf]
  %v270 = vld [vmem:[%s0 + $0x3cc] sm:$0xf]
  %v271 = vld [vmem:[%s0 + $0x3d0] sm:$0xf]
  %v272 = vld [vmem:[%s0 + $0x3d4] sm:$0xf]
  %v273 = vld [vmem:[%s0 + $0x3d8] sm:$0xf]
  %v274 = vld [vmem:[%s0 + $0x3dc] sm:$0xf]
  %v275 = vld [vmem:[%s0 + $0x3e0] sm:$0xf]
  %v276 = vld [vmem:[%s0 + $0x3e4] sm:$0xf]
  %v277 = vld [vmem:[%s0 + $0x3e8] sm:$0xf]
  %v278 = vld [vmem:[%s0 + $0x3ec] sm:$0xf]
  %v279 = vld [vmem:[%s0 + $0x3f0] sm:$0xf]
  %v280 = vld [vmem:[%s0 + $0x3f4] sm:$0xf]
  %v281 = vld [vmem:[%s0 + $0x3f8] sm:$0xf]
  %v282 = vld [vmem:[%s0 + $0x3fc] sm:$0xf]
  %v283 = vld [vmem:[%s1] sm:$0xf]
  %v284 = vld [vmem:[%s1 + $0x4] sm:$0xf]
  %v541 = vunpack.c.l.b16 %v27
  %v542 = vunpack.c.l.b16 %v28
  %v543 = vunpack.c.l.b16 %v29
  %v544 = vunpack.c.l.b16 %v30
  %v545 = vunpack.c.l.b16 %v31
  %v546 = vunpack.c.l.b16 %v32
  %v547 = vunpack.c.l.b16 %v33
  %v548 = vunpack.c.l.b16 %v34
  %v549 = vunpack.c.l.b16 %v35
  %v550 = vunpack.c.l.b16 %v36
  %v551 = vunpack.c.l.b16 %v37
  %v552 = vunpack.c.l.b16 %v38
  %v553 = vunpack.c.l.b16 %v39
  %v554 = vunpack.c.l.b16 %v40
  %v555 = vunpack.c.l.b16 %v41
  %v556 = vunpack.c.l.b16 %v42
  %v557 = vunpack.c.l.b16 %v43
  %v558 = vunpack.c.l.b16 %v44
  %v559 = vunpack.c.l.b16 %v45
  %v560 = vunpack.c.l.b16 %v46
  %v561 = vunpack.c.l.b16 %v47
  %v562 = vunpack.c.l.b16 %v48
  %v563 = vunpack.c.l.b16 %v49
  %v564 = vunpack.c.l.b16 %v50
  %v565 = vunpack.c.l.b16 %v51
  %v566 = vunpack.c.l.b16 %v52
  %v567 = vunpack.c.l.b16 %v53
  %v568 = vunpack.c.l.b16 %v54
  %v569 = vunpack.c.l.b16 %v55
  %v570 = vunpack.c.l.b16 %v56
  %v571 = vunpack.c.l.b16 %v57
  %v572 = vunpack.c.l.b16 %v58
  %v573 = vunpack.c.l.b16 %v59
  %v574 = vunpack.c.l.b16 %v60
  %v575 = vunpack.c.l.b16 %v61
  %v576 = vunpack.c.l.b16 %v62
  %v577 = vunpack.c.l.b16 %v63
  %v578 = vunpack.c.l.b16 %v64
  %v579 = vunpack.c.l.b16 %v65
  %v580 = vunpack.c.l.b16 %v66
  %v581 = vunpack.c.l.b16 %v67
  %v582 = vunpack.c.l.b16 %v68
  %v583 = vunpack.c.l.b16 %v69
  %v584 = vunpack.c.l.b16 %v70
  %v585 = vunpack.c.l.b16 %v71
  %v586 = vunpack.c.l.b16 %v72
  %v587 = vunpack.c.l.b16 %v73
  %v588 = vunpack.c.l.b16 %v74
  %v589 = vunpack.c.l.b16 %v75
  %v590 = vunpack.c.l.b16 %v76
  %v591 = vunpack.c.l.b16 %v77
  %v592 = vunpack.c.l.b16 %v78
  %v593 = vunpack.c.l.b16 %v79
  %v594 = vunpack.c.l.b16 %v80
  %v595 = vunpack.c.l.b16 %v81
  %v596 = vunpack.c.l.b16 %v82
  %v597 = vunpack.c.l.b16 %v83
  %v598 = vunpack.c.l.b16 %v84
  %v599 = vunpack.c.l.b16 %v85
  %v600 = vunpack.c.l.b16 %v86
  %v601 = vunpack.c.l.b16 %v87
  %v602 = vunpack.c.l.b16 %v88
  %v603 = vunpack.c.l.b16 %v89
  %v604 = vunpack.c.l.b16 %v90
  %v605 = vunpack.c.l.b16 %v91
  %v606 = vunpack.c.l.b16 %v92
  %v607 = vunpack.c.l.b16 %v93
  %v608 = vunpack.c.l.b16 %v94
  %v609 = vunpack.c.l.b16 %v95
  %v610 = vunpack.c.l.b16 %v96
  %v611 = vunpack.c.l.b16 %v97
  %v612 = vunpack.c.l.b16 %v98
  %v613 = vunpack.c.l.b16 %v99
  %v614 = vunpack.c.l.b16 %v100
  %v615 = vunpack.c.l.b16 %v101
  %v616 = vunpack.c.l.b16 %v102
  %v617 = vunpack.c.l.b16 %v103
  %v618 = vunpack.c.l.b16 %v104
  %v619 = vunpack.c.l.b16 %v105
  %v620 = vunpack.c.l.b16 %v106
  %v621 = vunpack.c.l.b16 %v107
  %v622 = vunpack.c.l.b16 %v108
  %v623 = vunpack.c.l.b16 %v109
  %v624 = vunpack.c.l.b16 %v110
  %v625 = vunpack.c.l.b16 %v111
  %v626 = vunpack.c.l.b16 %v112
  %v627 = vunpack.c.l.b16 %v113
  %v628 = vunpack.c.l.b16 %v114
  %v629 = vunpack.c.l.b16 %v115
  %v630 = vunpack.c.l.b16 %v116
  %v631 = vunpack.c.l.b16 %v117
  %v632 = vunpack.c.l.b16 %v118
  %v633 = vunpack.c.l.b16 %v119
  %v634 = vunpack.c.l.b16 %v120
  %v635 = vunpack.c.l.b16 %v121
  %v636 = vunpack.c.l.b16 %v122
  %v637 = vunpack.c.l.b16 %v123
  %v638 = vunpack.c.l.b16 %v124
  %v639 = vunpack.c.l.b16 %v125
  %v640 = vunpack.c.l.b16 %v126
  %v641 = vunpack.c.l.b16 %v127
  %v642 = vunpack.c.l.b16 %v128
  %v643 = vunpack.c.l.b16 %v129
  %v644 = vunpack.c.l.b16 %v130
  %v645 = vunpack.c.l.b16 %v131
  %v646 = vunpack.c.l.b16 %v132
  %v647 = vunpack.c.l.b16 %v133
  %v648 = vunpack.c.l.b16 %v134
  %v649 = vunpack.c.l.b16 %v135
  %v650 = vunpack.c.l.b16 %v136
  %v651 = vunpack.c.l.b16 %v137
  %v652 = vunpack.c.l.b16 %v138
  %v653 = vunpack.c.l.b16 %v139
  %v654 = vunpack.c.l.b16 %v140
  %v655 = vunpack.c.l.b16 %v141
  %v656 = vunpack.c.l.b16 %v142
  %v657 = vunpack.c.l.b16 %v143
  %v658 = vunpack.c.l.b16 %v144
  %v659 = vunpack.c.l.b16 %v145
  %v660 = vunpack.c.l.b16 %v146
  %v661 = vunpack.c.l.b16 %v147
  %v662 = vunpack.c.l.b16 %v148
  %v663 = vunpack.c.l.b16 %v149
  %v664 = vunpack.c.l.b16 %v150
  %v665 = vunpack.c.l.b16 %v151
  %v666 = vunpack.c.l.b16 %v152
  %v667 = vunpack.c.l.b16 %v153
  %v668 = vunpack.c.l.b16 %v154
  %v669 = vunpack.c.l.b16 %v155
  %v670 = vunpack.c.l.b16 %v156
  %v671 = vunpack.c.l.b16 %v157
  %v672 = vunpack.c.l.b16 %v158
  %v673 = vunpack.c.l.b16 %v159
  %v674 = vunpack.c.l.b16 %v160
  %v675 = vunpack.c.l.b16 %v161
  %v676 = vunpack.c.l.b16 %v162
  %v677 = vunpack.c.l.b16 %v163
  %v678 = vunpack.c.l.b16 %v164
  %v679 = vunpack.c.l.b16 %v165
  %v680 = vunpack.c.l.b16 %v166
  %v681 = vunpack.c.l.b16 %v167
  %v682 = vunpack.c.l.b16 %v168
  %v683 = vunpack.c.l.b16 %v169
  %v684 = vunpack.c.l.b16 %v170
  %v685 = vunpack.c.l.b16 %v171
  %v686 = vunpack.c.l.b16 %v172
  %v687 = vunpack.c.l.b16 %v173
  %v688 = vunpack.c.l.b16 %v174
  %v689 = vunpack.c.l.b16 %v175
  %v690 = vunpack.c.l.b16 %v176
  %v691 = vunpack.c.l.b16 %v177
  %v692 = vunpack.c.l.b16 %v178
  %v693 = vunpack.c.l.b16 %v179
  %v694 = vunpack.c.l.b16 %v180
  %v695 = vunpack.c.l.b16 %v181
  %v696 = vunpack.c.l.b16 %v182
  %v697 = vunpack.c.l.b16 %v183
  %v698 = vunpack.c.l.b16 %v184
  %v699 = vunpack.c.l.b16 %v185
  %v700 = vunpack.c.l.b16 %v186
  %v701 = vunpack.c.l.b16 %v187
  %v702 = vunpack.c.l.b16 %v188
  %v703 = vunpack.c.l.b16 %v189
  %v704 = vunpack.c.l.b16 %v190
  %v705 = vunpack.c.l.b16 %v191
  %v706 = vunpack.c.l.b16 %v192
  %v707 = vunpack.c.l.b16 %v193
  %v708 = vunpack.c.l.b16 %v194
  %v709 = vunpack.c.l.b16 %v195
  %v710 = vunpack.c.l.b16 %v196
  %v711 = vunpack.c.l.b16 %v197
  %v712 = vunpack.c.l.b16 %v198
  %v713 = vunpack.c.l.b16 %v199
  %v714 = vunpack.c.l.b16 %v200
  %v715 = vunpack.c.l.b16 %v201
  %v716 = vunpack.c.l.b16 %v202
  %v717 = vunpack.c.l.b16 %v203
  %v718 = vunpack.c.l.b16 %v204
  %v719 = vunpack.c.l.b16 %v205
  %v720 = vunpack.c.l.b16 %v206
  %v721 = vunpack.c.l.b16 %v207
  %v722 = vunpack.c.l.b16 %v208
  %v723 = vunpack.c.l.b16 %v209
  %v724 = vunpack.c.l.b16 %v210
  %v725 = vunpack.c.l.b16 %v211
  %v726 = vunpack.c.l.b16 %v212
  %v727 = vunpack.c.l.b16 %v213
  %v728 = vunpack.c.l.b16 %v214
  %v729 = vunpack.c.l.b16 %v215
  %v730 = vunpack.c.l.b16 %v216
  %v731 = vunpack.c.l.b16 %v217
  %v732 = vunpack.c.l.b16 %v218
  %v733 = vunpack.c.l.b16 %v219
  %v734 = vunpack.c.l.b16 %v220
  %v735 = vunpack.c.l.b16 %v221
  %v736 = vunpack.c.l.b16 %v222
  %v737 = vunpack.c.l.b16 %v223
  %v738 = vunpack.c.l.b16 %v224
  %v739 = vunpack.c.l.b16 %v225
  %v740 = vunpack.c.l.b16 %v226
  %v741 = vunpack.c.l.b16 %v227
  %v742 = vunpack.c.l.b16 %v228
  %v743 = vunpack.c.l.b16 %v229
  %v744 = vunpack.c.l.b16 %v230
  %v745 = vunpack.c.l.b16 %v231
  %v746 = vunpack.c.l.b16 %v232
  %v747 = vunpack.c.l.b16 %v233
  %v748 = vunpack.c.l.b16 %v234
  %v749 = vunpack.c.l.b16 %v235
  %v750 = vunpack.c.l.b16 %v236
  %v751 = vunpack.c.l.b16 %v237
  %v752 = vunpack.c.l.b16 %v238
  %v753 = vunpack.c.l.b16 %v239
  %v754 = vunpack.c.l.b16 %v240
  %v755 = vunpack.c.l.b16 %v241
  %v756 = vunpack.c.l.b16 %v242
  %v757 = vunpack.c.l.b16 %v243
  %v758 = vunpack.c.l.b16 %v244
  %v759 = vunpack.c.l.b16 %v245
  %v760 = vunpack.c.l.b16 %v246
  %v761 = vunpack.c.l.b16 %v247
  %v762 = vunpack.c.l.b16 %v248
  %v763 = vunpack.c.l.b16 %v249
  %v764 = vunpack.c.l.b16 %v250
  %v765 = vunpack.c.l.b16 %v251
  %v766 = vunpack.c.l.b16 %v252
  %v767 = vunpack.c.l.b16 %v253
  %v768 = vunpack.c.l.b16 %v254
  %v769 = vunpack.c.l.b16 %v255
  %v770 = vunpack.c.l.b16 %v256
  %v771 = vunpack.c.l.b16 %v257
  %v772 = vunpack.c.l.b16 %v258
  %v773 = vunpack.c.l.b16 %v259
  %v774 = vunpack.c.l.b16 %v260
  %v775 = vunpack.c.l.b16 %v261
  %v776 = vunpack.c.l.b16 %v262
  %v777 = vunpack.c.l.b16 %v263
  %v778 = vunpack.c.l.b16 %v264
  %v779 = vunpack.c.l.b16 %v265
  %v780 = vunpack.c.l.b16 %v266
  %v781 = vunpack.c.l.b16 %v267
  %v782 = vunpack.c.l.b16 %v268
  %v783 = vunpack.c.l.b16 %v269
  %v784 = vunpack.c.l.b16 %v270
  %v785 = vunpack.c.l.b16 %v271
  %v786 = vunpack.c.l.b16 %v272
  %v787 = vunpack.c.l.b16 %v273
  %v788 = vunpack.c.l.b16 %v274
  %v789 = vunpack.c.l.b16 %v275
  %v790 = vunpack.c.l.b16 %v276
  %v791 = vunpack.c.l.b16 %v277
  %v792 = vunpack.c.l.b16 %v278
  %v793 = vunpack.c.l.b16 %v279
  %v794 = vunpack.c.l.b16 %v280
  %v795 = vunpack.c.l.b16 %v281
  %v796 = vunpack.c.l.b16 %v282
  %v797 = vpack.c.b16 %v542, %v541
  %v798 = vpack.c.b16 %v544, %v543
  %v799 = vpack.c.b16 %v546, %v545
  %v800 = vpack.c.b16 %v548, %v547
  %v801 = vpack.c.b16 %v550, %v549
  %v802 = vpack.c.b16 %v552, %v551
  %v803 = vpack.c.b16 %v554, %v553
  %v804 = vpack.c.b16 %v556, %v555
  %v805 = vpack.c.b16 %v558, %v557
  %v806 = vpack.c.b16 %v560, %v559
  %v807 = vpack.c.b16 %v562, %v561
  %v808 = vpack.c.b16 %v564, %v563
  %v809 = vpack.c.b16 %v566, %v565
  %v810 = vpack.c.b16 %v568, %v567
  %v811 = vpack.c.b16 %v570, %v569
  %v812 = vpack.c.b16 %v572, %v571
  %v813 = vpack.c.b16 %v574, %v573
  %v814 = vpack.c.b16 %v576, %v575
  %v815 = vpack.c.b16 %v578, %v577
  %v816 = vpack.c.b16 %v580, %v579
  %v817 = vpack.c.b16 %v582, %v581
  %v818 = vpack.c.b16 %v584, %v583
  %v819 = vpack.c.b16 %v586, %v585
  %v820 = vpack.c.b16 %v588, %v587
  %v821 = vpack.c.b16 %v590, %v589
  %v822 = vpack.c.b16 %v592, %v591
  %v823 = vpack.c.b16 %v594, %v593
  %v824 = vpack.c.b16 %v596, %v595
  %v825 = vpack.c.b16 %v598, %v597
  %v826 = vpack.c.b16 %v600, %v599
  %v827 = vpack.c.b16 %v602, %v601
  %v828 = vpack.c.b16 %v604, %v603
  %v829 = vpack.c.b16 %v606, %v605
  %v830 = vpack.c.b16 %v608, %v607
  %v831 = vpack.c.b16 %v610, %v609
  %v832 = vpack.c.b16 %v612, %v611
  %v833 = vpack.c.b16 %v614, %v613
  %v834 = vpack.c.b16 %v616, %v615
  %v835 = vpack.c.b16 %v618, %v617
  %v836 = vpack.c.b16 %v620, %v619
  %v837 = vpack.c.b16 %v622, %v621
  %v838 = vpack.c.b16 %v624, %v623
  %v839 = vpack.c.b16 %v626, %v625
  %v840 = vpack.c.b16 %v628, %v627
  %v841 = vpack.c.b16 %v630, %v629
  %v842 = vpack.c.b16 %v632, %v631
  %v843 = vpack.c.b16 %v634, %v633
  %v844 = vpack.c.b16 %v636, %v635
  %v845 = vpack.c.b16 %v638, %v637
  %v846 = vpack.c.b16 %v640, %v639
  %v847 = vpack.c.b16 %v642, %v641
  %v848 = vpack.c.b16 %v644, %v643
  %v849 = vpack.c.b16 %v646, %v645
  %v850 = vpack.c.b16 %v648, %v647
  %v851 = vpack.c.b16 %v650, %v649
  %v852 = vpack.c.b16 %v652, %v651
  %v853 = vpack.c.b16 %v654, %v653
  %v854 = vpack.c.b16 %v656, %v655
  %v855 = vpack.c.b16 %v658, %v657
  %v856 = vpack.c.b16 %v660, %v659
  %v857 = vpack.c.b16 %v662, %v661
  %v858 = vpack.c.b16 %v664, %v663
  %v859 = vpack.c.b16 %v666, %v665
  %v860 = vpack.c.b16 %v668, %v667
  %v861 = vpack.c.b16 %v670, %v669
  %v862 = vpack.c.b16 %v672, %v671
  %v863 = vpack.c.b16 %v674, %v673
  %v864 = vpack.c.b16 %v676, %v675
  %v865 = vpack.c.b16 %v678, %v677
  %v866 = vpack.c.b16 %v680, %v679
  %v867 = vpack.c.b16 %v682, %v681
  %v868 = vpack.c.b16 %v684, %v683
  %v869 = vpack.c.b16 %v686, %v685
  %v870 = vpack.c.b16 %v688, %v687
  %v871 = vpack.c.b16 %v690, %v689
  %v872 = vpack.c.b16 %v692, %v691
  %v873 = vpack.c.b16 %v694, %v693
  %v874 = vpack.c.b16 %v696, %v695
  %v875 = vpack.c.b16 %v698, %v697
  %v876 = vpack.c.b16 %v700, %v699
  %v877 = vpack.c.b16 %v702, %v701
  %v878 = vpack.c.b16 %v704, %v703
  %v879 = vpack.c.b16 %v706, %v705
  %v880 = vpack.c.b16 %v708, %v707
  %v881 = vpack.c.b16 %v710, %v709
  %v882 = vpack.c.b16 %v712, %v711
  %v883 = vpack.c.b16 %v714, %v713
  %v884 = vpack.c.b16 %v716, %v715
  %v885 = vpack.c.b16 %v718, %v717
  %v886 = vpack.c.b16 %v720, %v719
  %v887 = vpack.c.b16 %v722, %v721
  %v888 = vpack.c.b16 %v724, %v723
  %v889 = vpack.c.b16 %v726, %v725
  %v890 = vpack.c.b16 %v728, %v727
  %v891 = vpack.c.b16 %v730, %v729
  %v892 = vpack.c.b16 %v732, %v731
  %v893 = vpack.c.b16 %v734, %v733
  %v894 = vpack.c.b16 %v736, %v735
  %v895 = vpack.c.b16 %v738, %v737
  %v896 = vpack.c.b16 %v740, %v739
  %v897 = vpack.c.b16 %v742, %v741
  %v898 = vpack.c.b16 %v744, %v743
  %v899 = vpack.c.b16 %v746, %v745
  %v900 = vpack.c.b16 %v748, %v747
  %v901 = vpack.c.b16 %v750, %v749
  %v902 = vpack.c.b16 %v752, %v751
  %v903 = vpack.c.b16 %v754, %v753
  %v904 = vpack.c.b16 %v756, %v755
  %v905 = vpack.c.b16 %v758, %v757
  %v906 = vpack.c.b16 %v760, %v759
  %v907 = vpack.c.b16 %v762, %v761
  %v908 = vpack.c.b16 %v764, %v763
  %v909 = vpack.c.b16 %v766, %v765
  %v910 = vpack.c.b16 %v768, %v767
  %v911 = vpack.c.b16 %v770, %v769
  %v912 = vpack.c.b16 %v772, %v771
  %v913 = vpack.c.b16 %v774, %v773
  %v914 = vpack.c.b16 %v776, %v775
  %v915 = vpack.c.b16 %v778, %v777
  %v916 = vpack.c.b16 %v780, %v779
  %v917 = vpack.c.b16 %v782, %v781
  %v918 = vpack.c.b16 %v784, %v783
  %v919 = vpack.c.b16 %v786, %v785
  %v920 = vpack.c.b16 %v788, %v787
  %v921 = vpack.c.b16 %v790, %v789
  %v922 = vpack.c.b16 %v792, %v791
  %v923 = vpack.c.b16 %v794, %v793
  %v924 = vpack.c.b16 %v796, %v795
  %v927 = vunpack.c.l.b16 %v283
  %v928 = vunpack.c.l.b16 %v284
  %v929 = vpack.c.b16 %v928, %v927
  %vm931 = vcmask 130048
  %v933 = vsel %vm931, %v797, 0
  %v936 = vsel %vm931, %v798, 0
  %v939 = vsel %vm931, %v799, 0
  %v942 = vsel %vm931, %v800, 0
  %v945 = vsel %vm931, %v801, 0
  %v948 = vsel %vm931, %v802, 0
  %v951 = vsel %vm931, %v803, 0
  %v954 = vsel %vm931, %v804, 0
  %v957 = vsel %vm931, %v805, 0
  %v960 = vsel %vm931, %v806, 0
  %v963 = vsel %vm931, %v807, 0
  %v966 = vsel %vm931, %v808, 0
  %v969 = vsel %vm931, %v809, 0
  %v972 = vsel %vm931, %v810, 0
  %v975 = vsel %vm931, %v811, 0
  %v978 = vsel %vm931, %v812, 0
  %v981 = vsel %vm931, %v813, 0
  %v984 = vsel %vm931, %v814, 0
  %v987 = vsel %vm931, %v815, 0
  %v990 = vsel %vm931, %v816, 0
  %v993 = vsel %vm931, %v817, 0
  %v996 = vsel %vm931, %v818, 0
  %v999 = vsel %vm931, %v819, 0
  %v1002 = vsel %vm931, %v820, 0
  %v1005 = vsel %vm931, %v821, 0
  %v1008 = vsel %vm931, %v822, 0
  %v1011 = vsel %vm931, %v823, 0
  %v1014 = vsel %vm931, %v824, 0
  %v1017 = vsel %vm931, %v825, 0
  %v1020 = vsel %vm931, %v826, 0
  %v1023 = vsel %vm931, %v827, 0
  %v1026 = vsel %vm931, %v828, 0
  %v1029 = vsel %vm931, %v829, 0
  %v1032 = vsel %vm931, %v830, 0
  %v1035 = vsel %vm931, %v831, 0
  %v1038 = vsel %vm931, %v832, 0
  %v1041 = vsel %vm931, %v833, 0
  %v1044 = vsel %vm931, %v834, 0
  %v1047 = vsel %vm931, %v835, 0
  %v1050 = vsel %vm931, %v836, 0
  %v1053 = vsel %vm931, %v837, 0
  %v1056 = vsel %vm931, %v838, 0
  %v1059 = vsel %vm931, %v839, 0
  %v1062 = vsel %vm931, %v840, 0
  %v1065 = vsel %vm931, %v841, 0
  %v1068 = vsel %vm931, %v842, 0
  %v1071 = vsel %vm931, %v843, 0
  %v1074 = vsel %vm931, %v844, 0
  %v1077 = vsel %vm931, %v845, 0
  %v1080 = vsel %vm931, %v846, 0
  %v1083 = vsel %vm931, %v847, 0
  %v1086 = vsel %vm931, %v848, 0
  %v1089 = vsel %vm931, %v849, 0
  %v1092 = vsel %vm931, %v850, 0
  %v1095 = vsel %vm931, %v851, 0
  %v1098 = vsel %vm931, %v852, 0
  %v1101 = vsel %vm931, %v853, 0
  %v1104 = vsel %vm931, %v854, 0
  %v1107 = vsel %vm931, %v855, 0
  %v1110 = vsel %vm931, %v856, 0
  %v1113 = vsel %vm931, %v857, 0
  %v1116 = vsel %vm931, %v858, 0
  %v1119 = vsel %vm931, %v859, 0
  %v1122 = vsel %vm931, %v860, 0
  %v1125 = vsel %vm931, %v861, 0
  %v1128 = vsel %vm931, %v862, 0
  %v1131 = vsel %vm931, %v863, 0
  %v1134 = vsel %vm931, %v864, 0
  %v1137 = vsel %vm931, %v865, 0
  %v1140 = vsel %vm931, %v866, 0
  %v1143 = vsel %vm931, %v867, 0
  %v1146 = vsel %vm931, %v868, 0
  %v1149 = vsel %vm931, %v869, 0
  %v1152 = vsel %vm931, %v870, 0
  %v1155 = vsel %vm931, %v871, 0
  %v1158 = vsel %vm931, %v872, 0
  %v1161 = vsel %vm931, %v873, 0
  %v1164 = vsel %vm931, %v874, 0
  %v1167 = vsel %vm931, %v875, 0
  %v1170 = vsel %vm931, %v876, 0
  %v1173 = vsel %vm931, %v877, 0
  %v1176 = vsel %vm931, %v878, 0
  %v1179 = vsel %vm931, %v879, 0
  %v1182 = vsel %vm931, %v880, 0
  %v1185 = vsel %vm931, %v881, 0
  %v1188 = vsel %vm931, %v882, 0
  %v1191 = vsel %vm931, %v883, 0
  %v1194 = vsel %vm931, %v884, 0
  %v1197 = vsel %vm931, %v885, 0
  %v1200 = vsel %vm931, %v886, 0
  %v1203 = vsel %vm931, %v887, 0
  %v1206 = vsel %vm931, %v888, 0
  %v1209 = vsel %vm931, %v889, 0
  %v1212 = vsel %vm931, %v890, 0
  %v1215 = vsel %vm931, %v891, 0
  %v1218 = vsel %vm931, %v892, 0
  %v1221 = vsel %vm931, %v893, 0
  %v1224 = vsel %vm931, %v894, 0
  %v1227 = vsel %vm931, %v895, 0
  %v1230 = vsel %vm931, %v896, 0
  %v1233 = vsel %vm931, %v897, 0
  %v1236 = vsel %vm931, %v898, 0
  %v1239 = vsel %vm931, %v899, 0
  %v1242 = vsel %vm931, %v900, 0
  %v1245 = vsel %vm931, %v901, 0
  %v1248 = vsel %vm931, %v902, 0
  %v1251 = vsel %vm931, %v903, 0
  %v1254 = vsel %vm931, %v904, 0
  %v1257 = vsel %vm931, %v905, 0
  %v1260 = vsel %vm931, %v906, 0
  %v1263 = vsel %vm931, %v907, 0
  %v1266 = vsel %vm931, %v908, 0
  %v1269 = vsel %vm931, %v909, 0
  %v1272 = vsel %vm931, %v910, 0
  %v1275 = vsel %vm931, %v911, 0
  %v1278 = vsel %vm931, %v912, 0
  %v1281 = vsel %vm931, %v913, 0
  %v1284 = vsel %vm931, %v914, 0
  %v1287 = vsel %vm931, %v915, 0
  %v1290 = vsel %vm931, %v916, 0
  %v1293 = vsel %vm931, %v917, 0
  %v1296 = vsel %vm931, %v918, 0
  %v1299 = vsel %vm931, %v919, 0
  %v1302 = vsel %vm931, %v920, 0
  %v1305 = vsel %vm931, %v921, 0
  %v1308 = vsel %vm931, %v922, 0
  %v1311 = vsel %vm931, %v923, 0
  %v1314 = vsel %vm931, %v924, 0
  %1316 = vmatpush.bf16.msra.mxu0 0
  %1317 = vmatpush.bf16.msra.mxu0 0
  %1318 = vmatpush.bf16.msra.mxu0 0
  %1319 = vmatpush.bf16.msra.mxu0 0
  %1320 = vmatpush.bf16.msra.mxu0 0
  %1321 = vmatpush.bf16.msra.mxu0 0
  %1322 = vmatpush.bf16.msra.mxu0 0
  %1323 = vmatpush.bf16.msra.mxu0 %v929
  %1324 = vmatmul.bf16.gmra.mxu0 %v933
  %v1325 = vpop.f32.mrf.mxu0
  %v1326 = vadd.f32 0.0, %v1325
  %v1327 = vpop.f32.mrf.mxu0
  %v1328 = vadd.f32 0.0, %v1327
  %1329 = vmatmul.bf16.gmra.mxu0 %v936
  %v1330 = vpop.f32.mrf.mxu0
  %v1331 = vadd.f32 0.0, %v1330
  %v1332 = vpop.f32.mrf.mxu0
  %v1333 = vadd.f32 0.0, %v1332
  %1334 = vmatmul.bf16.gmra.mxu0 %v939
  %v1335 = vpop.f32.mrf.mxu0
  %v1336 = vadd.f32 0.0, %v1335
  %v1337 = vpop.f32.mrf.mxu0
  %v1338 = vadd.f32 0.0, %v1337
  %1339 = vmatmul.bf16.gmra.mxu0 %v942
  %v1340 = vpop.f32.mrf.mxu0
  %v1341 = vadd.f32 0.0, %v1340
  %v1342 = vpop.f32.mrf.mxu0
  %v1343 = vadd.f32 0.0, %v1342
  %1344 = vmatmul.bf16.gmra.mxu0 %v945
  %v1345 = vpop.f32.mrf.mxu0
  %v1346 = vadd.f32 0.0, %v1345
  %v1347 = vpop.f32.mrf.mxu0
  %v1348 = vadd.f32 0.0, %v1347
  %1349 = vmatmul.bf16.gmra.mxu0 %v948
  %v1350 = vpop.f32.mrf.mxu0
  %v1351 = vadd.f32 0.0, %v1350
  %v1352 = vpop.f32.mrf.mxu0
  %v1353 = vadd.f32 0.0, %v1352
  %1354 = vmatmul.bf16.gmra.mxu0 %v951
  %v1355 = vpop.f32.mrf.mxu0
  %v1356 = vadd.f32 0.0, %v1355
  %v1357 = vpop.f32.mrf.mxu0
  %v1358 = vadd.f32 0.0, %v1357
  %1359 = vmatmul.bf16.gmra.mxu0 %v954
  %v1360 = vpop.f32.mrf.mxu0
  %v1361 = vadd.f32 0.0, %v1360
  %v1362 = vpop.f32.mrf.mxu0
  %v1363 = vadd.f32 0.0, %v1362
  %1364 = vmatmul.bf16.gmra.mxu0 %v957
  %v1365 = vpop.f32.mrf.mxu0
  %v1366 = vadd.f32 0.0, %v1365
  %v1367 = vpop.f32.mrf.mxu0
  %v1368 = vadd.f32 0.0, %v1367
  %1369 = vmatmul.bf16.gmra.mxu0 %v960
  %v1370 = vpop.f32.mrf.mxu0
  %v1371 = vadd.f32 0.0, %v1370
  %v1372 = vpop.f32.mrf.mxu0
  %v1373 = vadd.f32 0.0, %v1372
  %1374 = vmatmul.bf16.gmra.mxu0 %v963
  %v1375 = vpop.f32.mrf.mxu0
  %v1376 = vadd.f32 0.0, %v1375
  %v1377 = vpop.f32.mrf.mxu0
  %v1378 = vadd.f32 0.0, %v1377
  %1379 = vmatmul.bf16.gmra.mxu0 %v966
  %v1380 = vpop.f32.mrf.mxu0
  %v1381 = vadd.f32 0.0, %v1380
  %v1382 = vpop.f32.mrf.mxu0
  %v1383 = vadd.f32 0.0, %v1382
  %1384 = vmatmul.bf16.gmra.mxu0 %v969
  %v1385 = vpop.f32.mrf.mxu0
  %v1386 = vadd.f32 0.0, %v1385
  %v1387 = vpop.f32.mrf.mxu0
  %v1388 = vadd.f32 0.0, %v1387
  %1389 = vmatmul.bf16.gmra.mxu0 %v972
  %v1390 = vpop.f32.mrf.mxu0
  %v1391 = vadd.f32 0.0, %v1390
  %v1392 = vpop.f32.mrf.mxu0
  %v1393 = vadd.f32 0.0, %v1392
  %1394 = vmatmul.bf16.gmra.mxu0 %v975
  %v1395 = vpop.f32.mrf.mxu0
  %v1396 = vadd.f32 0.0, %v1395
  %v1397 = vpop.f32.mrf.mxu0
  %v1398 = vadd.f32 0.0, %v1397
  %1399 = vmatmul.bf16.gmra.mxu0 %v978
  %v1400 = vpop.f32.mrf.mxu0
  %v1401 = vadd.f32 0.0, %v1400
  %v1402 = vpop.f32.mrf.mxu0
  %v1403 = vadd.f32 0.0, %v1402
  %1404 = vmatmul.bf16.gmra.mxu0 %v981
  %v1405 = vpop.f32.mrf.mxu0
  %v1406 = vadd.f32 0.0, %v1405
  %v1407 = vpop.f32.mrf.mxu0
  %v1408 = vadd.f32 0.0, %v1407
  %1409 = vmatmul.bf16.gmra.mxu0 %v984
  %v1410 = vpop.f32.mrf.mxu0
  %v1411 = vadd.f32 0.0, %v1410
  %v1412 = vpop.f32.mrf.mxu0
  %v1413 = vadd.f32 0.0, %v1412
  %1414 = vmatmul.bf16.gmra.mxu0 %v987
  %v1415 = vpop.f32.mrf.mxu0
  %v1416 = vadd.f32 0.0, %v1415
  %v1417 = vpop.f32.mrf.mxu0
  %v1418 = vadd.f32 0.0, %v1417
  %1419 = vmatmul.bf16.gmra.mxu0 %v990
  %v1420 = vpop.f32.mrf.mxu0
  %v1421 = vadd.f32 0.0, %v1420
  %v1422 = vpop.f32.mrf.mxu0
  %v1423 = vadd.f32 0.0, %v1422
  %1424 = vmatmul.bf16.gmra.mxu0 %v993
  %v1425 = vpop.f32.mrf.mxu0
  %v1426 = vadd.f32 0.0, %v1425
  %v1427 = vpop.f32.mrf.mxu0
  %v1428 = vadd.f32 0.0, %v1427
  %1429 = vmatmul.bf16.gmra.mxu0 %v996
  %v1430 = vpop.f32.mrf.mxu0
  %v1431 = vadd.f32 0.0, %v1430
  %v1432 = vpop.f32.mrf.mxu0
  %v1433 = vadd.f32 0.0, %v1432
  %1434 = vmatmul.bf16.gmra.mxu0 %v999
  %v1435 = vpop.f32.mrf.mxu0
  %v1436 = vadd.f32 0.0, %v1435
  %v1437 = vpop.f32.mrf.mxu0
  %v1438 = vadd.f32 0.0, %v1437
  %1439 = vmatmul.bf16.gmra.mxu0 %v1002
  %v1440 = vpop.f32.mrf.mxu0
  %v1441 = vadd.f32 0.0, %v1440
  %v1442 = vpop.f32.mrf.mxu0
  %v1443 = vadd.f32 0.0, %v1442
  %1444 = vmatmul.bf16.gmra.mxu0 %v1005
  %v1445 = vpop.f32.mrf.mxu0
  %v1446 = vadd.f32 0.0, %v1445
  %v1447 = vpop.f32.mrf.mxu0
  %v1448 = vadd.f32 0.0, %v1447
  %1449 = vmatmul.bf16.gmra.mxu0 %v1008
  %v1450 = vpop.f32.mrf.mxu0
  %v1451 = vadd.f32 0.0, %v1450
  %v1452 = vpop.f32.mrf.mxu0
  %v1453 = vadd.f32 0.0, %v1452
  %1454 = vmatmul.bf16.gmra.mxu0 %v1011
  %v1455 = vpop.f32.mrf.mxu0
  %v1456 = vadd.f32 0.0, %v1455
  %v1457 = vpop.f32.mrf.mxu0
  %v1458 = vadd.f32 0.0, %v1457
  %1459 = vmatmul.bf16.gmra.mxu0 %v1014
  %v1460 = vpop.f32.mrf.mxu0
  %v1461 = vadd.f32 0.0, %v1460
  %v1462 = vpop.f32.mrf.mxu0
  %v1463 = vadd.f32 0.0, %v1462
  %1464 = vmatmul.bf16.gmra.mxu0 %v1017
  %v1465 = vpop.f32.mrf.mxu0
  %v1466 = vadd.f32 0.0, %v1465
  %v1467 = vpop.f32.mrf.mxu0
  %v1468 = vadd.f32 0.0, %v1467
  %1469 = vmatmul.bf16.gmra.mxu0 %v1020
  %v1470 = vpop.f32.mrf.mxu0
  %v1471 = vadd.f32 0.0, %v1470
  %v1472 = vpop.f32.mrf.mxu0
  %v1473 = vadd.f32 0.0, %v1472
  %1474 = vmatmul.bf16.gmra.mxu0 %v1023
  %v1475 = vpop.f32.mrf.mxu0
  %v1476 = vadd.f32 0.0, %v1475
  %v1477 = vpop.f32.mrf.mxu0
  %v1478 = vadd.f32 0.0, %v1477
  %1479 = vmatmul.bf16.gmra.mxu0 %v1026
  %v1480 = vpop.f32.mrf.mxu0
  %v1481 = vadd.f32 0.0, %v1480
  %v1482 = vpop.f32.mrf.mxu0
  %v1483 = vadd.f32 0.0, %v1482
  %1484 = vmatmul.bf16.gmra.mxu0 %v1029
  %v1485 = vpop.f32.mrf.mxu0
  %v1486 = vadd.f32 0.0, %v1485
  %v1487 = vpop.f32.mrf.mxu0
  %v1488 = vadd.f32 0.0, %v1487
  %1489 = vmatmul.bf16.gmra.mxu0 %v1032
  %v1490 = vpop.f32.mrf.mxu0
  %v1491 = vadd.f32 0.0, %v1490
  %v1492 = vpop.f32.mrf.mxu0
  %v1493 = vadd.f32 0.0, %v1492
  %1494 = vmatmul.bf16.gmra.mxu0 %v1035
  %v1495 = vpop.f32.mrf.mxu0
  %v1496 = vadd.f32 0.0, %v1495
  %v1497 = vpop.f32.mrf.mxu0
  %v1498 = vadd.f32 0.0, %v1497
  %1499 = vmatmul.bf16.gmra.mxu0 %v1038
  %v1500 = vpop.f32.mrf.mxu0
  %v1501 = vadd.f32 0.0, %v1500
  %v1502 = vpop.f32.mrf.mxu0
  %v1503 = vadd.f32 0.0, %v1502
  %1504 = vmatmul.bf16.gmra.mxu0 %v1041
  %v1505 = vpop.f32.mrf.mxu0
  %v1506 = vadd.f32 0.0, %v1505
  %v1507 = vpop.f32.mrf.mxu0
  %v1508 = vadd.f32 0.0, %v1507
  %1509 = vmatmul.bf16.gmra.mxu0 %v1044
  %v1510 = vpop.f32.mrf.mxu0
  %v1511 = vadd.f32 0.0, %v1510
  %v1512 = vpop.f32.mrf.mxu0
  %v1513 = vadd.f32 0.0, %v1512
  %1514 = vmatmul.bf16.gmra.mxu0 %v1047
  %v1515 = vpop.f32.mrf.mxu0
  %v1516 = vadd.f32 0.0, %v1515
  %v1517 = vpop.f32.mrf.mxu0
  %v1518 = vadd.f32 0.0, %v1517
  %1519 = vmatmul.bf16.gmra.mxu0 %v1050
  %v1520 = vpop.f32.mrf.mxu0
  %v1521 = vadd.f32 0.0, %v1520
  %v1522 = vpop.f32.mrf.mxu0
  %v1523 = vadd.f32 0.0, %v1522
  %1524 = vmatmul.bf16.gmra.mxu0 %v1053
  %v1525 = vpop.f32.mrf.mxu0
  %v1526 = vadd.f32 0.0, %v1525
  %v1527 = vpop.f32.mrf.mxu0
  %v1528 = vadd.f32 0.0, %v1527
  %1529 = vmatmul.bf16.gmra.mxu0 %v1056
  %v1530 = vpop.f32.mrf.mxu0
  %v1531 = vadd.f32 0.0, %v1530
  %v1532 = vpop.f32.mrf.mxu0
  %v1533 = vadd.f32 0.0, %v1532
  %1534 = vmatmul.bf16.gmra.mxu0 %v1059
  %v1535 = vpop.f32.mrf.mxu0
  %v1536 = vadd.f32 0.0, %v1535
  %v1537 = vpop.f32.mrf.mxu0
  %v1538 = vadd.f32 0.0, %v1537
  %1539 = vmatmul.bf16.gmra.mxu0 %v1062
  %v1540 = vpop.f32.mrf.mxu0
  %v1541 = vadd.f32 0.0, %v1540
  %v1542 = vpop.f32.mrf.mxu0
  %v1543 = vadd.f32 0.0, %v1542
  %1544 = vmatmul.bf16.gmra.mxu0 %v1065
  %v1545 = vpop.f32.mrf.mxu0
  %v1546 = vadd.f32 0.0, %v1545
  %v1547 = vpop.f32.mrf.mxu0
  %v1548 = vadd.f32 0.0, %v1547
  %1549 = vmatmul.bf16.gmra.mxu0 %v1068
  %v1550 = vpop.f32.mrf.mxu0
  %v1551 = vadd.f32 0.0, %v1550
  %v1552 = vpop.f32.mrf.mxu0
  %v1553 = vadd.f32 0.0, %v1552
  %1554 = vmatmul.bf16.gmra.mxu0 %v1071
  %v1555 = vpop.f32.mrf.mxu0
  %v1556 = vadd.f32 0.0, %v1555
  %v1557 = vpop.f32.mrf.mxu0
  %v1558 = vadd.f32 0.0, %v1557
  %1559 = vmatmul.bf16.gmra.mxu0 %v1074
  %v1560 = vpop.f32.mrf.mxu0
  %v1561 = vadd.f32 0.0, %v1560
  %v1562 = vpop.f32.mrf.mxu0
  %v1563 = vadd.f32 0.0, %v1562
  %1564 = vmatmul.bf16.gmra.mxu0 %v1077
  %v1565 = vpop.f32.mrf.mxu0
  %v1566 = vadd.f32 0.0, %v1565
  %v1567 = vpop.f32.mrf.mxu0
  %v1568 = vadd.f32 0.0, %v1567
  %1569 = vmatmul.bf16.gmra.mxu0 %v1080
  %v1570 = vpop.f32.mrf.mxu0
  %v1571 = vadd.f32 0.0, %v1570
  %v1572 = vpop.f32.mrf.mxu0
  %v1573 = vadd.f32 0.0, %v1572
  %1574 = vmatmul.bf16.gmra.mxu0 %v1083
  %v1575 = vpop.f32.mrf.mxu0
  %v1576 = vadd.f32 0.0, %v1575
  %v1577 = vpop.f32.mrf.mxu0
  %v1578 = vadd.f32 0.0, %v1577
  %1579 = vmatmul.bf16.gmra.mxu0 %v1086
  %v1580 = vpop.f32.mrf.mxu0
  %v1581 = vadd.f32 0.0, %v1580
  %v1582 = vpop.f32.mrf.mxu0
  %v1583 = vadd.f32 0.0, %v1582
  %1584 = vmatmul.bf16.gmra.mxu0 %v1089
  %v1585 = vpop.f32.mrf.mxu0
  %v1586 = vadd.f32 0.0, %v1585
  %v1587 = vpop.f32.mrf.mxu0
  %v1588 = vadd.f32 0.0, %v1587
  %1589 = vmatmul.bf16.gmra.mxu0 %v1092
  %v1590 = vpop.f32.mrf.mxu0
  %v1591 = vadd.f32 0.0, %v1590
  %v1592 = vpop.f32.mrf.mxu0
  %v1593 = vadd.f32 0.0, %v1592
  %1594 = vmatmul.bf16.gmra.mxu0 %v1095
  %v1595 = vpop.f32.mrf.mxu0
  %v1596 = vadd.f32 0.0, %v1595
  %v1597 = vpop.f32.mrf.mxu0
  %v1598 = vadd.f32 0.0, %v1597
  %1599 = vmatmul.bf16.gmra.mxu0 %v1098
  %v1600 = vpop.f32.mrf.mxu0
  %v1601 = vadd.f32 0.0, %v1600
  %v1602 = vpop.f32.mrf.mxu0
  %v1603 = vadd.f32 0.0, %v1602
  %1604 = vmatmul.bf16.gmra.mxu0 %v1101
  %v1605 = vpop.f32.mrf.mxu0
  %v1606 = vadd.f32 0.0, %v1605
  %v1607 = vpop.f32.mrf.mxu0
  %v1608 = vadd.f32 0.0, %v1607
  %1609 = vmatmul.bf16.gmra.mxu0 %v1104
  %v1610 = vpop.f32.mrf.mxu0
  %v1611 = vadd.f32 0.0, %v1610
  %v1612 = vpop.f32.mrf.mxu0
  %v1613 = vadd.f32 0.0, %v1612
  %1614 = vmatmul.bf16.gmra.mxu0 %v1107
  %v1615 = vpop.f32.mrf.mxu0
  %v1616 = vadd.f32 0.0, %v1615
  %v1617 = vpop.f32.mrf.mxu0
  %v1618 = vadd.f32 0.0, %v1617
  %1619 = vmatmul.bf16.gmra.mxu0 %v1110
  %v1620 = vpop.f32.mrf.mxu0
  %v1621 = vadd.f32 0.0, %v1620
  %v1622 = vpop.f32.mrf.mxu0
  %v1623 = vadd.f32 0.0, %v1622
  %1624 = vmatmul.bf16.gmra.mxu0 %v1113
  %v1625 = vpop.f32.mrf.mxu0
  %v1626 = vadd.f32 0.0, %v1625
  %v1627 = vpop.f32.mrf.mxu0
  %v1628 = vadd.f32 0.0, %v1627
  %1629 = vmatmul.bf16.gmra.mxu0 %v1116
  %v1630 = vpop.f32.mrf.mxu0
  %v1631 = vadd.f32 0.0, %v1630
  %v1632 = vpop.f32.mrf.mxu0
  %v1633 = vadd.f32 0.0, %v1632
  %1634 = vmatmul.bf16.gmra.mxu0 %v1119
  %v1635 = vpop.f32.mrf.mxu0
  %v1636 = vadd.f32 0.0, %v1635
  %v1637 = vpop.f32.mrf.mxu0
  %v1638 = vadd.f32 0.0, %v1637
  %1639 = vmatmul.bf16.gmra.mxu0 %v1122
  %v1640 = vpop.f32.mrf.mxu0
  %v1641 = vadd.f32 0.0, %v1640
  %v1642 = vpop.f32.mrf.mxu0
  %v1643 = vadd.f32 0.0, %v1642
  %1644 = vmatmul.bf16.gmra.mxu0 %v1125
  %v1645 = vpop.f32.mrf.mxu0
  %v1646 = vadd.f32 0.0, %v1645
  %v1647 = vpop.f32.mrf.mxu0
  %v1648 = vadd.f32 0.0, %v1647
  %1649 = vmatmul.bf16.gmra.mxu0 %v1128
  %v1650 = vpop.f32.mrf.mxu0
  %v1651 = vadd.f32 0.0, %v1650
  %v1652 = vpop.f32.mrf.mxu0
  %v1653 = vadd.f32 0.0, %v1652
  %1654 = vmatmul.bf16.gmra.mxu0 %v1131
  %v1655 = vpop.f32.mrf.mxu0
  %v1656 = vadd.f32 0.0, %v1655
  %v1657 = vpop.f32.mrf.mxu0
  %v1658 = vadd.f32 0.0, %v1657
  %1659 = vmatmul.bf16.gmra.mxu0 %v1134
  %v1660 = vpop.f32.mrf.mxu0
  %v1661 = vadd.f32 0.0, %v1660
  %v1662 = vpop.f32.mrf.mxu0
  %v1663 = vadd.f32 0.0, %v1662
  %1664 = vmatmul.bf16.gmra.mxu0 %v1137
  %v1665 = vpop.f32.mrf.mxu0
  %v1666 = vadd.f32 0.0, %v1665
  %v1667 = vpop.f32.mrf.mxu0
  %v1668 = vadd.f32 0.0, %v1667
  %1669 = vmatmul.bf16.gmra.mxu0 %v1140
  %v1670 = vpop.f32.mrf.mxu0
  %v1671 = vadd.f32 0.0, %v1670
  %v1672 = vpop.f32.mrf.mxu0
  %v1673 = vadd.f32 0.0, %v1672
  %1674 = vmatmul.bf16.gmra.mxu0 %v1143
  %v1675 = vpop.f32.mrf.mxu0
  %v1676 = vadd.f32 0.0, %v1675
  %v1677 = vpop.f32.mrf.mxu0
  %v1678 = vadd.f32 0.0, %v1677
  %1679 = vmatmul.bf16.gmra.mxu0 %v1146
  %v1680 = vpop.f32.mrf.mxu0
  %v1681 = vadd.f32 0.0, %v1680
  %v1682 = vpop.f32.mrf.mxu0
  %v1683 = vadd.f32 0.0, %v1682
  %1684 = vmatmul.bf16.gmra.mxu0 %v1149
  %v1685 = vpop.f32.mrf.mxu0
  %v1686 = vadd.f32 0.0, %v1685
  %v1687 = vpop.f32.mrf.mxu0
  %v1688 = vadd.f32 0.0, %v1687
  %1689 = vmatmul.bf16.gmra.mxu0 %v1152
  %v1690 = vpop.f32.mrf.mxu0
  %v1691 = vadd.f32 0.0, %v1690
  %v1692 = vpop.f32.mrf.mxu0
  %v1693 = vadd.f32 0.0, %v1692
  %1694 = vmatmul.bf16.gmra.mxu0 %v1155
  %v1695 = vpop.f32.mrf.mxu0
  %v1696 = vadd.f32 0.0, %v1695
  %v1697 = vpop.f32.mrf.mxu0
  %v1698 = vadd.f32 0.0, %v1697
  %1699 = vmatmul.bf16.gmra.mxu0 %v1158
  %v1700 = vpop.f32.mrf.mxu0
  %v1701 = vadd.f32 0.0, %v1700
  %v1702 = vpop.f32.mrf.mxu0
  %v1703 = vadd.f32 0.0, %v1702
  %1704 = vmatmul.bf16.gmra.mxu0 %v1161
  %v1705 = vpop.f32.mrf.mxu0
  %v1706 = vadd.f32 0.0, %v1705
  %v1707 = vpop.f32.mrf.mxu0
  %v1708 = vadd.f32 0.0, %v1707
  %1709 = vmatmul.bf16.gmra.mxu0 %v1164
  %v1710 = vpop.f32.mrf.mxu0
  %v1711 = vadd.f32 0.0, %v1710
  %v1712 = vpop.f32.mrf.mxu0
  %v1713 = vadd.f32 0.0, %v1712
  %1714 = vmatmul.bf16.gmra.mxu0 %v1167
  %v1715 = vpop.f32.mrf.mxu0
  %v1716 = vadd.f32 0.0, %v1715
  %v1717 = vpop.f32.mrf.mxu0
  %v1718 = vadd.f32 0.0, %v1717
  %1719 = vmatmul.bf16.gmra.mxu0 %v1170
  %v1720 = vpop.f32.mrf.mxu0
  %v1721 = vadd.f32 0.0, %v1720
  %v1722 = vpop.f32.mrf.mxu0
  %v1723 = vadd.f32 0.0, %v1722
  %1724 = vmatmul.bf16.gmra.mxu0 %v1173
  %v1725 = vpop.f32.mrf.mxu0
  %v1726 = vadd.f32 0.0, %v1725
  %v1727 = vpop.f32.mrf.mxu0
  %v1728 = vadd.f32 0.0, %v1727
  %1729 = vmatmul.bf16.gmra.mxu0 %v1176
  %v1730 = vpop.f32.mrf.mxu0
  %v1731 = vadd.f32 0.0, %v1730
  %v1732 = vpop.f32.mrf.mxu0
  %v1733 = vadd.f32 0.0, %v1732
  %1734 = vmatmul.bf16.gmra.mxu0 %v1179
  %v1735 = vpop.f32.mrf.mxu0
  %v1736 = vadd.f32 0.0, %v1735
  %v1737 = vpop.f32.mrf.mxu0
  %v1738 = vadd.f32 0.0, %v1737
  %1739 = vmatmul.bf16.gmra.mxu0 %v1182
  %v1740 = vpop.f32.mrf.mxu0
  %v1741 = vadd.f32 0.0, %v1740
  %v1742 = vpop.f32.mrf.mxu0
  %v1743 = vadd.f32 0.0, %v1742
  %1744 = vmatmul.bf16.gmra.mxu0 %v1185
  %v1745 = vpop.f32.mrf.mxu0
  %v1746 = vadd.f32 0.0, %v1745
  %v1747 = vpop.f32.mrf.mxu0
  %v1748 = vadd.f32 0.0, %v1747
  %1749 = vmatmul.bf16.gmra.mxu0 %v1188
  %v1750 = vpop.f32.mrf.mxu0
  %v1751 = vadd.f32 0.0, %v1750
  %v1752 = vpop.f32.mrf.mxu0
  %v1753 = vadd.f32 0.0, %v1752
  %1754 = vmatmul.bf16.gmra.mxu0 %v1191
  %v1755 = vpop.f32.mrf.mxu0
  %v1756 = vadd.f32 0.0, %v1755
  %v1757 = vpop.f32.mrf.mxu0
  %v1758 = vadd.f32 0.0, %v1757
  %1759 = vmatmul.bf16.gmra.mxu0 %v1194
  %v1760 = vpop.f32.mrf.mxu0
  %v1761 = vadd.f32 0.0, %v1760
  %v1762 = vpop.f32.mrf.mxu0
  %v1763 = vadd.f32 0.0, %v1762
  %1764 = vmatmul.bf16.gmra.mxu0 %v1197
  %v1765 = vpop.f32.mrf.mxu0
  %v1766 = vadd.f32 0.0, %v1765
  %v1767 = vpop.f32.mrf.mxu0
  %v1768 = vadd.f32 0.0, %v1767
  %1769 = vmatmul.bf16.gmra.mxu0 %v1200
  %v1770 = vpop.f32.mrf.mxu0
  %v1771 = vadd.f32 0.0, %v1770
  %v1772 = vpop.f32.mrf.mxu0
  %v1773 = vadd.f32 0.0, %v1772
  %1774 = vmatmul.bf16.gmra.mxu0 %v1203
  %v1775 = vpop.f32.mrf.mxu0
  %v1776 = vadd.f32 0.0, %v1775
  %v1777 = vpop.f32.mrf.mxu0
  %v1778 = vadd.f32 0.0, %v1777
  %1779 = vmatmul.bf16.gmra.mxu0 %v1206
  %v1780 = vpop.f32.mrf.mxu0
  %v1781 = vadd.f32 0.0, %v1780
  %v1782 = vpop.f32.mrf.mxu0
  %v1783 = vadd.f32 0.0, %v1782
  %1784 = vmatmul.bf16.gmra.mxu0 %v1209
  %v1785 = vpop.f32.mrf.mxu0
  %v1786 = vadd.f32 0.0, %v1785
  %v1787 = vpop.f32.mrf.mxu0
  %v1788 = vadd.f32 0.0, %v1787
  %1789 = vmatmul.bf16.gmra.mxu0 %v1212
  %v1790 = vpop.f32.mrf.mxu0
  %v1791 = vadd.f32 0.0, %v1790
  %v1792 = vpop.f32.mrf.mxu0
  %v1793 = vadd.f32 0.0, %v1792
  %1794 = vmatmul.bf16.gmra.mxu0 %v1215
  %v1795 = vpop.f32.mrf.mxu0
  %v1796 = vadd.f32 0.0, %v1795
  %v1797 = vpop.f32.mrf.mxu0
  %v1798 = vadd.f32 0.0, %v1797
  %1799 = vmatmul.bf16.gmra.mxu0 %v1218
  %v1800 = vpop.f32.mrf.mxu0
  %v1801 = vadd.f32 0.0, %v1800
  %v1802 = vpop.f32.mrf.mxu0
  %v1803 = vadd.f32 0.0, %v1802
  %1804 = vmatmul.bf16.gmra.mxu0 %v1221
  %v1805 = vpop.f32.mrf.mxu0
  %v1806 = vadd.f32 0.0, %v1805
  %v1807 = vpop.f32.mrf.mxu0
  %v1808 = vadd.f32 0.0, %v1807
  %1809 = vmatmul.bf16.gmra.mxu0 %v1224
  %v1810 = vpop.f32.mrf.mxu0
  %v1811 = vadd.f32 0.0, %v1810
  %v1812 = vpop.f32.mrf.mxu0
  %v1813 = vadd.f32 0.0, %v1812
  %1814 = vmatmul.bf16.gmra.mxu0 %v1227
  %v1815 = vpop.f32.mrf.mxu0
  %v1816 = vadd.f32 0.0, %v1815
  %v1817 = vpop.f32.mrf.mxu0
  %v1818 = vadd.f32 0.0, %v1817
  %1819 = vmatmul.bf16.gmra.mxu0 %v1230
  %v1820 = vpop.f32.mrf.mxu0
  %v1821 = vadd.f32 0.0, %v1820
  %v1822 = vpop.f32.mrf.mxu0
  %v1823 = vadd.f32 0.0, %v1822
  %1824 = vmatmul.bf16.gmra.mxu0 %v1233
  %v1825 = vpop.f32.mrf.mxu0
  %v1826 = vadd.f32 0.0, %v1825
  %v1827 = vpop.f32.mrf.mxu0
  %v1828 = vadd.f32 0.0, %v1827
  %1829 = vmatmul.bf16.gmra.mxu0 %v1236
  %v1830 = vpop.f32.mrf.mxu0
  %v1831 = vadd.f32 0.0, %v1830
  %v1832 = vpop.f32.mrf.mxu0
  %v1833 = vadd.f32 0.0, %v1832
  %1834 = vmatmul.bf16.gmra.mxu0 %v1239
  %v1835 = vpop.f32.mrf.mxu0
  %v1836 = vadd.f32 0.0, %v1835
  %v1837 = vpop.f32.mrf.mxu0
  %v1838 = vadd.f32 0.0, %v1837
  %1839 = vmatmul.bf16.gmra.mxu0 %v1242
  %v1840 = vpop.f32.mrf.mxu0
  %v1841 = vadd.f32 0.0, %v1840
  %v1842 = vpop.f32.mrf.mxu0
  %v1843 = vadd.f32 0.0, %v1842
  %1844 = vmatmul.bf16.gmra.mxu0 %v1245
  %v1845 = vpop.f32.mrf.mxu0
  %v1846 = vadd.f32 0.0, %v1845
  %v1847 = vpop.f32.mrf.mxu0
  %v1848 = vadd.f32 0.0, %v1847
  %1849 = vmatmul.bf16.gmra.mxu0 %v1248
  %v1850 = vpop.f32.mrf.mxu0
  %v1851 = vadd.f32 0.0, %v1850
  %v1852 = vpop.f32.mrf.mxu0
  %v1853 = vadd.f32 0.0, %v1852
  %1854 = vmatmul.bf16.gmra.mxu0 %v1251
  %v1855 = vpop.f32.mrf.mxu0
  %v1856 = vadd.f32 0.0, %v1855
  %v1857 = vpop.f32.mrf.mxu0
  %v1858 = vadd.f32 0.0, %v1857
  %1859 = vmatmul.bf16.gmra.mxu0 %v1254
  %v1860 = vpop.f32.mrf.mxu0
  %v1861 = vadd.f32 0.0, %v1860
  %v1862 = vpop.f32.mrf.mxu0
  %v1863 = vadd.f32 0.0, %v1862
  %1864 = vmatmul.bf16.gmra.mxu0 %v1257
  %v1865 = vpop.f32.mrf.mxu0
  %v1866 = vadd.f32 0.0, %v1865
  %v1867 = vpop.f32.mrf.mxu0
  %v1868 = vadd.f32 0.0, %v1867
  %1869 = vmatmul.bf16.gmra.mxu0 %v1260
  %v1870 = vpop.f32.mrf.mxu0
  %v1871 = vadd.f32 0.0, %v1870
  %v1872 = vpop.f32.mrf.mxu0
  %v1873 = vadd.f32 0.0, %v1872
  %1874 = vmatmul.bf16.gmra.mxu0 %v1263
  %v1875 = vpop.f32.mrf.mxu0
  %v1876 = vadd.f32 0.0, %v1875
  %v1877 = vpop.f32.mrf.mxu0
  %v1878 = vadd.f32 0.0, %v1877
  %1879 = vmatmul.bf16.gmra.mxu0 %v1266
  %v1880 = vpop.f32.mrf.mxu0
  %v1881 = vadd.f32 0.0, %v1880
  %v1882 = vpop.f32.mrf.mxu0
  %v1883 = vadd.f32 0.0, %v1882
  %1884 = vmatmul.bf16.gmra.mxu0 %v1269
  %v1885 = vpop.f32.mrf.mxu0
  %v1886 = vadd.f32 0.0, %v1885
  %v1887 = vpop.f32.mrf.mxu0
  %v1888 = vadd.f32 0.0, %v1887
  %1889 = vmatmul.bf16.gmra.mxu0 %v1272
  %v1890 = vpop.f32.mrf.mxu0
  %v1891 = vadd.f32 0.0, %v1890
  %v1892 = vpop.f32.mrf.mxu0
  %v1893 = vadd.f32 0.0, %v1892
  %1894 = vmatmul.bf16.gmra.mxu0 %v1275
  %v1895 = vpop.f32.mrf.mxu0
  %v1896 = vadd.f32 0.0, %v1895
  %v1897 = vpop.f32.mrf.mxu0
  %v1898 = vadd.f32 0.0, %v1897
  %1899 = vmatmul.bf16.gmra.mxu0 %v1278
  %v1900 = vpop.f32.mrf.mxu0
  %v1901 = vadd.f32 0.0, %v1900
  %v1902 = vpop.f32.mrf.mxu0
  %v1903 = vadd.f32 0.0, %v1902
  %1904 = vmatmul.bf16.gmra.mxu0 %v1281
  %v1905 = vpop.f32.mrf.mxu0
  %v1906 = vadd.f32 0.0, %v1905
  %v1907 = vpop.f32.mrf.mxu0
  %v1908 = vadd.f32 0.0, %v1907
  %1909 = vmatmul.bf16.gmra.mxu0 %v1284
  %v1910 = vpop.f32.mrf.mxu0
  %v1911 = vadd.f32 0.0, %v1910
  %v1912 = vpop.f32.mrf.mxu0
  %v1913 = vadd.f32 0.0, %v1912
  %1914 = vmatmul.bf16.gmra.mxu0 %v1287
  %v1915 = vpop.f32.mrf.mxu0
  %v1916 = vadd.f32 0.0, %v1915
  %v1917 = vpop.f32.mrf.mxu0
  %v1918 = vadd.f32 0.0, %v1917
  %1919 = vmatmul.bf16.gmra.mxu0 %v1290
  %v1920 = vpop.f32.mrf.mxu0
  %v1921 = vadd.f32 0.0, %v1920
  %v1922 = vpop.f32.mrf.mxu0
  %v1923 = vadd.f32 0.0, %v1922
  %1924 = vmatmul.bf16.gmra.mxu0 %v1293
  %v1925 = vpop.f32.mrf.mxu0
  %v1926 = vadd.f32 0.0, %v1925
  %v1927 = vpop.f32.mrf.mxu0
  %v1928 = vadd.f32 0.0, %v1927
  %1929 = vmatmul.bf16.gmra.mxu0 %v1296
  %v1930 = vpop.f32.mrf.mxu0
  %v1931 = vadd.f32 0.0, %v1930
  %v1932 = vpop.f32.mrf.mxu0
  %v1933 = vadd.f32 0.0, %v1932
  %1934 = vmatmul.bf16.gmra.mxu0 %v1299
  %v1935 = vpop.f32.mrf.mxu0
  %v1936 = vadd.f32 0.0, %v1935
  %v1937 = vpop.f32.mrf.mxu0
  %v1938 = vadd.f32 0.0, %v1937
  %1939 = vmatmul.bf16.gmra.mxu0 %v1302
  %v1940 = vpop.f32.mrf.mxu0
  %v1941 = vadd.f32 0.0, %v1940
  %v1942 = vpop.f32.mrf.mxu0
  %v1943 = vadd.f32 0.0, %v1942
  %1944 = vmatmul.bf16.gmra.mxu0 %v1305
  %v1945 = vpop.f32.mrf.mxu0
  %v1946 = vadd.f32 0.0, %v1945
  %v1947 = vpop.f32.mrf.mxu0
  %v1948 = vadd.f32 0.0, %v1947
  %1949 = vmatmul.bf16.gmra.mxu0 %v1308
  %v1950 = vpop.f32.mrf.mxu0
  %v1951 = vadd.f32 0.0, %v1950
  %v1952 = vpop.f32.mrf.mxu0
  %v1953 = vadd.f32 0.0, %v1952
  %1954 = vmatmul.bf16.gmra.mxu0 %v1311
  %v1955 = vpop.f32.mrf.mxu0
  %v1956 = vadd.f32 0.0, %v1955
  %v1957 = vpop.f32.mrf.mxu0
  %v1958 = vadd.f32 0.0, %v1957
  %1959 = vmatmul.bf16.gmra.mxu0 %v1314
  %v1960 = vpop.f32.mrf.mxu0
  %v1961 = vadd.f32 0.0, %v1960
  %v1962 = vpop.f32.mrf.mxu0
  %v1963 = vadd.f32 0.0, %v1962
  %1964 = vdwg.mxu0
  %v1965 = vld [vmem:[%s2] sm:$0x1]
  %v1967 = vperm.slane %v1965, 0
  %v1969 = vmul.f32 %v1326, %v1967
  %v1970 = vmul.f32 %v1328, %v1967
  %v1971 = vmul.f32 %v1331, %v1967
  %v1972 = vmul.f32 %v1333, %v1967
  %v1973 = vmul.f32 %v1336, %v1967
  %v1974 = vmul.f32 %v1338, %v1967
  %v1975 = vmul.f32 %v1341, %v1967
  %v1976 = vmul.f32 %v1343, %v1967
  %v1977 = vmul.f32 %v1346, %v1967
  %v1978 = vmul.f32 %v1348, %v1967
  %v1979 = vmul.f32 %v1351, %v1967
  %v1980 = vmul.f32 %v1353, %v1967
  %v1981 = vmul.f32 %v1356, %v1967
  %v1982 = vmul.f32 %v1358, %v1967
  %v1983 = vmul.f32 %v1361, %v1967
  %v1984 = vmul.f32 %v1363, %v1967
  %v1985 = vmul.f32 %v1366, %v1967
  %v1986 = vmul.f32 %v1368, %v1967
  %v1987 = vmul.f32 %v1371, %v1967
  %v1988 = vmul.f32 %v1373, %v1967
  %v1989 = vmul.f32 %v1376, %v1967
  %v1990 = vmul.f32 %v1378, %v1967
  %v1991 = vmul.f32 %v1381, %v1967
  %v1992 = vmul.f32 %v1383, %v1967
  %v1993 = vmul.f32 %v1386, %v1967
  %v1994 = vmul.f32 %v1388, %v1967
  %v1995 = vmul.f32 %v1391, %v1967
  %v1996 = vmul.f32 %v1393, %v1967
  %v1997 = vmul.f32 %v1396, %v1967
  %v1998 = vmul.f32 %v1398, %v1967
  %v1999 = vmul.f32 %v1401, %v1967
  %v2000 = vmul.f32 %v1403, %v1967
  %v2001 = vmul.f32 %v1406, %v1967
  %v2002 = vmul.f32 %v1408, %v1967
  %v2003 = vmul.f32 %v1411, %v1967
  %v2004 = vmul.f32 %v1413, %v1967
  %v2005 = vmul.f32 %v1416, %v1967
  %v2006 = vmul.f32 %v1418, %v1967
  %v2007 = vmul.f32 %v1421, %v1967
  %v2008 = vmul.f32 %v1423, %v1967
  %v2009 = vmul.f32 %v1426, %v1967
  %v2010 = vmul.f32 %v1428, %v1967
  %v2011 = vmul.f32 %v1431, %v1967
  %v2012 = vmul.f32 %v1433, %v1967
  %v2013 = vmul.f32 %v1436, %v1967
  %v2014 = vmul.f32 %v1438, %v1967
  %v2015 = vmul.f32 %v1441, %v1967
  %v2016 = vmul.f32 %v1443, %v1967
  %v2017 = vmul.f32 %v1446, %v1967
  %v2018 = vmul.f32 %v1448, %v1967
  %v2019 = vmul.f32 %v1451, %v1967
  %v2020 = vmul.f32 %v1453, %v1967
  %v2021 = vmul.f32 %v1456, %v1967
  %v2022 = vmul.f32 %v1458, %v1967
  %v2023 = vmul.f32 %v1461, %v1967
  %v2024 = vmul.f32 %v1463, %v1967
  %v2025 = vmul.f32 %v1466, %v1967
  %v2026 = vmul.f32 %v1468, %v1967
  %v2027 = vmul.f32 %v1471, %v1967
  %v2028 = vmul.f32 %v1473, %v1967
  %v2029 = vmul.f32 %v1476, %v1967
  %v2030 = vmul.f32 %v1478, %v1967
  %v2031 = vmul.f32 %v1481, %v1967
  %v2032 = vmul.f32 %v1483, %v1967
  %v2033 = vmul.f32 %v1486, %v1967
  %v2034 = vmul.f32 %v1488, %v1967
  %v2035 = vmul.f32 %v1491, %v1967
  %v2036 = vmul.f32 %v1493, %v1967
  %v2037 = vmul.f32 %v1496, %v1967
  %v2038 = vmul.f32 %v1498, %v1967
  %v2039 = vmul.f32 %v1501, %v1967
  %v2040 = vmul.f32 %v1503, %v1967
  %v2041 = vmul.f32 %v1506, %v1967
  %v2042 = vmul.f32 %v1508, %v1967
  %v2043 = vmul.f32 %v1511, %v1967
  %v2044 = vmul.f32 %v1513, %v1967
  %v2045 = vmul.f32 %v1516, %v1967
  %v2046 = vmul.f32 %v1518, %v1967
  %v2047 = vmul.f32 %v1521, %v1967
  %v2048 = vmul.f32 %v1523, %v1967
  %v2049 = vmul.f32 %v1526, %v1967
  %v2050 = vmul.f32 %v1528, %v1967
  %v2051 = vmul.f32 %v1531, %v1967
  %v2052 = vmul.f32 %v1533, %v1967
  %v2053 = vmul.f32 %v1536, %v1967
  %v2054 = vmul.f32 %v1538, %v1967
  %v2055 = vmul.f32 %v1541, %v1967
  %v2056 = vmul.f32 %v1543, %v1967
  %v2057 = vmul.f32 %v1546, %v1967
  %v2058 = vmul.f32 %v1548, %v1967
  %v2059 = vmul.f32 %v1551, %v1967
  %v2060 = vmul.f32 %v1553, %v1967
  %v2061 = vmul.f32 %v1556, %v1967
  %v2062 = vmul.f32 %v1558, %v1967
  %v2063 = vmul.f32 %v1561, %v1967
  %v2064 = vmul.f32 %v1563, %v1967
  %v2065 = vmul.f32 %v1566, %v1967
  %v2066 = vmul.f32 %v1568, %v1967
  %v2067 = vmul.f32 %v1571, %v1967
  %v2068 = vmul.f32 %v1573, %v1967
  %v2069 = vmul.f32 %v1576, %v1967
  %v2070 = vmul.f32 %v1578, %v1967
  %v2071 = vmul.f32 %v1581, %v1967
  %v2072 = vmul.f32 %v1583, %v1967
  %v2073 = vmul.f32 %v1586, %v1967
  %v2074 = vmul.f32 %v1588, %v1967
  %v2075 = vmul.f32 %v1591, %v1967
  %v2076 = vmul.f32 %v1593, %v1967
  %v2077 = vmul.f32 %v1596, %v1967
  %v2078 = vmul.f32 %v1598, %v1967
  %v2079 = vmul.f32 %v1601, %v1967
  %v2080 = vmul.f32 %v1603, %v1967
  %v2081 = vmul.f32 %v1606, %v1967
  %v2082 = vmul.f32 %v1608, %v1967
  %v2083 = vmul.f32 %v1611, %v1967
  %v2084 = vmul.f32 %v1613, %v1967
  %v2085 = vmul.f32 %v1616, %v1967
  %v2086 = vmul.f32 %v1618, %v1967
  %v2087 = vmul.f32 %v1621, %v1967
  %v2088 = vmul.f32 %v1623, %v1967
  %v2089 = vmul.f32 %v1626, %v1967
  %v2090 = vmul.f32 %v1628, %v1967
  %v2091 = vmul.f32 %v1631, %v1967
  %v2092 = vmul.f32 %v1633, %v1967
  %v2093 = vmul.f32 %v1636, %v1967
  %v2094 = vmul.f32 %v1638, %v1967
  %v2095 = vmul.f32 %v1641, %v1967
  %v2096 = vmul.f32 %v1643, %v1967
  %v2097 = vmul.f32 %v1646, %v1967
  %v2098 = vmul.f32 %v1648, %v1967
  %v2099 = vmul.f32 %v1651, %v1967
  %v2100 = vmul.f32 %v1653, %v1967
  %v2101 = vmul.f32 %v1656, %v1967
  %v2102 = vmul.f32 %v1658, %v1967
  %v2103 = vmul.f32 %v1661, %v1967
  %v2104 = vmul.f32 %v1663, %v1967
  %v2105 = vmul.f32 %v1666, %v1967
  %v2106 = vmul.f32 %v1668, %v1967
  %v2107 = vmul.f32 %v1671, %v1967
  %v2108 = vmul.f32 %v1673, %v1967
  %v2109 = vmul.f32 %v1676, %v1967
  %v2110 = vmul.f32 %v1678, %v1967
  %v2111 = vmul.f32 %v1681, %v1967
  %v2112 = vmul.f32 %v1683, %v1967
  %v2113 = vmul.f32 %v1686, %v1967
  %v2114 = vmul.f32 %v1688, %v1967
  %v2115 = vmul.f32 %v1691, %v1967
  %v2116 = vmul.f32 %v1693, %v1967
  %v2117 = vmul.f32 %v1696, %v1967
  %v2118 = vmul.f32 %v1698, %v1967
  %v2119 = vmul.f32 %v1701, %v1967
  %v2120 = vmul.f32 %v1703, %v1967
  %v2121 = vmul.f32 %v1706, %v1967
  %v2122 = vmul.f32 %v1708, %v1967
  %v2123 = vmul.f32 %v1711, %v1967
  %v2124 = vmul.f32 %v1713, %v1967
  %v2125 = vmul.f32 %v1716, %v1967
  %v2126 = vmul.f32 %v1718, %v1967
  %v2127 = vmul.f32 %v1721, %v1967
  %v2128 = vmul.f32 %v1723, %v1967
  %v2129 = vmul.f32 %v1726, %v1967
  %v2130 = vmul.f32 %v1728, %v1967
  %v2131 = vmul.f32 %v1731, %v1967
  %v2132 = vmul.f32 %v1733, %v1967
  %v2133 = vmul.f32 %v1736, %v1967
  %v2134 = vmul.f32 %v1738, %v1967
  %v2135 = vmul.f32 %v1741, %v1967
  %v2136 = vmul.f32 %v1743, %v1967
  %v2137 = vmul.f32 %v1746, %v1967
  %v2138 = vmul.f32 %v1748, %v1967
  %v2139 = vmul.f32 %v1751, %v1967
  %v2140 = vmul.f32 %v1753, %v1967
  %v2141 = vmul.f32 %v1756, %v1967
  %v2142 = vmul.f32 %v1758, %v1967
  %v2143 = vmul.f32 %v1761, %v1967
  %v2144 = vmul.f32 %v1763, %v1967
  %v2145 = vmul.f32 %v1766, %v1967
  %v2146 = vmul.f32 %v1768, %v1967
  %v2147 = vmul.f32 %v1771, %v1967
  %v2148 = vmul.f32 %v1773, %v1967
  %v2149 = vmul.f32 %v1776, %v1967
  %v2150 = vmul.f32 %v1778, %v1967
  %v2151 = vmul.f32 %v1781, %v1967
  %v2152 = vmul.f32 %v1783, %v1967
  %v2153 = vmul.f32 %v1786, %v1967
  %v2154 = vmul.f32 %v1788, %v1967
  %v2155 = vmul.f32 %v1791, %v1967
  %v2156 = vmul.f32 %v1793, %v1967
  %v2157 = vmul.f32 %v1796, %v1967
  %v2158 = vmul.f32 %v1798, %v1967
  %v2159 = vmul.f32 %v1801, %v1967
  %v2160 = vmul.f32 %v1803, %v1967
  %v2161 = vmul.f32 %v1806, %v1967
  %v2162 = vmul.f32 %v1808, %v1967
  %v2163 = vmul.f32 %v1811, %v1967
  %v2164 = vmul.f32 %v1813, %v1967
  %v2165 = vmul.f32 %v1816, %v1967
  %v2166 = vmul.f32 %v1818, %v1967
  %v2167 = vmul.f32 %v1821, %v1967
  %v2168 = vmul.f32 %v1823, %v1967
  %v2169 = vmul.f32 %v1826, %v1967
  %v2170 = vmul.f32 %v1828, %v1967
  %v2171 = vmul.f32 %v1831, %v1967
  %v2172 = vmul.f32 %v1833, %v1967
  %v2173 = vmul.f32 %v1836, %v1967
  %v2174 = vmul.f32 %v1838, %v1967
  %v2175 = vmul.f32 %v1841, %v1967
  %v2176 = vmul.f32 %v1843, %v1967
  %v2177 = vmul.f32 %v1846, %v1967
  %v2178 = vmul.f32 %v1848, %v1967
  %v2179 = vmul.f32 %v1851, %v1967
  %v2180 = vmul.f32 %v1853, %v1967
  %v2181 = vmul.f32 %v1856, %v1967
  %v2182 = vmul.f32 %v1858, %v1967
  %v2183 = vmul.f32 %v1861, %v1967
  %v2184 = vmul.f32 %v1863, %v1967
  %v2185 = vmul.f32 %v1866, %v1967
  %v2186 = vmul.f32 %v1868, %v1967
  %v2187 = vmul.f32 %v1871, %v1967
  %v2188 = vmul.f32 %v1873, %v1967
  %v2189 = vmul.f32 %v1876, %v1967
  %v2190 = vmul.f32 %v1878, %v1967
  %v2191 = vmul.f32 %v1881, %v1967
  %v2192 = vmul.f32 %v1883, %v1967
  %v2193 = vmul.f32 %v1886, %v1967
  %v2194 = vmul.f32 %v1888, %v1967
  %v2195 = vmul.f32 %v1891, %v1967
  %v2196 = vmul.f32 %v1893, %v1967
  %v2197 = vmul.f32 %v1896, %v1967
  %v2198 = vmul.f32 %v1898, %v1967
  %v2199 = vmul.f32 %v1901, %v1967
  %v2200 = vmul.f32 %v1903, %v1967
  %v2201 = vmul.f32 %v1906, %v1967
  %v2202 = vmul.f32 %v1908, %v1967
  %v2203 = vmul.f32 %v1911, %v1967
  %v2204 = vmul.f32 %v1913, %v1967
  %v2205 = vmul.f32 %v1916, %v1967
  %v2206 = vmul.f32 %v1918, %v1967
  %v2207 = vmul.f32 %v1921, %v1967
  %v2208 = vmul.f32 %v1923, %v1967
  %v2209 = vmul.f32 %v1926, %v1967
  %v2210 = vmul.f32 %v1928, %v1967
  %v2211 = vmul.f32 %v1931, %v1967
  %v2212 = vmul.f32 %v1933, %v1967
  %v2213 = vmul.f32 %v1936, %v1967
  %v2214 = vmul.f32 %v1938, %v1967
  %v2215 = vmul.f32 %v1941, %v1967
  %v2216 = vmul.f32 %v1943, %v1967
  %v2217 = vmul.f32 %v1946, %v1967
  %v2218 = vmul.f32 %v1948, %v1967
  %v2219 = vmul.f32 %v1951, %v1967
  %v2220 = vmul.f32 %v1953, %v1967
  %v2221 = vmul.f32 %v1956, %v1967
  %v2222 = vmul.f32 %v1958, %v1967
  %v2223 = vmul.f32 %v1961, %v1967
  %v2224 = vmul.f32 %v1963, %v1967
  %v2225 = vld [vmem:[%s3] sm:$0x1]
  %v2227 = vperm.slane %v2225, 0
  %v2229 = vadd.f32 %v1969, %v2227
  %v2230 = vadd.f32 %v1970, %v2227
  %v2231 = vadd.f32 %v1971, %v2227
  %v2232 = vadd.f32 %v1972, %v2227
  %v2233 = vadd.f32 %v1973, %v2227
  %v2234 = vadd.f32 %v1974, %v2227
  %v2235 = vadd.f32 %v1975, %v2227
  %v2236 = vadd.f32 %v1976, %v2227
  %v2237 = vadd.f32 %v1977, %v2227
  %v2238 = vadd.f32 %v1978, %v2227
  %v2239 = vadd.f32 %v1979, %v2227
  %v2240 = vadd.f32 %v1980, %v2227
  %v2241 = vadd.f32 %v1981, %v2227
  %v2242 = vadd.f32 %v1982, %v2227
  %v2243 = vadd.f32 %v1983, %v2227
  %v2244 = vadd.f32 %v1984, %v2227
  %v2245 = vadd.f32 %v1985, %v2227
  %v2246 = vadd.f32 %v1986, %v2227
  %v2247 = vadd.f32 %v1987, %v2227
  %v2248 = vadd.f32 %v1988, %v2227
  %v2249 = vadd.f32 %v1989, %v2227
  %v2250 = vadd.f32 %v1990, %v2227
  %v2251 = vadd.f32 %v1991, %v2227
  %v2252 = vadd.f32 %v1992, %v2227
  %v2253 = vadd.f32 %v1993, %v2227
  %v2254 = vadd.f32 %v1994, %v2227
  %v2255 = vadd.f32 %v1995, %v2227
  %v2256 = vadd.f32 %v1996, %v2227
  %v2257 = vadd.f32 %v1997, %v2227
  %v2258 = vadd.f32 %v1998, %v2227
  %v2259 = vadd.f32 %v1999, %v2227
  %v2260 = vadd.f32 %v2000, %v2227
  %v2261 = vadd.f32 %v2001, %v2227
  %v2262 = vadd.f32 %v2002, %v2227
  %v2263 = vadd.f32 %v2003, %v2227
  %v2264 = vadd.f32 %v2004, %v2227
  %v2265 = vadd.f32 %v2005, %v2227
  %v2266 = vadd.f32 %v2006, %v2227
  %v2267 = vadd.f32 %v2007, %v2227
  %v2268 = vadd.f32 %v2008, %v2227
  %v2269 = vadd.f32 %v2009, %v2227
  %v2270 = vadd.f32 %v2010, %v2227
  %v2271 = vadd.f32 %v2011, %v2227
  %v2272 = vadd.f32 %v2012, %v2227
  %v2273 = vadd.f32 %v2013, %v2227
  %v2274 = vadd.f32 %v2014, %v2227
  %v2275 = vadd.f32 %v2015, %v2227
  %v2276 = vadd.f32 %v2016, %v2227
  %v2277 = vadd.f32 %v2017, %v2227
  %v2278 = vadd.f32 %v2018, %v2227
  %v2279 = vadd.f32 %v2019, %v2227
  %v2280 = vadd.f32 %v2020, %v2227
  %v2281 = vadd.f32 %v2021, %v2227
  %v2282 = vadd.f32 %v2022, %v2227
  %v2283 = vadd.f32 %v2023, %v2227
  %v2284 = vadd.f32 %v2024, %v2227
  %v2285 = vadd.f32 %v2025, %v2227
  %v2286 = vadd.f32 %v2026, %v2227
  %v2287 = vadd.f32 %v2027, %v2227
  %v2288 = vadd.f32 %v2028, %v2227
  %v2289 = vadd.f32 %v2029, %v2227
  %v2290 = vadd.f32 %v2030, %v2227
  %v2291 = vadd.f32 %v2031, %v2227
  %v2292 = vadd.f32 %v2032, %v2227
  %v2293 = vadd.f32 %v2033, %v2227
  %v2294 = vadd.f32 %v2034, %v2227
  %v2295 = vadd.f32 %v2035, %v2227
  %v2296 = vadd.f32 %v2036, %v2227
  %v2297 = vadd.f32 %v2037, %v2227
  %v2298 = vadd.f32 %v2038, %v2227
  %v2299 = vadd.f32 %v2039, %v2227
  %v2300 = vadd.f32 %v2040, %v2227
  %v2301 = vadd.f32 %v2041, %v2227
  %v2302 = vadd.f32 %v2042, %v2227
  %v2303 = vadd.f32 %v2043, %v2227
  %v2304 = vadd.f32 %v2044, %v2227
  %v2305 = vadd.f32 %v2045, %v2227
  %v2306 = vadd.f32 %v2046, %v2227
  %v2307 = vadd.f32 %v2047, %v2227
  %v2308 = vadd.f32 %v2048, %v2227
  %v2309 = vadd.f32 %v2049, %v2227
  %v2310 = vadd.f32 %v2050, %v2227
  %v2311 = vadd.f32 %v2051, %v2227
  %v2312 = vadd.f32 %v2052, %v2227
  %v2313 = vadd.f32 %v2053, %v2227
  %v2314 = vadd.f32 %v2054, %v2227
  %v2315 = vadd.f32 %v2055, %v2227
  %v2316 = vadd.f32 %v2056, %v2227
  %v2317 = vadd.f32 %v2057, %v2227
  %v2318 = vadd.f32 %v2058, %v2227
  %v2319 = vadd.f32 %v2059, %v2227
  %v2320 = vadd.f32 %v2060, %v2227
  %v2321 = vadd.f32 %v2061, %v2227
  %v2322 = vadd.f32 %v2062, %v2227
  %v2323 = vadd.f32 %v2063, %v2227
  %v2324 = vadd.f32 %v2064, %v2227
  %v2325 = vadd.f32 %v2065, %v2227
  %v2326 = vadd.f32 %v2066, %v2227
  %v2327 = vadd.f32 %v2067, %v2227
  %v2328 = vadd.f32 %v2068, %v2227
  %v2329 = vadd.f32 %v2069, %v2227
  %v2330 = vadd.f32 %v2070, %v2227
  %v2331 = vadd.f32 %v2071, %v2227
  %v2332 = vadd.f32 %v2072, %v2227
  %v2333 = vadd.f32 %v2073, %v2227
  %v2334 = vadd.f32 %v2074, %v2227
  %v2335 = vadd.f32 %v2075, %v2227
  %v2336 = vadd.f32 %v2076, %v2227
  %v2337 = vadd.f32 %v2077, %v2227
  %v2338 = vadd.f32 %v2078, %v2227
  %v2339 = vadd.f32 %v2079, %v2227
  %v2340 = vadd.f32 %v2080, %v2227
  %v2341 = vadd.f32 %v2081, %v2227
  %v2342 = vadd.f32 %v2082, %v2227
  %v2343 = vadd.f32 %v2083, %v2227
  %v2344 = vadd.f32 %v2084, %v2227
  %v2345 = vadd.f32 %v2085, %v2227
  %v2346 = vadd.f32 %v2086, %v2227
  %v2347 = vadd.f32 %v2087, %v2227
  %v2348 = vadd.f32 %v2088, %v2227
  %v2349 = vadd.f32 %v2089, %v2227
  %v2350 = vadd.f32 %v2090, %v2227
  %v2351 = vadd.f32 %v2091, %v2227
  %v2352 = vadd.f32 %v2092, %v2227
  %v2353 = vadd.f32 %v2093, %v2227
  %v2354 = vadd.f32 %v2094, %v2227
  %v2355 = vadd.f32 %v2095, %v2227
  %v2356 = vadd.f32 %v2096, %v2227
  %v2357 = vadd.f32 %v2097, %v2227
  %v2358 = vadd.f32 %v2098, %v2227
  %v2359 = vadd.f32 %v2099, %v2227
  %v2360 = vadd.f32 %v2100, %v2227
  %v2361 = vadd.f32 %v2101, %v2227
  %v2362 = vadd.f32 %v2102, %v2227
  %v2363 = vadd.f32 %v2103, %v2227
  %v2364 = vadd.f32 %v2104, %v2227
  %v2365 = vadd.f32 %v2105, %v2227
  %v2366 = vadd.f32 %v2106, %v2227
  %v2367 = vadd.f32 %v2107, %v2227
  %v2368 = vadd.f32 %v2108, %v2227
  %v2369 = vadd.f32 %v2109, %v2227
  %v2370 = vadd.f32 %v2110, %v2227
  %v2371 = vadd.f32 %v2111, %v2227
  %v2372 = vadd.f32 %v2112, %v2227
  %v2373 = vadd.f32 %v2113, %v2227
  %v2374 = vadd.f32 %v2114, %v2227
  %v2375 = vadd.f32 %v2115, %v2227
  %v2376 = vadd.f32 %v2116, %v2227
  %v2377 = vadd.f32 %v2117, %v2227
  %v2378 = vadd.f32 %v2118, %v2227
  %v2379 = vadd.f32 %v2119, %v2227
  %v2380 = vadd.f32 %v2120, %v2227
  %v2381 = vadd.f32 %v2121, %v2227
  %v2382 = vadd.f32 %v2122, %v2227
  %v2383 = vadd.f32 %v2123, %v2227
  %v2384 = vadd.f32 %v2124, %v2227
  %v2385 = vadd.f32 %v2125, %v2227
  %v2386 = vadd.f32 %v2126, %v2227
  %v2387 = vadd.f32 %v2127, %v2227
  %v2388 = vadd.f32 %v2128, %v2227
  %v2389 = vadd.f32 %v2129, %v2227
  %v2390 = vadd.f32 %v2130, %v2227
  %v2391 = vadd.f32 %v2131, %v2227
  %v2392 = vadd.f32 %v2132, %v2227
  %v2393 = vadd.f32 %v2133, %v2227
  %v2394 = vadd.f32 %v2134, %v2227
  %v2395 = vadd.f32 %v2135, %v2227
  %v2396 = vadd.f32 %v2136, %v2227
  %v2397 = vadd.f32 %v2137, %v2227
  %v2398 = vadd.f32 %v2138, %v2227
  %v2399 = vadd.f32 %v2139, %v2227
  %v2400 = vadd.f32 %v2140, %v2227
  %v2401 = vadd.f32 %v2141, %v2227
  %v2402 = vadd.f32 %v2142, %v2227
  %v2403 = vadd.f32 %v2143, %v2227
  %v2404 = vadd.f32 %v2144, %v2227
  %v2405 = vadd.f32 %v2145, %v2227
  %v2406 = vadd.f32 %v2146, %v2227
  %v2407 = vadd.f32 %v2147, %v2227
  %v2408 = vadd.f32 %v2148, %v2227
  %v2409 = vadd.f32 %v2149, %v2227
  %v2410 = vadd.f32 %v2150, %v2227
  %v2411 = vadd.f32 %v2151, %v2227
  %v2412 = vadd.f32 %v2152, %v2227
  %v2413 = vadd.f32 %v2153, %v2227
  %v2414 = vadd.f32 %v2154, %v2227
  %v2415 = vadd.f32 %v2155, %v2227
  %v2416 = vadd.f32 %v2156, %v2227
  %v2417 = vadd.f32 %v2157, %v2227
  %v2418 = vadd.f32 %v2158, %v2227
  %v2419 = vadd.f32 %v2159, %v2227
  %v2420 = vadd.f32 %v2160, %v2227
  %v2421 = vadd.f32 %v2161, %v2227
  %v2422 = vadd.f32 %v2162, %v2227
  %v2423 = vadd.f32 %v2163, %v2227
  %v2424 = vadd.f32 %v2164, %v2227
  %v2425 = vadd.f32 %v2165, %v2227
  %v2426 = vadd.f32 %v2166, %v2227
  %v2427 = vadd.f32 %v2167, %v2227
  %v2428 = vadd.f32 %v2168, %v2227
  %v2429 = vadd.f32 %v2169, %v2227
  %v2430 = vadd.f32 %v2170, %v2227
  %v2431 = vadd.f32 %v2171, %v2227
  %v2432 = vadd.f32 %v2172, %v2227
  %v2433 = vadd.f32 %v2173, %v2227
  %v2434 = vadd.f32 %v2174, %v2227
  %v2435 = vadd.f32 %v2175, %v2227
  %v2436 = vadd.f32 %v2176, %v2227
  %v2437 = vadd.f32 %v2177, %v2227
  %v2438 = vadd.f32 %v2178, %v2227
  %v2439 = vadd.f32 %v2179, %v2227
  %v2440 = vadd.f32 %v2180, %v2227
  %v2441 = vadd.f32 %v2181, %v2227
  %v2442 = vadd.f32 %v2182, %v2227
  %v2443 = vadd.f32 %v2183, %v2227
  %v2444 = vadd.f32 %v2184, %v2227
  %v2445 = vadd.f32 %v2185, %v2227
  %v2446 = vadd.f32 %v2186, %v2227
  %v2447 = vadd.f32 %v2187, %v2227
  %v2448 = vadd.f32 %v2188, %v2227
  %v2449 = vadd.f32 %v2189, %v2227
  %v2450 = vadd.f32 %v2190, %v2227
  %v2451 = vadd.f32 %v2191, %v2227
  %v2452 = vadd.f32 %v2192, %v2227
  %v2453 = vadd.f32 %v2193, %v2227
  %v2454 = vadd.f32 %v2194, %v2227
  %v2455 = vadd.f32 %v2195, %v2227
  %v2456 = vadd.f32 %v2196, %v2227
  %v2457 = vadd.f32 %v2197, %v2227
  %v2458 = vadd.f32 %v2198, %v2227
  %v2459 = vadd.f32 %v2199, %v2227
  %v2460 = vadd.f32 %v2200, %v2227
  %v2461 = vadd.f32 %v2201, %v2227
  %v2462 = vadd.f32 %v2202, %v2227
  %v2463 = vadd.f32 %v2203, %v2227
  %v2464 = vadd.f32 %v2204, %v2227
  %v2465 = vadd.f32 %v2205, %v2227
  %v2466 = vadd.f32 %v2206, %v2227
  %v2467 = vadd.f32 %v2207, %v2227
  %v2468 = vadd.f32 %v2208, %v2227
  %v2469 = vadd.f32 %v2209, %v2227
  %v2470 = vadd.f32 %v2210, %v2227
  %v2471 = vadd.f32 %v2211, %v2227
  %v2472 = vadd.f32 %v2212, %v2227
  %v2473 = vadd.f32 %v2213, %v2227
  %v2474 = vadd.f32 %v2214, %v2227
  %v2475 = vadd.f32 %v2215, %v2227
  %v2476 = vadd.f32 %v2216, %v2227
  %v2477 = vadd.f32 %v2217, %v2227
  %v2478 = vadd.f32 %v2218, %v2227
  %v2479 = vadd.f32 %v2219, %v2227
  %v2480 = vadd.f32 %v2220, %v2227
  %v2481 = vadd.f32 %v2221, %v2227
  %v2482 = vadd.f32 %v2222, %v2227
  %v2483 = vadd.f32 %v2223, %v2227
  %v2484 = vadd.f32 %v2224, %v2227
  %v2485 = vmax.f32 %v2229, 0.0
  %v2486 = vmax.f32 %v2230, 0.0
  %v2487 = vmax.f32 %v2231, 0.0
  %v2488 = vmax.f32 %v2232, 0.0
  %v2489 = vmax.f32 %v2233, 0.0
  %v2490 = vmax.f32 %v2234, 0.0
  %v2491 = vmax.f32 %v2235, 0.0
  %v2492 = vmax.f32 %v2236, 0.0
  %v2493 = vmax.f32 %v2237, 0.0
  %v2494 = vmax.f32 %v2238, 0.0
  %v2495 = vmax.f32 %v2239, 0.0
  %v2496 = vmax.f32 %v2240, 0.0
  %v2497 = vmax.f32 %v2241, 0.0
  %v2498 = vmax.f32 %v2242, 0.0
  %v2499 = vmax.f32 %v2243, 0.0
  %v2500 = vmax.f32 %v2244, 0.0
  %v2501 = vmax.f32 %v2245, 0.0
  %v2502 = vmax.f32 %v2246, 0.0
  %v2503 = vmax.f32 %v2247, 0.0
  %v2504 = vmax.f32 %v2248, 0.0
  %v2505 = vmax.f32 %v2249, 0.0
  %v2506 = vmax.f32 %v2250, 0.0
  %v2507 = vmax.f32 %v2251, 0.0
  %v2508 = vmax.f32 %v2252, 0.0
  %v2509 = vmax.f32 %v2253, 0.0
  %v2510 = vmax.f32 %v2254, 0.0
  %v2511 = vmax.f32 %v2255, 0.0
  %v2512 = vmax.f32 %v2256, 0.0
  %v2513 = vmax.f32 %v2257, 0.0
  %v2514 = vmax.f32 %v2258, 0.0
  %v2515 = vmax.f32 %v2259, 0.0
  %v2516 = vmax.f32 %v2260, 0.0
  %v2517 = vmax.f32 %v2261, 0.0
  %v2518 = vmax.f32 %v2262, 0.0
  %v2519 = vmax.f32 %v2263, 0.0
  %v2520 = vmax.f32 %v2264, 0.0
  %v2521 = vmax.f32 %v2265, 0.0
  %v2522 = vmax.f32 %v2266, 0.0
  %v2523 = vmax.f32 %v2267, 0.0
  %v2524 = vmax.f32 %v2268, 0.0
  %v2525 = vmax.f32 %v2269, 0.0
  %v2526 = vmax.f32 %v2270, 0.0
  %v2527 = vmax.f32 %v2271, 0.0
  %v2528 = vmax.f32 %v2272, 0.0
  %v2529 = vmax.f32 %v2273, 0.0
  %v2530 = vmax.f32 %v2274, 0.0
  %v2531 = vmax.f32 %v2275, 0.0
  %v2532 = vmax.f32 %v2276, 0.0
  %v2533 = vmax.f32 %v2277, 0.0
  %v2534 = vmax.f32 %v2278, 0.0
  %v2535 = vmax.f32 %v2279, 0.0
  %v2536 = vmax.f32 %v2280, 0.0
  %v2537 = vmax.f32 %v2281, 0.0
  %v2538 = vmax.f32 %v2282, 0.0
  %v2539 = vmax.f32 %v2283, 0.0
  %v2540 = vmax.f32 %v2284, 0.0
  %v2541 = vmax.f32 %v2285, 0.0
  %v2542 = vmax.f32 %v2286, 0.0
  %v2543 = vmax.f32 %v2287, 0.0
  %v2544 = vmax.f32 %v2288, 0.0
  %v2545 = vmax.f32 %v2289, 0.0
  %v2546 = vmax.f32 %v2290, 0.0
  %v2547 = vmax.f32 %v2291, 0.0
  %v2548 = vmax.f32 %v2292, 0.0
  %v2549 = vmax.f32 %v2293, 0.0
  %v2550 = vmax.f32 %v2294, 0.0
  %v2551 = vmax.f32 %v2295, 0.0
  %v2552 = vmax.f32 %v2296, 0.0
  %v2553 = vmax.f32 %v2297, 0.0
  %v2554 = vmax.f32 %v2298, 0.0
  %v2555 = vmax.f32 %v2299, 0.0
  %v2556 = vmax.f32 %v2300, 0.0
  %v2557 = vmax.f32 %v2301, 0.0
  %v2558 = vmax.f32 %v2302, 0.0
  %v2559 = vmax.f32 %v2303, 0.0
  %v2560 = vmax.f32 %v2304, 0.0
  %v2561 = vmax.f32 %v2305, 0.0
  %v2562 = vmax.f32 %v2306, 0.0
  %v2563 = vmax.f32 %v2307, 0.0
  %v2564 = vmax.f32 %v2308, 0.0
  %v2565 = vmax.f32 %v2309, 0.0
  %v2566 = vmax.f32 %v2310, 0.0
  %v2567 = vmax.f32 %v2311, 0.0
  %v2568 = vmax.f32 %v2312, 0.0
  %v2569 = vmax.f32 %v2313, 0.0
  %v2570 = vmax.f32 %v2314, 0.0
  %v2571 = vmax.f32 %v2315, 0.0
  %v2572 = vmax.f32 %v2316, 0.0
  %v2573 = vmax.f32 %v2317, 0.0
  %v2574 = vmax.f32 %v2318, 0.0
  %v2575 = vmax.f32 %v2319, 0.0
  %v2576 = vmax.f32 %v2320, 0.0
  %v2577 = vmax.f32 %v2321, 0.0
  %v2578 = vmax.f32 %v2322, 0.0
  %v2579 = vmax.f32 %v2323, 0.0
  %v2580 = vmax.f32 %v2324, 0.0
  %v2581 = vmax.f32 %v2325, 0.0
  %v2582 = vmax.f32 %v2326, 0.0
  %v2583 = vmax.f32 %v2327, 0.0
  %v2584 = vmax.f32 %v2328, 0.0
  %v2585 = vmax.f32 %v2329, 0.0
  %v2586 = vmax.f32 %v2330, 0.0
  %v2587 = vmax.f32 %v2331, 0.0
  %v2588 = vmax.f32 %v2332, 0.0
  %v2589 = vmax.f32 %v2333, 0.0
  %v2590 = vmax.f32 %v2334, 0.0
  %v2591 = vmax.f32 %v2335, 0.0
  %v2592 = vmax.f32 %v2336, 0.0
  %v2593 = vmax.f32 %v2337, 0.0
  %v2594 = vmax.f32 %v2338, 0.0
  %v2595 = vmax.f32 %v2339, 0.0
  %v2596 = vmax.f32 %v2340, 0.0
  %v2597 = vmax.f32 %v2341, 0.0
  %v2598 = vmax.f32 %v2342, 0.0
  %v2599 = vmax.f32 %v2343, 0.0
  %v2600 = vmax.f32 %v2344, 0.0
  %v2601 = vmax.f32 %v2345, 0.0
  %v2602 = vmax.f32 %v2346, 0.0
  %v2603 = vmax.f32 %v2347, 0.0
  %v2604 = vmax.f32 %v2348, 0.0
  %v2605 = vmax.f32 %v2349, 0.0
  %v2606 = vmax.f32 %v2350, 0.0
  %v2607 = vmax.f32 %v2351, 0.0
  %v2608 = vmax.f32 %v2352, 0.0
  %v2609 = vmax.f32 %v2353, 0.0
  %v2610 = vmax.f32 %v2354, 0.0
  %v2611 = vmax.f32 %v2355, 0.0
  %v2612 = vmax.f32 %v2356, 0.0
  %v2613 = vmax.f32 %v2357, 0.0
  %v2614 = vmax.f32 %v2358, 0.0
  %v2615 = vmax.f32 %v2359, 0.0
  %v2616 = vmax.f32 %v2360, 0.0
  %v2617 = vmax.f32 %v2361, 0.0
  %v2618 = vmax.f32 %v2362, 0.0
  %v2619 = vmax.f32 %v2363, 0.0
  %v2620 = vmax.f32 %v2364, 0.0
  %v2621 = vmax.f32 %v2365, 0.0
  %v2622 = vmax.f32 %v2366, 0.0
  %v2623 = vmax.f32 %v2367, 0.0
  %v2624 = vmax.f32 %v2368, 0.0
  %v2625 = vmax.f32 %v2369, 0.0
  %v2626 = vmax.f32 %v2370, 0.0
  %v2627 = vmax.f32 %v2371, 0.0
  %v2628 = vmax.f32 %v2372, 0.0
  %v2629 = vmax.f32 %v2373, 0.0
  %v2630 = vmax.f32 %v2374, 0.0
  %v2631 = vmax.f32 %v2375, 0.0
  %v2632 = vmax.f32 %v2376, 0.0
  %v2633 = vmax.f32 %v2377, 0.0
  %v2634 = vmax.f32 %v2378, 0.0
  %v2635 = vmax.f32 %v2379, 0.0
  %v2636 = vmax.f32 %v2380, 0.0
  %v2637 = vmax.f32 %v2381, 0.0
  %v2638 = vmax.f32 %v2382, 0.0
  %v2639 = vmax.f32 %v2383, 0.0
  %v2640 = vmax.f32 %v2384, 0.0
  %v2641 = vmax.f32 %v2385, 0.0
  %v2642 = vmax.f32 %v2386, 0.0
  %v2643 = vmax.f32 %v2387, 0.0
  %v2644 = vmax.f32 %v2388, 0.0
  %v2645 = vmax.f32 %v2389, 0.0
  %v2646 = vmax.f32 %v2390, 0.0
  %v2647 = vmax.f32 %v2391, 0.0
  %v2648 = vmax.f32 %v2392, 0.0
  %v2649 = vmax.f32 %v2393, 0.0
  %v2650 = vmax.f32 %v2394, 0.0
  %v2651 = vmax.f32 %v2395, 0.0
  %v2652 = vmax.f32 %v2396, 0.0
  %v2653 = vmax.f32 %v2397, 0.0
  %v2654 = vmax.f32 %v2398, 0.0
  %v2655 = vmax.f32 %v2399, 0.0
  %v2656 = vmax.f32 %v2400, 0.0
  %v2657 = vmax.f32 %v2401, 0.0
  %v2658 = vmax.f32 %v2402, 0.0
  %v2659 = vmax.f32 %v2403, 0.0
  %v2660 = vmax.f32 %v2404, 0.0
  %v2661 = vmax.f32 %v2405, 0.0
  %v2662 = vmax.f32 %v2406, 0.0
  %v2663 = vmax.f32 %v2407, 0.0
  %v2664 = vmax.f32 %v2408, 0.0
  %v2665 = vmax.f32 %v2409, 0.0
  %v2666 = vmax.f32 %v2410, 0.0
  %v2667 = vmax.f32 %v2411, 0.0
  %v2668 = vmax.f32 %v2412, 0.0
  %v2669 = vmax.f32 %v2413, 0.0
  %v2670 = vmax.f32 %v2414, 0.0
  %v2671 = vmax.f32 %v2415, 0.0
  %v2672 = vmax.f32 %v2416, 0.0
  %v2673 = vmax.f32 %v2417, 0.0
  %v2674 = vmax.f32 %v2418, 0.0
  %v2675 = vmax.f32 %v2419, 0.0
  %v2676 = vmax.f32 %v2420, 0.0
  %v2677 = vmax.f32 %v2421, 0.0
  %v2678 = vmax.f32 %v2422, 0.0
  %v2679 = vmax.f32 %v2423, 0.0
  %v2680 = vmax.f32 %v2424, 0.0
  %v2681 = vmax.f32 %v2425, 0.0
  %v2682 = vmax.f32 %v2426, 0.0
  %v2683 = vmax.f32 %v2427, 0.0
  %v2684 = vmax.f32 %v2428, 0.0
  %v2685 = vmax.f32 %v2429, 0.0
  %v2686 = vmax.f32 %v2430, 0.0
  %v2687 = vmax.f32 %v2431, 0.0
  %v2688 = vmax.f32 %v2432, 0.0
  %v2689 = vmax.f32 %v2433, 0.0
  %v2690 = vmax.f32 %v2434, 0.0
  %v2691 = vmax.f32 %v2435, 0.0
  %v2692 = vmax.f32 %v2436, 0.0
  %v2693 = vmax.f32 %v2437, 0.0
  %v2694 = vmax.f32 %v2438, 0.0
  %v2695 = vmax.f32 %v2439, 0.0
  %v2696 = vmax.f32 %v2440, 0.0
  %v2697 = vmax.f32 %v2441, 0.0
  %v2698 = vmax.f32 %v2442, 0.0
  %v2699 = vmax.f32 %v2443, 0.0
  %v2700 = vmax.f32 %v2444, 0.0
  %v2701 = vmax.f32 %v2445, 0.0
  %v2702 = vmax.f32 %v2446, 0.0
  %v2703 = vmax.f32 %v2447, 0.0
  %v2704 = vmax.f32 %v2448, 0.0
  %v2705 = vmax.f32 %v2449, 0.0
  %v2706 = vmax.f32 %v2450, 0.0
  %v2707 = vmax.f32 %v2451, 0.0
  %v2708 = vmax.f32 %v2452, 0.0
  %v2709 = vmax.f32 %v2453, 0.0
  %v2710 = vmax.f32 %v2454, 0.0
  %v2711 = vmax.f32 %v2455, 0.0
  %v2712 = vmax.f32 %v2456, 0.0
  %v2713 = vmax.f32 %v2457, 0.0
  %v2714 = vmax.f32 %v2458, 0.0
  %v2715 = vmax.f32 %v2459, 0.0
  %v2716 = vmax.f32 %v2460, 0.0
  %v2717 = vmax.f32 %v2461, 0.0
  %v2718 = vmax.f32 %v2462, 0.0
  %v2719 = vmax.f32 %v2463, 0.0
  %v2720 = vmax.f32 %v2464, 0.0
  %v2721 = vmax.f32 %v2465, 0.0
  %v2722 = vmax.f32 %v2466, 0.0
  %v2723 = vmax.f32 %v2467, 0.0
  %v2724 = vmax.f32 %v2468, 0.0
  %v2725 = vmax.f32 %v2469, 0.0
  %v2726 = vmax.f32 %v2470, 0.0
  %v2727 = vmax.f32 %v2471, 0.0
  %v2728 = vmax.f32 %v2472, 0.0
  %v2729 = vmax.f32 %v2473, 0.0
  %v2730 = vmax.f32 %v2474, 0.0
  %v2731 = vmax.f32 %v2475, 0.0
  %v2732 = vmax.f32 %v2476, 0.0
  %v2733 = vmax.f32 %v2477, 0.0
  %v2734 = vmax.f32 %v2478, 0.0
  %v2735 = vmax.f32 %v2479, 0.0
  %v2736 = vmax.f32 %v2480, 0.0
  %v2737 = vmax.f32 %v2481, 0.0
  %v2738 = vmax.f32 %v2482, 0.0
  %v2739 = vmax.f32 %v2483, 0.0
  %v2740 = vmax.f32 %v2484, 0.0
  %v2741 = vpack.c.bf16 %v2486, %v2485
  %v2742 = vpack.c.bf16 %v2488, %v2487
  %v2743 = vpack.c.bf16 %v2490, %v2489
  %v2744 = vpack.c.bf16 %v2492, %v2491
  %v2745 = vpack.c.bf16 %v2494, %v2493
  %v2746 = vpack.c.bf16 %v2496, %v2495
  %v2747 = vpack.c.bf16 %v2498, %v2497
  %v2748 = vpack.c.bf16 %v2500, %v2499
  %v2749 = vpack.c.bf16 %v2502, %v2501
  %v2750 = vpack.c.bf16 %v2504, %v2503
  %v2751 = vpack.c.bf16 %v2506, %v2505
  %v2752 = vpack.c.bf16 %v2508, %v2507
  %v2753 = vpack.c.bf16 %v2510, %v2509
  %v2754 = vpack.c.bf16 %v2512, %v2511
  %v2755 = vpack.c.bf16 %v2514, %v2513
  %v2756 = vpack.c.bf16 %v2516, %v2515
  %v2757 = vpack.c.bf16 %v2518, %v2517
  %v2758 = vpack.c.bf16 %v2520, %v2519
  %v2759 = vpack.c.bf16 %v2522, %v2521
  %v2760 = vpack.c.bf16 %v2524, %v2523
  %v2761 = vpack.c.bf16 %v2526, %v2525
  %v2762 = vpack.c.bf16 %v2528, %v2527
  %v2763 = vpack.c.bf16 %v2530, %v2529
  %v2764 = vpack.c.bf16 %v2532, %v2531
  %v2765 = vpack.c.bf16 %v2534, %v2533
  %v2766 = vpack.c.bf16 %v2536, %v2535
  %v2767 = vpack.c.bf16 %v2538, %v2537
  %v2768 = vpack.c.bf16 %v2540, %v2539
  %v2769 = vpack.c.bf16 %v2542, %v2541
  %v2770 = vpack.c.bf16 %v2544, %v2543
  %v2771 = vpack.c.bf16 %v2546, %v2545
  %v2772 = vpack.c.bf16 %v2548, %v2547
  %v2773 = vpack.c.bf16 %v2550, %v2549
  %v2774 = vpack.c.bf16 %v2552, %v2551
  %v2775 = vpack.c.bf16 %v2554, %v2553
  %v2776 = vpack.c.bf16 %v2556, %v2555
  %v2777 = vpack.c.bf16 %v2558, %v2557
  %v2778 = vpack.c.bf16 %v2560, %v2559
  %v2779 = vpack.c.bf16 %v2562, %v2561
  %v2780 = vpack.c.bf16 %v2564, %v2563
  %v2781 = vpack.c.bf16 %v2566, %v2565
  %v2782 = vpack.c.bf16 %v2568, %v2567
  %v2783 = vpack.c.bf16 %v2570, %v2569
  %v2784 = vpack.c.bf16 %v2572, %v2571
  %v2785 = vpack.c.bf16 %v2574, %v2573
  %v2786 = vpack.c.bf16 %v2576, %v2575
  %v2787 = vpack.c.bf16 %v2578, %v2577
  %v2788 = vpack.c.bf16 %v2580, %v2579
  %v2789 = vpack.c.bf16 %v2582, %v2581
  %v2790 = vpack.c.bf16 %v2584, %v2583
  %v2791 = vpack.c.bf16 %v2586, %v2585
  %v2792 = vpack.c.bf16 %v2588, %v2587
  %v2793 = vpack.c.bf16 %v2590, %v2589
  %v2794 = vpack.c.bf16 %v2592, %v2591
  %v2795 = vpack.c.bf16 %v2594, %v2593
  %v2796 = vpack.c.bf16 %v2596, %v2595
  %v2797 = vpack.c.bf16 %v2598, %v2597
  %v2798 = vpack.c.bf16 %v2600, %v2599
  %v2799 = vpack.c.bf16 %v2602, %v2601
  %v2800 = vpack.c.bf16 %v2604, %v2603
  %v2801 = vpack.c.bf16 %v2606, %v2605
  %v2802 = vpack.c.bf16 %v2608, %v2607
  %v2803 = vpack.c.bf16 %v2610, %v2609
  %v2804 = vpack.c.bf16 %v2612, %v2611
  %v2805 = vpack.c.bf16 %v2614, %v2613
  %v2806 = vpack.c.bf16 %v2616, %v2615
  %v2807 = vpack.c.bf16 %v2618, %v2617
  %v2808 = vpack.c.bf16 %v2620, %v2619
  %v2809 = vpack.c.bf16 %v2622, %v2621
  %v2810 = vpack.c.bf16 %v2624, %v2623
  %v2811 = vpack.c.bf16 %v2626, %v2625
  %v2812 = vpack.c.bf16 %v2628, %v2627
  %v2813 = vpack.c.bf16 %v2630, %v2629
  %v2814 = vpack.c.bf16 %v2632, %v2631
  %v2815 = vpack.c.bf16 %v2634, %v2633
  %v2816 = vpack.c.bf16 %v2636, %v2635
  %v2817 = vpack.c.bf16 %v2638, %v2637
  %v2818 = vpack.c.bf16 %v2640, %v2639
  %v2819 = vpack.c.bf16 %v2642, %v2641
  %v2820 = vpack.c.bf16 %v2644, %v2643
  %v2821 = vpack.c.bf16 %v2646, %v2645
  %v2822 = vpack.c.bf16 %v2648, %v2647
  %v2823 = vpack.c.bf16 %v2650, %v2649
  %v2824 = vpack.c.bf16 %v2652, %v2651
  %v2825 = vpack.c.bf16 %v2654, %v2653
  %v2826 = vpack.c.bf16 %v2656, %v2655
  %v2827 = vpack.c.bf16 %v2658, %v2657
  %v2828 = vpack.c.bf16 %v2660, %v2659
  %v2829 = vpack.c.bf16 %v2662, %v2661
  %v2830 = vpack.c.bf16 %v2664, %v2663
  %v2831 = vpack.c.bf16 %v2666, %v2665
  %v2832 = vpack.c.bf16 %v2668, %v2667
  %v2833 = vpack.c.bf16 %v2670, %v2669
  %v2834 = vpack.c.bf16 %v2672, %v2671
  %v2835 = vpack.c.bf16 %v2674, %v2673
  %v2836 = vpack.c.bf16 %v2676, %v2675
  %v2837 = vpack.c.bf16 %v2678, %v2677
  %v2838 = vpack.c.bf16 %v2680, %v2679
  %v2839 = vpack.c.bf16 %v2682, %v2681
  %v2840 = vpack.c.bf16 %v2684, %v2683
  %v2841 = vpack.c.bf16 %v2686, %v2685
  %v2842 = vpack.c.bf16 %v2688, %v2687
  %v2843 = vpack.c.bf16 %v2690, %v2689
  %v2844 = vpack.c.bf16 %v2692, %v2691
  %v2845 = vpack.c.bf16 %v2694, %v2693
  %v2846 = vpack.c.bf16 %v2696, %v2695
  %v2847 = vpack.c.bf16 %v2698, %v2697
  %v2848 = vpack.c.bf16 %v2700, %v2699
  %v2849 = vpack.c.bf16 %v2702, %v2701
  %v2850 = vpack.c.bf16 %v2704, %v2703
  %v2851 = vpack.c.bf16 %v2706, %v2705
  %v2852 = vpack.c.bf16 %v2708, %v2707
  %v2853 = vpack.c.bf16 %v2710, %v2709
  %v2854 = vpack.c.bf16 %v2712, %v2711
  %v2855 = vpack.c.bf16 %v2714, %v2713
  %v2856 = vpack.c.bf16 %v2716, %v2715
  %v2857 = vpack.c.bf16 %v2718, %v2717
  %v2858 = vpack.c.bf16 %v2720, %v2719
  %v2859 = vpack.c.bf16 %v2722, %v2721
  %v2860 = vpack.c.bf16 %v2724, %v2723
  %v2861 = vpack.c.bf16 %v2726, %v2725
  %v2862 = vpack.c.bf16 %v2728, %v2727
  %v2863 = vpack.c.bf16 %v2730, %v2729
  %v2864 = vpack.c.bf16 %v2732, %v2731
  %v2865 = vpack.c.bf16 %v2734, %v2733
  %v2866 = vpack.c.bf16 %v2736, %v2735
  %v2867 = vpack.c.bf16 %v2738, %v2737
  %v2868 = vpack.c.bf16 %v2740, %v2739
  %v2869 = vld [vmem:[%s4] sm:$0xf]
  %v2870 = vld [vmem:[%s4 + $0x4] sm:$0xf]
  %v2871 = vld [vmem:[%s4 + $0x8] sm:$0xf]
  %v2872 = vld [vmem:[%s4 + $0xc] sm:$0xf]
  %v2877 = vunpack.c.l.b16 %v2869
  %v2878 = vunpack.c.l.b16 %v2870
  %v2879 = vunpack.c.l.b16 %v2871
  %v2880 = vunpack.c.l.b16 %v2872
  %v2881 = vpack.c.b16 %v2878, %v2877
  %v2882 = vpack.c.b16 %v2880, %v2879
  %vm2885 = vcmask 261120
  %v2887 = vsel %vm2885, %v2741, 0
  %v2890 = vsel %vm2885, %v2742, 0
  %v2893 = vsel %vm2885, %v2743, 0
  %v2896 = vsel %vm2885, %v2744, 0
  %v2899 = vsel %vm2885, %v2745, 0
  %v2902 = vsel %vm2885, %v2746, 0
  %v2905 = vsel %vm2885, %v2747, 0
  %v2908 = vsel %vm2885, %v2748, 0
  %v2911 = vsel %vm2885, %v2749, 0
  %v2914 = vsel %vm2885, %v2750, 0
  %v2917 = vsel %vm2885, %v2751, 0
  %v2920 = vsel %vm2885, %v2752, 0
  %v2923 = vsel %vm2885, %v2753, 0
  %v2926 = vsel %vm2885, %v2754, 0
  %v2929 = vsel %vm2885, %v2755, 0
  %v2932 = vsel %vm2885, %v2756, 0
  %v2935 = vsel %vm2885, %v2757, 0
  %v2938 = vsel %vm2885, %v2758, 0
  %v2941 = vsel %vm2885, %v2759, 0
  %v2944 = vsel %vm2885, %v2760, 0
  %v2947 = vsel %vm2885, %v2761, 0
  %v2950 = vsel %vm2885, %v2762, 0
  %v2953 = vsel %vm2885, %v2763, 0
  %v2956 = vsel %vm2885, %v2764, 0
  %v2959 = vsel %vm2885, %v2765, 0
  %v2962 = vsel %vm2885, %v2766, 0
  %v2965 = vsel %vm2885, %v2767, 0
  %v2968 = vsel %vm2885, %v2768, 0
  %v2971 = vsel %vm2885, %v2769, 0
  %v2974 = vsel %vm2885, %v2770, 0
  %v2977 = vsel %vm2885, %v2771, 0
  %v2980 = vsel %vm2885, %v2772, 0
  %v2983 = vsel %vm2885, %v2773, 0
  %v2986 = vsel %vm2885, %v2774, 0
  %v2989 = vsel %vm2885, %v2775, 0
  %v2992 = vsel %vm2885, %v2776, 0
  %v2995 = vsel %vm2885, %v2777, 0
  %v2998 = vsel %vm2885, %v2778, 0
  %v3001 = vsel %vm2885, %v2779, 0
  %v3004 = vsel %vm2885, %v2780, 0
  %v3007 = vsel %vm2885, %v2781, 0
  %v3010 = vsel %vm2885, %v2782, 0
  %v3013 = vsel %vm2885, %v2783, 0
  %v3016 = vsel %vm2885, %v2784, 0
  %v3019 = vsel %vm2885, %v2785, 0
  %v3022 = vsel %vm2885, %v2786, 0
  %v3025 = vsel %vm2885, %v2787, 0
  %v3028 = vsel %vm2885, %v2788, 0
  %v3031 = vsel %vm2885, %v2789, 0
  %v3034 = vsel %vm2885, %v2790, 0
  %v3037 = vsel %vm2885, %v2791, 0
  %v3040 = vsel %vm2885, %v2792, 0
  %v3043 = vsel %vm2885, %v2793, 0
  %v3046 = vsel %vm2885, %v2794, 0
  %v3049 = vsel %vm2885, %v2795, 0
  %v3052 = vsel %vm2885, %v2796, 0
  %v3055 = vsel %vm2885, %v2797, 0
  %v3058 = vsel %vm2885, %v2798, 0
  %v3061 = vsel %vm2885, %v2799, 0
  %v3064 = vsel %vm2885, %v2800, 0
  %v3067 = vsel %vm2885, %v2801, 0
  %v3070 = vsel %vm2885, %v2802, 0
  %v3073 = vsel %vm2885, %v2803, 0
  %v3076 = vsel %vm2885, %v2804, 0
  %v3079 = vsel %vm2885, %v2805, 0
  %v3082 = vsel %vm2885, %v2806, 0
  %v3085 = vsel %vm2885, %v2807, 0
  %v3088 = vsel %vm2885, %v2808, 0
  %v3091 = vsel %vm2885, %v2809, 0
  %v3094 = vsel %vm2885, %v2810, 0
  %v3097 = vsel %vm2885, %v2811, 0
  %v3100 = vsel %vm2885, %v2812, 0
  %v3103 = vsel %vm2885, %v2813, 0
  %v3106 = vsel %vm2885, %v2814, 0
  %v3109 = vsel %vm2885, %v2815, 0
  %v3112 = vsel %vm2885, %v2816, 0
  %v3115 = vsel %vm2885, %v2817, 0
  %v3118 = vsel %vm2885, %v2818, 0
  %v3121 = vsel %vm2885, %v2819, 0
  %v3124 = vsel %vm2885, %v2820, 0
  %v3127 = vsel %vm2885, %v2821, 0
  %v3130 = vsel %vm2885, %v2822, 0
  %v3133 = vsel %vm2885, %v2823, 0
  %v3136 = vsel %vm2885, %v2824, 0
  %v3139 = vsel %vm2885, %v2825, 0
  %v3142 = vsel %vm2885, %v2826, 0
  %v3145 = vsel %vm2885, %v2827, 0
  %v3148 = vsel %vm2885, %v2828, 0
  %v3151 = vsel %vm2885, %v2829, 0
  %v3154 = vsel %vm2885, %v2830, 0
  %v3157 = vsel %vm2885, %v2831, 0
  %v3160 = vsel %vm2885, %v2832, 0
  %v3163 = vsel %vm2885, %v2833, 0
  %v3166 = vsel %vm2885, %v2834, 0
  %v3169 = vsel %vm2885, %v2835, 0
  %v3172 = vsel %vm2885, %v2836, 0
  %v3175 = vsel %vm2885, %v2837, 0
  %v3178 = vsel %vm2885, %v2838, 0
  %v3181 = vsel %vm2885, %v2839, 0
  %v3184 = vsel %vm2885, %v2840, 0
  %v3187 = vsel %vm2885, %v2841, 0
  %v3190 = vsel %vm2885, %v2842, 0
  %v3193 = vsel %vm2885, %v2843, 0
  %v3196 = vsel %vm2885, %v2844, 0
  %v3199 = vsel %vm2885, %v2845, 0
  %v3202 = vsel %vm2885, %v2846, 0
  %v3205 = vsel %vm2885, %v2847, 0
  %v3208 = vsel %vm2885, %v2848, 0
  %v3211 = vsel %vm2885, %v2849, 0
  %v3214 = vsel %vm2885, %v2850, 0
  %v3217 = vsel %vm2885, %v2851, 0
  %v3220 = vsel %vm2885, %v2852, 0
  %v3223 = vsel %vm2885, %v2853, 0
  %v3226 = vsel %vm2885, %v2854, 0
  %v3229 = vsel %vm2885, %v2855, 0
  %v3232 = vsel %vm2885, %v2856, 0
  %v3235 = vsel %vm2885, %v2857, 0
  %v3238 = vsel %vm2885, %v2858, 0
  %v3241 = vsel %vm2885, %v2859, 0
  %v3244 = vsel %vm2885, %v2860, 0
  %v3247 = vsel %vm2885, %v2861, 0
  %v3250 = vsel %vm2885, %v2862, 0
  %v3253 = vsel %vm2885, %v2863, 0
  %v3256 = vsel %vm2885, %v2864, 0
  %v3259 = vsel %vm2885, %v2865, 0
  %v3262 = vsel %vm2885, %v2866, 0
  %v3265 = vsel %vm2885, %v2867, 0
  %v3268 = vsel %vm2885, %v2868, 0
  %3270 = vmatpush.bf16.msra.mxu0 0
  %3271 = vmatpush.bf16.msra.mxu0 0
  %3272 = vmatpush.bf16.msra.mxu0 0
  %3273 = vmatpush.bf16.msra.mxu0 0
  %3274 = vmatpush.bf16.msra.mxu0 0
  %3275 = vmatpush.bf16.msra.mxu0 0
  %3276 = vmatpush.bf16.msra.mxu0 %v2882
  %3277 = vmatpush.bf16.msra.mxu0 %v2881
  %3278 = vmatmul.bf16.gmra.mxu0 %v2887
  %v3279 = vpop.f32.mrf.mxu0
  %v3280 = vadd.f32 0.0, %v3279
  %v3281 = vpop.f32.mrf.mxu0
  %v3282 = vadd.f32 0.0, %v3281
  %3283 = vmatmul.bf16.gmra.mxu0 %v2890
  %v3284 = vpop.f32.mrf.mxu0
  %v3285 = vadd.f32 0.0, %v3284
  %v3286 = vpop.f32.mrf.mxu0
  %v3287 = vadd.f32 0.0, %v3286
  %3288 = vmatmul.bf16.gmra.mxu0 %v2893
  %v3289 = vpop.f32.mrf.mxu0
  %v3290 = vadd.f32 0.0, %v3289
  %v3291 = vpop.f32.mrf.mxu0
  %v3292 = vadd.f32 0.0, %v3291
  %3293 = vmatmul.bf16.gmra.mxu0 %v2896
  %v3294 = vpop.f32.mrf.mxu0
  %v3295 = vadd.f32 0.0, %v3294
  %v3296 = vpop.f32.mrf.mxu0
  %v3297 = vadd.f32 0.0, %v3296
  %3298 = vmatmul.bf16.gmra.mxu0 %v2899
  %v3299 = vpop.f32.mrf.mxu0
  %v3300 = vadd.f32 0.0, %v3299
  %v3301 = vpop.f32.mrf.mxu0
  %v3302 = vadd.f32 0.0, %v3301
  %3303 = vmatmul.bf16.gmra.mxu0 %v2902
  %v3304 = vpop.f32.mrf.mxu0
  %v3305 = vadd.f32 0.0, %v3304
  %v3306 = vpop.f32.mrf.mxu0
  %v3307 = vadd.f32 0.0, %v3306
  %3308 = vmatmul.bf16.gmra.mxu0 %v2905
  %v3309 = vpop.f32.mrf.mxu0
  %v3310 = vadd.f32 0.0, %v3309
  %v3311 = vpop.f32.mrf.mxu0
  %v3312 = vadd.f32 0.0, %v3311
  %3313 = vmatmul.bf16.gmra.mxu0 %v2908
  %v3314 = vpop.f32.mrf.mxu0
  %v3315 = vadd.f32 0.0, %v3314
  %v3316 = vpop.f32.mrf.mxu0
  %v3317 = vadd.f32 0.0, %v3316
  %3318 = vmatmul.bf16.gmra.mxu0 %v2911
  %v3319 = vpop.f32.mrf.mxu0
  %v3320 = vadd.f32 0.0, %v3319
  %v3321 = vpop.f32.mrf.mxu0
  %v3322 = vadd.f32 0.0, %v3321
  %3323 = vmatmul.bf16.gmra.mxu0 %v2914
  %v3324 = vpop.f32.mrf.mxu0
  %v3325 = vadd.f32 0.0, %v3324
  %v3326 = vpop.f32.mrf.mxu0
  %v3327 = vadd.f32 0.0, %v3326
  %3328 = vmatmul.bf16.gmra.mxu0 %v2917
  %v3329 = vpop.f32.mrf.mxu0
  %v3330 = vadd.f32 0.0, %v3329
  %v3331 = vpop.f32.mrf.mxu0
  %v3332 = vadd.f32 0.0, %v3331
  %3333 = vmatmul.bf16.gmra.mxu0 %v2920
  %v3334 = vpop.f32.mrf.mxu0
  %v3335 = vadd.f32 0.0, %v3334
  %v3336 = vpop.f32.mrf.mxu0
  %v3337 = vadd.f32 0.0, %v3336
  %3338 = vmatmul.bf16.gmra.mxu0 %v2923
  %v3339 = vpop.f32.mrf.mxu0
  %v3340 = vadd.f32 0.0, %v3339
  %v3341 = vpop.f32.mrf.mxu0
  %v3342 = vadd.f32 0.0, %v3341
  %3343 = vmatmul.bf16.gmra.mxu0 %v2926
  %v3344 = vpop.f32.mrf.mxu0
  %v3345 = vadd.f32 0.0, %v3344
  %v3346 = vpop.f32.mrf.mxu0
  %v3347 = vadd.f32 0.0, %v3346
  %3348 = vmatmul.bf16.gmra.mxu0 %v2929
  %v3349 = vpop.f32.mrf.mxu0
  %v3350 = vadd.f32 0.0, %v3349
  %v3351 = vpop.f32.mrf.mxu0
  %v3352 = vadd.f32 0.0, %v3351
  %3353 = vmatmul.bf16.gmra.mxu0 %v2932
  %v3354 = vpop.f32.mrf.mxu0
  %v3355 = vadd.f32 0.0, %v3354
  %v3356 = vpop.f32.mrf.mxu0
  %v3357 = vadd.f32 0.0, %v3356
  %3358 = vmatmul.bf16.gmra.mxu0 %v2935
  %v3359 = vpop.f32.mrf.mxu0
  %v3360 = vadd.f32 0.0, %v3359
  %v3361 = vpop.f32.mrf.mxu0
  %v3362 = vadd.f32 0.0, %v3361
  %3363 = vmatmul.bf16.gmra.mxu0 %v2938
  %v3364 = vpop.f32.mrf.mxu0
  %v3365 = vadd.f32 0.0, %v3364
  %v3366 = vpop.f32.mrf.mxu0
  %v3367 = vadd.f32 0.0, %v3366
  %3368 = vmatmul.bf16.gmra.mxu0 %v2941
  %v3369 = vpop.f32.mrf.mxu0
  %v3370 = vadd.f32 0.0, %v3369
  %v3371 = vpop.f32.mrf.mxu0
  %v3372 = vadd.f32 0.0, %v3371
  %3373 = vmatmul.bf16.gmra.mxu0 %v2944
  %v3374 = vpop.f32.mrf.mxu0
  %v3375 = vadd.f32 0.0, %v3374
  %v3376 = vpop.f32.mrf.mxu0
  %v3377 = vadd.f32 0.0, %v3376
  %3378 = vmatmul.bf16.gmra.mxu0 %v2947
  %v3379 = vpop.f32.mrf.mxu0
  %v3380 = vadd.f32 0.0, %v3379
  %v3381 = vpop.f32.mrf.mxu0
  %v3382 = vadd.f32 0.0, %v3381
  %3383 = vmatmul.bf16.gmra.mxu0 %v2950
  %v3384 = vpop.f32.mrf.mxu0
  %v3385 = vadd.f32 0.0, %v3384
  %v3386 = vpop.f32.mrf.mxu0
  %v3387 = vadd.f32 0.0, %v3386
  %3388 = vmatmul.bf16.gmra.mxu0 %v2953
  %v3389 = vpop.f32.mrf.mxu0
  %v3390 = vadd.f32 0.0, %v3389
  %v3391 = vpop.f32.mrf.mxu0
  %v3392 = vadd.f32 0.0, %v3391
  %3393 = vmatmul.bf16.gmra.mxu0 %v2956
  %v3394 = vpop.f32.mrf.mxu0
  %v3395 = vadd.f32 0.0, %v3394
  %v3396 = vpop.f32.mrf.mxu0
  %v3397 = vadd.f32 0.0, %v3396
  %3398 = vmatmul.bf16.gmra.mxu0 %v2959
  %v3399 = vpop.f32.mrf.mxu0
  %v3400 = vadd.f32 0.0, %v3399
  %v3401 = vpop.f32.mrf.mxu0
  %v3402 = vadd.f32 0.0, %v3401
  %3403 = vmatmul.bf16.gmra.mxu0 %v2962
  %v3404 = vpop.f32.mrf.mxu0
  %v3405 = vadd.f32 0.0, %v3404
  %v3406 = vpop.f32.mrf.mxu0
  %v3407 = vadd.f32 0.0, %v3406
  %3408 = vmatmul.bf16.gmra.mxu0 %v2965
  %v3409 = vpop.f32.mrf.mxu0
  %v3410 = vadd.f32 0.0, %v3409
  %v3411 = vpop.f32.mrf.mxu0
  %v3412 = vadd.f32 0.0, %v3411
  %3413 = vmatmul.bf16.gmra.mxu0 %v2968
  %v3414 = vpop.f32.mrf.mxu0
  %v3415 = vadd.f32 0.0, %v3414
  %v3416 = vpop.f32.mrf.mxu0
  %v3417 = vadd.f32 0.0, %v3416
  %3418 = vmatmul.bf16.gmra.mxu0 %v2971
  %v3419 = vpop.f32.mrf.mxu0
  %v3420 = vadd.f32 0.0, %v3419
  %v3421 = vpop.f32.mrf.mxu0
  %v3422 = vadd.f32 0.0, %v3421
  %3423 = vmatmul.bf16.gmra.mxu0 %v2974
  %v3424 = vpop.f32.mrf.mxu0
  %v3425 = vadd.f32 0.0, %v3424
  %v3426 = vpop.f32.mrf.mxu0
  %v3427 = vadd.f32 0.0, %v3426
  %3428 = vmatmul.bf16.gmra.mxu0 %v2977
  %v3429 = vpop.f32.mrf.mxu0
  %v3430 = vadd.f32 0.0, %v3429
  %v3431 = vpop.f32.mrf.mxu0
  %v3432 = vadd.f32 0.0, %v3431
  %3433 = vmatmul.bf16.gmra.mxu0 %v2980
  %v3434 = vpop.f32.mrf.mxu0
  %v3435 = vadd.f32 0.0, %v3434
  %v3436 = vpop.f32.mrf.mxu0
  %v3437 = vadd.f32 0.0, %v3436
  %3438 = vmatmul.bf16.gmra.mxu0 %v2983
  %v3439 = vpop.f32.mrf.mxu0
  %v3440 = vadd.f32 0.0, %v3439
  %v3441 = vpop.f32.mrf.mxu0
  %v3442 = vadd.f32 0.0, %v3441
  %3443 = vmatmul.bf16.gmra.mxu0 %v2986
  %v3444 = vpop.f32.mrf.mxu0
  %v3445 = vadd.f32 0.0, %v3444
  %v3446 = vpop.f32.mrf.mxu0
  %v3447 = vadd.f32 0.0, %v3446
  %3448 = vmatmul.bf16.gmra.mxu0 %v2989
  %v3449 = vpop.f32.mrf.mxu0
  %v3450 = vadd.f32 0.0, %v3449
  %v3451 = vpop.f32.mrf.mxu0
  %v3452 = vadd.f32 0.0, %v3451
  %3453 = vmatmul.bf16.gmra.mxu0 %v2992
  %v3454 = vpop.f32.mrf.mxu0
  %v3455 = vadd.f32 0.0, %v3454
  %v3456 = vpop.f32.mrf.mxu0
  %v3457 = vadd.f32 0.0, %v3456
  %3458 = vmatmul.bf16.gmra.mxu0 %v2995
  %v3459 = vpop.f32.mrf.mxu0
  %v3460 = vadd.f32 0.0, %v3459
  %v3461 = vpop.f32.mrf.mxu0
  %v3462 = vadd.f32 0.0, %v3461
  %3463 = vmatmul.bf16.gmra.mxu0 %v2998
  %v3464 = vpop.f32.mrf.mxu0
  %v3465 = vadd.f32 0.0, %v3464
  %v3466 = vpop.f32.mrf.mxu0
  %v3467 = vadd.f32 0.0, %v3466
  %3468 = vmatmul.bf16.gmra.mxu0 %v3001
  %v3469 = vpop.f32.mrf.mxu0
  %v3470 = vadd.f32 0.0, %v3469
  %v3471 = vpop.f32.mrf.mxu0
  %v3472 = vadd.f32 0.0, %v3471
  %3473 = vmatmul.bf16.gmra.mxu0 %v3004
  %v3474 = vpop.f32.mrf.mxu0
  %v3475 = vadd.f32 0.0, %v3474
  %v3476 = vpop.f32.mrf.mxu0
  %v3477 = vadd.f32 0.0, %v3476
  %3478 = vmatmul.bf16.gmra.mxu0 %v3007
  %v3479 = vpop.f32.mrf.mxu0
  %v3480 = vadd.f32 0.0, %v3479
  %v3481 = vpop.f32.mrf.mxu0
  %v3482 = vadd.f32 0.0, %v3481
  %3483 = vmatmul.bf16.gmra.mxu0 %v3010
  %v3484 = vpop.f32.mrf.mxu0
  %v3485 = vadd.f32 0.0, %v3484
  %v3486 = vpop.f32.mrf.mxu0
  %v3487 = vadd.f32 0.0, %v3486
  %3488 = vmatmul.bf16.gmra.mxu0 %v3013
  %v3489 = vpop.f32.mrf.mxu0
  %v3490 = vadd.f32 0.0, %v3489
  %v3491 = vpop.f32.mrf.mxu0
  %v3492 = vadd.f32 0.0, %v3491
  %3493 = vmatmul.bf16.gmra.mxu0 %v3016
  %v3494 = vpop.f32.mrf.mxu0
  %v3495 = vadd.f32 0.0, %v3494
  %v3496 = vpop.f32.mrf.mxu0
  %v3497 = vadd.f32 0.0, %v3496
  %3498 = vmatmul.bf16.gmra.mxu0 %v3019
  %v3499 = vpop.f32.mrf.mxu0
  %v3500 = vadd.f32 0.0, %v3499
  %v3501 = vpop.f32.mrf.mxu0
  %v3502 = vadd.f32 0.0, %v3501
  %3503 = vmatmul.bf16.gmra.mxu0 %v3022
  %v3504 = vpop.f32.mrf.mxu0
  %v3505 = vadd.f32 0.0, %v3504
  %v3506 = vpop.f32.mrf.mxu0
  %v3507 = vadd.f32 0.0, %v3506
  %3508 = vmatmul.bf16.gmra.mxu0 %v3025
  %v3509 = vpop.f32.mrf.mxu0
  %v3510 = vadd.f32 0.0, %v3509
  %v3511 = vpop.f32.mrf.mxu0
  %v3512 = vadd.f32 0.0, %v3511
  %3513 = vmatmul.bf16.gmra.mxu0 %v3028
  %v3514 = vpop.f32.mrf.mxu0
  %v3515 = vadd.f32 0.0, %v3514
  %v3516 = vpop.f32.mrf.mxu0
  %v3517 = vadd.f32 0.0, %v3516
  %3518 = vmatmul.bf16.gmra.mxu0 %v3031
  %v3519 = vpop.f32.mrf.mxu0
  %v3520 = vadd.f32 0.0, %v3519
  %v3521 = vpop.f32.mrf.mxu0
  %v3522 = vadd.f32 0.0, %v3521
  %3523 = vmatmul.bf16.gmra.mxu0 %v3034
  %v3524 = vpop.f32.mrf.mxu0
  %v3525 = vadd.f32 0.0, %v3524
  %v3526 = vpop.f32.mrf.mxu0
  %v3527 = vadd.f32 0.0, %v3526
  %3528 = vmatmul.bf16.gmra.mxu0 %v3037
  %v3529 = vpop.f32.mrf.mxu0
  %v3530 = vadd.f32 0.0, %v3529
  %v3531 = vpop.f32.mrf.mxu0
  %v3532 = vadd.f32 0.0, %v3531
  %3533 = vmatmul.bf16.gmra.mxu0 %v3040
  %v3534 = vpop.f32.mrf.mxu0
  %v3535 = vadd.f32 0.0, %v3534
  %v3536 = vpop.f32.mrf.mxu0
  %v3537 = vadd.f32 0.0, %v3536
  %3538 = vmatmul.bf16.gmra.mxu0 %v3043
  %v3539 = vpop.f32.mrf.mxu0
  %v3540 = vadd.f32 0.0, %v3539
  %v3541 = vpop.f32.mrf.mxu0
  %v3542 = vadd.f32 0.0, %v3541
  %3543 = vmatmul.bf16.gmra.mxu0 %v3046
  %v3544 = vpop.f32.mrf.mxu0
  %v3545 = vadd.f32 0.0, %v3544
  %v3546 = vpop.f32.mrf.mxu0
  %v3547 = vadd.f32 0.0, %v3546
  %3548 = vmatmul.bf16.gmra.mxu0 %v3049
  %v3549 = vpop.f32.mrf.mxu0
  %v3550 = vadd.f32 0.0, %v3549
  %v3551 = vpop.f32.mrf.mxu0
  %v3552 = vadd.f32 0.0, %v3551
  %3553 = vmatmul.bf16.gmra.mxu0 %v3052
  %v3554 = vpop.f32.mrf.mxu0
  %v3555 = vadd.f32 0.0, %v3554
  %v3556 = vpop.f32.mrf.mxu0
  %v3557 = vadd.f32 0.0, %v3556
  %3558 = vmatmul.bf16.gmra.mxu0 %v3055
  %v3559 = vpop.f32.mrf.mxu0
  %v3560 = vadd.f32 0.0, %v3559
  %v3561 = vpop.f32.mrf.mxu0
  %v3562 = vadd.f32 0.0, %v3561
  %3563 = vmatmul.bf16.gmra.mxu0 %v3058
  %v3564 = vpop.f32.mrf.mxu0
  %v3565 = vadd.f32 0.0, %v3564
  %v3566 = vpop.f32.mrf.mxu0
  %v3567 = vadd.f32 0.0, %v3566
  %3568 = vmatmul.bf16.gmra.mxu0 %v3061
  %v3569 = vpop.f32.mrf.mxu0
  %v3570 = vadd.f32 0.0, %v3569
  %v3571 = vpop.f32.mrf.mxu0
  %v3572 = vadd.f32 0.0, %v3571
  %3573 = vmatmul.bf16.gmra.mxu0 %v3064
  %v3574 = vpop.f32.mrf.mxu0
  %v3575 = vadd.f32 0.0, %v3574
  %v3576 = vpop.f32.mrf.mxu0
  %v3577 = vadd.f32 0.0, %v3576
  %3578 = vmatmul.bf16.gmra.mxu0 %v3067
  %v3579 = vpop.f32.mrf.mxu0
  %v3580 = vadd.f32 0.0, %v3579
  %v3581 = vpop.f32.mrf.mxu0
  %v3582 = vadd.f32 0.0, %v3581
  %3583 = vmatmul.bf16.gmra.mxu0 %v3070
  %v3584 = vpop.f32.mrf.mxu0
  %v3585 = vadd.f32 0.0, %v3584
  %v3586 = vpop.f32.mrf.mxu0
  %v3587 = vadd.f32 0.0, %v3586
  %3588 = vmatmul.bf16.gmra.mxu0 %v3073
  %v3589 = vpop.f32.mrf.mxu0
  %v3590 = vadd.f32 0.0, %v3589
  %v3591 = vpop.f32.mrf.mxu0
  %v3592 = vadd.f32 0.0, %v3591
  %3593 = vmatmul.bf16.gmra.mxu0 %v3076
  %v3594 = vpop.f32.mrf.mxu0
  %v3595 = vadd.f32 0.0, %v3594
  %v3596 = vpop.f32.mrf.mxu0
  %v3597 = vadd.f32 0.0, %v3596
  %3598 = vmatmul.bf16.gmra.mxu0 %v3079
  %v3599 = vpop.f32.mrf.mxu0
  %v3600 = vadd.f32 0.0, %v3599
  %v3601 = vpop.f32.mrf.mxu0
  %v3602 = vadd.f32 0.0, %v3601
  %3603 = vmatmul.bf16.gmra.mxu0 %v3082
  %v3604 = vpop.f32.mrf.mxu0
  %v3605 = vadd.f32 0.0, %v3604
  %v3606 = vpop.f32.mrf.mxu0
  %v3607 = vadd.f32 0.0, %v3606
  %3608 = vmatmul.bf16.gmra.mxu0 %v3085
  %v3609 = vpop.f32.mrf.mxu0
  %v3610 = vadd.f32 0.0, %v3609
  %v3611 = vpop.f32.mrf.mxu0
  %v3612 = vadd.f32 0.0, %v3611
  %3613 = vmatmul.bf16.gmra.mxu0 %v3088
  %v3614 = vpop.f32.mrf.mxu0
  %v3615 = vadd.f32 0.0, %v3614
  %v3616 = vpop.f32.mrf.mxu0
  %v3617 = vadd.f32 0.0, %v3616
  %3618 = vmatmul.bf16.gmra.mxu0 %v3091
  %v3619 = vpop.f32.mrf.mxu0
  %v3620 = vadd.f32 0.0, %v3619
  %v3621 = vpop.f32.mrf.mxu0
  %v3622 = vadd.f32 0.0, %v3621
  %3623 = vmatmul.bf16.gmra.mxu0 %v3094
  %v3624 = vpop.f32.mrf.mxu0
  %v3625 = vadd.f32 0.0, %v3624
  %v3626 = vpop.f32.mrf.mxu0
  %v3627 = vadd.f32 0.0, %v3626
  %3628 = vmatmul.bf16.gmra.mxu0 %v3097
  %v3629 = vpop.f32.mrf.mxu0
  %v3630 = vadd.f32 0.0, %v3629
  %v3631 = vpop.f32.mrf.mxu0
  %v3632 = vadd.f32 0.0, %v3631
  %3633 = vmatmul.bf16.gmra.mxu0 %v3100
  %v3634 = vpop.f32.mrf.mxu0
  %v3635 = vadd.f32 0.0, %v3634
  %v3636 = vpop.f32.mrf.mxu0
  %v3637 = vadd.f32 0.0, %v3636
  %3638 = vmatmul.bf16.gmra.mxu0 %v3103
  %v3639 = vpop.f32.mrf.mxu0
  %v3640 = vadd.f32 0.0, %v3639
  %v3641 = vpop.f32.mrf.mxu0
  %v3642 = vadd.f32 0.0, %v3641
  %3643 = vmatmul.bf16.gmra.mxu0 %v3106
  %v3644 = vpop.f32.mrf.mxu0
  %v3645 = vadd.f32 0.0, %v3644
  %v3646 = vpop.f32.mrf.mxu0
  %v3647 = vadd.f32 0.0, %v3646
  %3648 = vmatmul.bf16.gmra.mxu0 %v3109
  %v3649 = vpop.f32.mrf.mxu0
  %v3650 = vadd.f32 0.0, %v3649
  %v3651 = vpop.f32.mrf.mxu0
  %v3652 = vadd.f32 0.0, %v3651
  %3653 = vmatmul.bf16.gmra.mxu0 %v3112
  %v3654 = vpop.f32.mrf.mxu0
  %v3655 = vadd.f32 0.0, %v3654
  %v3656 = vpop.f32.mrf.mxu0
  %v3657 = vadd.f32 0.0, %v3656
  %3658 = vmatmul.bf16.gmra.mxu0 %v3115
  %v3659 = vpop.f32.mrf.mxu0
  %v3660 = vadd.f32 0.0, %v3659
  %v3661 = vpop.f32.mrf.mxu0
  %v3662 = vadd.f32 0.0, %v3661
  %3663 = vmatmul.bf16.gmra.mxu0 %v3118
  %v3664 = vpop.f32.mrf.mxu0
  %v3665 = vadd.f32 0.0, %v3664
  %v3666 = vpop.f32.mrf.mxu0
  %v3667 = vadd.f32 0.0, %v3666
  %3668 = vmatmul.bf16.gmra.mxu0 %v3121
  %v3669 = vpop.f32.mrf.mxu0
  %v3670 = vadd.f32 0.0, %v3669
  %v3671 = vpop.f32.mrf.mxu0
  %v3672 = vadd.f32 0.0, %v3671
  %3673 = vmatmul.bf16.gmra.mxu0 %v3124
  %v3674 = vpop.f32.mrf.mxu0
  %v3675 = vadd.f32 0.0, %v3674
  %v3676 = vpop.f32.mrf.mxu0
  %v3677 = vadd.f32 0.0, %v3676
  %3678 = vmatmul.bf16.gmra.mxu0 %v3127
  %v3679 = vpop.f32.mrf.mxu0
  %v3680 = vadd.f32 0.0, %v3679
  %v3681 = vpop.f32.mrf.mxu0
  %v3682 = vadd.f32 0.0, %v3681
  %3683 = vmatmul.bf16.gmra.mxu0 %v3130
  %v3684 = vpop.f32.mrf.mxu0
  %v3685 = vadd.f32 0.0, %v3684
  %v3686 = vpop.f32.mrf.mxu0
  %v3687 = vadd.f32 0.0, %v3686
  %3688 = vmatmul.bf16.gmra.mxu0 %v3133
  %v3689 = vpop.f32.mrf.mxu0
  %v3690 = vadd.f32 0.0, %v3689
  %v3691 = vpop.f32.mrf.mxu0
  %v3692 = vadd.f32 0.0, %v3691
  %3693 = vmatmul.bf16.gmra.mxu0 %v3136
  %v3694 = vpop.f32.mrf.mxu0
  %v3695 = vadd.f32 0.0, %v3694
  %v3696 = vpop.f32.mrf.mxu0
  %v3697 = vadd.f32 0.0, %v3696
  %3698 = vmatmul.bf16.gmra.mxu0 %v3139
  %v3699 = vpop.f32.mrf.mxu0
  %v3700 = vadd.f32 0.0, %v3699
  %v3701 = vpop.f32.mrf.mxu0
  %v3702 = vadd.f32 0.0, %v3701
  %3703 = vmatmul.bf16.gmra.mxu0 %v3142
  %v3704 = vpop.f32.mrf.mxu0
  %v3705 = vadd.f32 0.0, %v3704
  %v3706 = vpop.f32.mrf.mxu0
  %v3707 = vadd.f32 0.0, %v3706
  %3708 = vmatmul.bf16.gmra.mxu0 %v3145
  %v3709 = vpop.f32.mrf.mxu0
  %v3710 = vadd.f32 0.0, %v3709
  %v3711 = vpop.f32.mrf.mxu0
  %v3712 = vadd.f32 0.0, %v3711
  %3713 = vmatmul.bf16.gmra.mxu0 %v3148
  %v3714 = vpop.f32.mrf.mxu0
  %v3715 = vadd.f32 0.0, %v3714
  %v3716 = vpop.f32.mrf.mxu0
  %v3717 = vadd.f32 0.0, %v3716
  %3718 = vmatmul.bf16.gmra.mxu0 %v3151
  %v3719 = vpop.f32.mrf.mxu0
  %v3720 = vadd.f32 0.0, %v3719
  %v3721 = vpop.f32.mrf.mxu0
  %v3722 = vadd.f32 0.0, %v3721
  %3723 = vmatmul.bf16.gmra.mxu0 %v3154
  %v3724 = vpop.f32.mrf.mxu0
  %v3725 = vadd.f32 0.0, %v3724
  %v3726 = vpop.f32.mrf.mxu0
  %v3727 = vadd.f32 0.0, %v3726
  %3728 = vmatmul.bf16.gmra.mxu0 %v3157
  %v3729 = vpop.f32.mrf.mxu0
  %v3730 = vadd.f32 0.0, %v3729
  %v3731 = vpop.f32.mrf.mxu0
  %v3732 = vadd.f32 0.0, %v3731
  %3733 = vmatmul.bf16.gmra.mxu0 %v3160
  %v3734 = vpop.f32.mrf.mxu0
  %v3735 = vadd.f32 0.0, %v3734
  %v3736 = vpop.f32.mrf.mxu0
  %v3737 = vadd.f32 0.0, %v3736
  %3738 = vmatmul.bf16.gmra.mxu0 %v3163
  %v3739 = vpop.f32.mrf.mxu0
  %v3740 = vadd.f32 0.0, %v3739
  %v3741 = vpop.f32.mrf.mxu0
  %v3742 = vadd.f32 0.0, %v3741
  %3743 = vmatmul.bf16.gmra.mxu0 %v3166
  %v3744 = vpop.f32.mrf.mxu0
  %v3745 = vadd.f32 0.0, %v3744
  %v3746 = vpop.f32.mrf.mxu0
  %v3747 = vadd.f32 0.0, %v3746
  %3748 = vmatmul.bf16.gmra.mxu0 %v3169
  %v3749 = vpop.f32.mrf.mxu0
  %v3750 = vadd.f32 0.0, %v3749
  %v3751 = vpop.f32.mrf.mxu0
  %v3752 = vadd.f32 0.0, %v3751
  %3753 = vmatmul.bf16.gmra.mxu0 %v3172
  %v3754 = vpop.f32.mrf.mxu0
  %v3755 = vadd.f32 0.0, %v3754
  %v3756 = vpop.f32.mrf.mxu0
  %v3757 = vadd.f32 0.0, %v3756
  %3758 = vmatmul.bf16.gmra.mxu0 %v3175
  %v3759 = vpop.f32.mrf.mxu0
  %v3760 = vadd.f32 0.0, %v3759
  %v3761 = vpop.f32.mrf.mxu0
  %v3762 = vadd.f32 0.0, %v3761
  %3763 = vmatmul.bf16.gmra.mxu0 %v3178
  %v3764 = vpop.f32.mrf.mxu0
  %v3765 = vadd.f32 0.0, %v3764
  %v3766 = vpop.f32.mrf.mxu0
  %v3767 = vadd.f32 0.0, %v3766
  %3768 = vmatmul.bf16.gmra.mxu0 %v3181
  %v3769 = vpop.f32.mrf.mxu0
  %v3770 = vadd.f32 0.0, %v3769
  %v3771 = vpop.f32.mrf.mxu0
  %v3772 = vadd.f32 0.0, %v3771
  %3773 = vmatmul.bf16.gmra.mxu0 %v3184
  %v3774 = vpop.f32.mrf.mxu0
  %v3775 = vadd.f32 0.0, %v3774
  %v3776 = vpop.f32.mrf.mxu0
  %v3777 = vadd.f32 0.0, %v3776
  %3778 = vmatmul.bf16.gmra.mxu0 %v3187
  %v3779 = vpop.f32.mrf.mxu0
  %v3780 = vadd.f32 0.0, %v3779
  %v3781 = vpop.f32.mrf.mxu0
  %v3782 = vadd.f32 0.0, %v3781
  %3783 = vmatmul.bf16.gmra.mxu0 %v3190
  %v3784 = vpop.f32.mrf.mxu0
  %v3785 = vadd.f32 0.0, %v3784
  %v3786 = vpop.f32.mrf.mxu0
  %v3787 = vadd.f32 0.0, %v3786
  %3788 = vmatmul.bf16.gmra.mxu0 %v3193
  %v3789 = vpop.f32.mrf.mxu0
  %v3790 = vadd.f32 0.0, %v3789
  %v3791 = vpop.f32.mrf.mxu0
  %v3792 = vadd.f32 0.0, %v3791
  %3793 = vmatmul.bf16.gmra.mxu0 %v3196
  %v3794 = vpop.f32.mrf.mxu0
  %v3795 = vadd.f32 0.0, %v3794
  %v3796 = vpop.f32.mrf.mxu0
  %v3797 = vadd.f32 0.0, %v3796
  %3798 = vmatmul.bf16.gmra.mxu0 %v3199
  %v3799 = vpop.f32.mrf.mxu0
  %v3800 = vadd.f32 0.0, %v3799
  %v3801 = vpop.f32.mrf.mxu0
  %v3802 = vadd.f32 0.0, %v3801
  %3803 = vmatmul.bf16.gmra.mxu0 %v3202
  %v3804 = vpop.f32.mrf.mxu0
  %v3805 = vadd.f32 0.0, %v3804
  %v3806 = vpop.f32.mrf.mxu0
  %v3807 = vadd.f32 0.0, %v3806
  %3808 = vmatmul.bf16.gmra.mxu0 %v3205
  %v3809 = vpop.f32.mrf.mxu0
  %v3810 = vadd.f32 0.0, %v3809
  %v3811 = vpop.f32.mrf.mxu0
  %v3812 = vadd.f32 0.0, %v3811
  %3813 = vmatmul.bf16.gmra.mxu0 %v3208
  %v3814 = vpop.f32.mrf.mxu0
  %v3815 = vadd.f32 0.0, %v3814
  %v3816 = vpop.f32.mrf.mxu0
  %v3817 = vadd.f32 0.0, %v3816
  %3818 = vmatmul.bf16.gmra.mxu0 %v3211
  %v3819 = vpop.f32.mrf.mxu0
  %v3820 = vadd.f32 0.0, %v3819
  %v3821 = vpop.f32.mrf.mxu0
  %v3822 = vadd.f32 0.0, %v3821
  %3823 = vmatmul.bf16.gmra.mxu0 %v3214
  %v3824 = vpop.f32.mrf.mxu0
  %v3825 = vadd.f32 0.0, %v3824
  %v3826 = vpop.f32.mrf.mxu0
  %v3827 = vadd.f32 0.0, %v3826
  %3828 = vmatmul.bf16.gmra.mxu0 %v3217
  %v3829 = vpop.f32.mrf.mxu0
  %v3830 = vadd.f32 0.0, %v3829
  %v3831 = vpop.f32.mrf.mxu0
  %v3832 = vadd.f32 0.0, %v3831
  %3833 = vmatmul.bf16.gmra.mxu0 %v3220
  %v3834 = vpop.f32.mrf.mxu0
  %v3835 = vadd.f32 0.0, %v3834
  %v3836 = vpop.f32.mrf.mxu0
  %v3837 = vadd.f32 0.0, %v3836
  %3838 = vmatmul.bf16.gmra.mxu0 %v3223
  %v3839 = vpop.f32.mrf.mxu0
  %v3840 = vadd.f32 0.0, %v3839
  %v3841 = vpop.f32.mrf.mxu0
  %v3842 = vadd.f32 0.0, %v3841
  %3843 = vmatmul.bf16.gmra.mxu0 %v3226
  %v3844 = vpop.f32.mrf.mxu0
  %v3845 = vadd.f32 0.0, %v3844
  %v3846 = vpop.f32.mrf.mxu0
  %v3847 = vadd.f32 0.0, %v3846
  %3848 = vmatmul.bf16.gmra.mxu0 %v3229
  %v3849 = vpop.f32.mrf.mxu0
  %v3850 = vadd.f32 0.0, %v3849
  %v3851 = vpop.f32.mrf.mxu0
  %v3852 = vadd.f32 0.0, %v3851
  %3853 = vmatmul.bf16.gmra.mxu0 %v3232
  %v3854 = vpop.f32.mrf.mxu0
  %v3855 = vadd.f32 0.0, %v3854
  %v3856 = vpop.f32.mrf.mxu0
  %v3857 = vadd.f32 0.0, %v3856
  %3858 = vmatmul.bf16.gmra.mxu0 %v3235
  %v3859 = vpop.f32.mrf.mxu0
  %v3860 = vadd.f32 0.0, %v3859
  %v3861 = vpop.f32.mrf.mxu0
  %v3862 = vadd.f32 0.0, %v3861
  %3863 = vmatmul.bf16.gmra.mxu0 %v3238
  %v3864 = vpop.f32.mrf.mxu0
  %v3865 = vadd.f32 0.0, %v3864
  %v3866 = vpop.f32.mrf.mxu0
  %v3867 = vadd.f32 0.0, %v3866
  %3868 = vmatmul.bf16.gmra.mxu0 %v3241
  %v3869 = vpop.f32.mrf.mxu0
  %v3870 = vadd.f32 0.0, %v3869
  %v3871 = vpop.f32.mrf.mxu0
  %v3872 = vadd.f32 0.0, %v3871
  %3873 = vmatmul.bf16.gmra.mxu0 %v3244
  %v3874 = vpop.f32.mrf.mxu0
  %v3875 = vadd.f32 0.0, %v3874
  %v3876 = vpop.f32.mrf.mxu0
  %v3877 = vadd.f32 0.0, %v3876
  %3878 = vmatmul.bf16.gmra.mxu0 %v3247
  %v3879 = vpop.f32.mrf.mxu0
  %v3880 = vadd.f32 0.0, %v3879
  %v3881 = vpop.f32.mrf.mxu0
  %v3882 = vadd.f32 0.0, %v3881
  %3883 = vmatmul.bf16.gmra.mxu0 %v3250
  %v3884 = vpop.f32.mrf.mxu0
  %v3885 = vadd.f32 0.0, %v3884
  %v3886 = vpop.f32.mrf.mxu0
  %v3887 = vadd.f32 0.0, %v3886
  %3888 = vmatmul.bf16.gmra.mxu0 %v3253
  %v3889 = vpop.f32.mrf.mxu0
  %v3890 = vadd.f32 0.0, %v3889
  %v3891 = vpop.f32.mrf.mxu0
  %v3892 = vadd.f32 0.0, %v3891
  %3893 = vmatmul.bf16.gmra.mxu0 %v3256
  %v3894 = vpop.f32.mrf.mxu0
  %v3895 = vadd.f32 0.0, %v3894
  %v3896 = vpop.f32.mrf.mxu0
  %v3897 = vadd.f32 0.0, %v3896
  %3898 = vmatmul.bf16.gmra.mxu0 %v3259
  %v3899 = vpop.f32.mrf.mxu0
  %v3900 = vadd.f32 0.0, %v3899
  %v3901 = vpop.f32.mrf.mxu0
  %v3902 = vadd.f32 0.0, %v3901
  %3903 = vmatmul.bf16.gmra.mxu0 %v3262
  %v3904 = vpop.f32.mrf.mxu0
  %v3905 = vadd.f32 0.0, %v3904
  %v3906 = vpop.f32.mrf.mxu0
  %v3907 = vadd.f32 0.0, %v3906
  %3908 = vmatmul.bf16.gmra.mxu0 %v3265
  %v3909 = vpop.f32.mrf.mxu0
  %v3910 = vadd.f32 0.0, %v3909
  %v3911 = vpop.f32.mrf.mxu0
  %v3912 = vadd.f32 0.0, %v3911
  %3913 = vmatmul.bf16.gmra.mxu0 %v3268
  %v3914 = vpop.f32.mrf.mxu0
  %v3915 = vadd.f32 0.0, %v3914
  %v3916 = vpop.f32.mrf.mxu0
  %v3917 = vadd.f32 0.0, %v3916
  %3918 = vdwg.mxu0
  %v3919 = vld [vmem:[%s5] sm:$0x1]
  %v3921 = vperm.slane %v3919, 0
  %v3923 = vmul.f32 %v3280, %v3921
  %v3924 = vmul.f32 %v3282, %v3921
  %v3925 = vmul.f32 %v3285, %v3921
  %v3926 = vmul.f32 %v3287, %v3921
  %v3927 = vmul.f32 %v3290, %v3921
  %v3928 = vmul.f32 %v3292, %v3921
  %v3929 = vmul.f32 %v3295, %v3921
  %v3930 = vmul.f32 %v3297, %v3921
  %v3931 = vmul.f32 %v3300, %v3921
  %v3932 = vmul.f32 %v3302, %v3921
  %v3933 = vmul.f32 %v3305, %v3921
  %v3934 = vmul.f32 %v3307, %v3921
  %v3935 = vmul.f32 %v3310, %v3921
  %v3936 = vmul.f32 %v3312, %v3921
  %v3937 = vmul.f32 %v3315, %v3921
  %v3938 = vmul.f32 %v3317, %v3921
  %v3939 = vmul.f32 %v3320, %v3921
  %v3940 = vmul.f32 %v3322, %v3921
  %v3941 = vmul.f32 %v3325, %v3921
  %v3942 = vmul.f32 %v3327, %v3921
  %v3943 = vmul.f32 %v3330, %v3921
  %v3944 = vmul.f32 %v3332, %v3921
  %v3945 = vmul.f32 %v3335, %v3921
  %v3946 = vmul.f32 %v3337, %v3921
  %v3947 = vmul.f32 %v3340, %v3921
  %v3948 = vmul.f32 %v3342, %v3921
  %v3949 = vmul.f32 %v3345, %v3921
  %v3950 = vmul.f32 %v3347, %v3921
  %v3951 = vmul.f32 %v3350, %v3921
  %v3952 = vmul.f32 %v3352, %v3921
  %v3953 = vmul.f32 %v3355, %v3921
  %v3954 = vmul.f32 %v3357, %v3921
  %v3955 = vmul.f32 %v3360, %v3921
  %v3956 = vmul.f32 %v3362, %v3921
  %v3957 = vmul.f32 %v3365, %v3921
  %v3958 = vmul.f32 %v3367, %v3921
  %v3959 = vmul.f32 %v3370, %v3921
  %v3960 = vmul.f32 %v3372, %v3921
  %v3961 = vmul.f32 %v3375, %v3921
  %v3962 = vmul.f32 %v3377, %v3921
  %v3963 = vmul.f32 %v3380, %v3921
  %v3964 = vmul.f32 %v3382, %v3921
  %v3965 = vmul.f32 %v3385, %v3921
  %v3966 = vmul.f32 %v3387, %v3921
  %v3967 = vmul.f32 %v3390, %v3921
  %v3968 = vmul.f32 %v3392, %v3921
  %v3969 = vmul.f32 %v3395, %v3921
  %v3970 = vmul.f32 %v3397, %v3921
  %v3971 = vmul.f32 %v3400, %v3921
  %v3972 = vmul.f32 %v3402, %v3921
  %v3973 = vmul.f32 %v3405, %v3921
  %v3974 = vmul.f32 %v3407, %v3921
  %v3975 = vmul.f32 %v3410, %v3921
  %v3976 = vmul.f32 %v3412, %v3921
  %v3977 = vmul.f32 %v3415, %v3921
  %v3978 = vmul.f32 %v3417, %v3921
  %v3979 = vmul.f32 %v3420, %v3921
  %v3980 = vmul.f32 %v3422, %v3921
  %v3981 = vmul.f32 %v3425, %v3921
  %v3982 = vmul.f32 %v3427, %v3921
  %v3983 = vmul.f32 %v3430, %v3921
  %v3984 = vmul.f32 %v3432, %v3921
  %v3985 = vmul.f32 %v3435, %v3921
  %v3986 = vmul.f32 %v3437, %v3921
  %v3987 = vmul.f32 %v3440, %v3921
  %v3988 = vmul.f32 %v3442, %v3921
  %v3989 = vmul.f32 %v3445, %v3921
  %v3990 = vmul.f32 %v3447, %v3921
  %v3991 = vmul.f32 %v3450, %v3921
  %v3992 = vmul.f32 %v3452, %v3921
  %v3993 = vmul.f32 %v3455, %v3921
  %v3994 = vmul.f32 %v3457, %v3921
  %v3995 = vmul.f32 %v3460, %v3921
  %v3996 = vmul.f32 %v3462, %v3921
  %v3997 = vmul.f32 %v3465, %v3921
  %v3998 = vmul.f32 %v3467, %v3921
  %v3999 = vmul.f32 %v3470, %v3921
  %v4000 = vmul.f32 %v3472, %v3921
  %v4001 = vmul.f32 %v3475, %v3921
  %v4002 = vmul.f32 %v3477, %v3921
  %v4003 = vmul.f32 %v3480, %v3921
  %v4004 = vmul.f32 %v3482, %v3921
  %v4005 = vmul.f32 %v3485, %v3921
  %v4006 = vmul.f32 %v3487, %v3921
  %v4007 = vmul.f32 %v3490, %v3921
  %v4008 = vmul.f32 %v3492, %v3921
  %v4009 = vmul.f32 %v3495, %v3921
  %v4010 = vmul.f32 %v3497, %v3921
  %v4011 = vmul.f32 %v3500, %v3921
  %v4012 = vmul.f32 %v3502, %v3921
  %v4013 = vmul.f32 %v3505, %v3921
  %v4014 = vmul.f32 %v3507, %v3921
  %v4015 = vmul.f32 %v3510, %v3921
  %v4016 = vmul.f32 %v3512, %v3921
  %v4017 = vmul.f32 %v3515, %v3921
  %v4018 = vmul.f32 %v3517, %v3921
  %v4019 = vmul.f32 %v3520, %v3921
  %v4020 = vmul.f32 %v3522, %v3921
  %v4021 = vmul.f32 %v3525, %v3921
  %v4022 = vmul.f32 %v3527, %v3921
  %v4023 = vmul.f32 %v3530, %v3921
  %v4024 = vmul.f32 %v3532, %v3921
  %v4025 = vmul.f32 %v3535, %v3921
  %v4026 = vmul.f32 %v3537, %v3921
  %v4027 = vmul.f32 %v3540, %v3921
  %v4028 = vmul.f32 %v3542, %v3921
  %v4029 = vmul.f32 %v3545, %v3921
  %v4030 = vmul.f32 %v3547, %v3921
  %v4031 = vmul.f32 %v3550, %v3921
  %v4032 = vmul.f32 %v3552, %v3921
  %v4033 = vmul.f32 %v3555, %v3921
  %v4034 = vmul.f32 %v3557, %v3921
  %v4035 = vmul.f32 %v3560, %v3921
  %v4036 = vmul.f32 %v3562, %v3921
  %v4037 = vmul.f32 %v3565, %v3921
  %v4038 = vmul.f32 %v3567, %v3921
  %v4039 = vmul.f32 %v3570, %v3921
  %v4040 = vmul.f32 %v3572, %v3921
  %v4041 = vmul.f32 %v3575, %v3921
  %v4042 = vmul.f32 %v3577, %v3921
  %v4043 = vmul.f32 %v3580, %v3921
  %v4044 = vmul.f32 %v3582, %v3921
  %v4045 = vmul.f32 %v3585, %v3921
  %v4046 = vmul.f32 %v3587, %v3921
  %v4047 = vmul.f32 %v3590, %v3921
  %v4048 = vmul.f32 %v3592, %v3921
  %v4049 = vmul.f32 %v3595, %v3921
  %v4050 = vmul.f32 %v3597, %v3921
  %v4051 = vmul.f32 %v3600, %v3921
  %v4052 = vmul.f32 %v3602, %v3921
  %v4053 = vmul.f32 %v3605, %v3921
  %v4054 = vmul.f32 %v3607, %v3921
  %v4055 = vmul.f32 %v3610, %v3921
  %v4056 = vmul.f32 %v3612, %v3921
  %v4057 = vmul.f32 %v3615, %v3921
  %v4058 = vmul.f32 %v3617, %v3921
  %v4059 = vmul.f32 %v3620, %v3921
  %v4060 = vmul.f32 %v3622, %v3921
  %v4061 = vmul.f32 %v3625, %v3921
  %v4062 = vmul.f32 %v3627, %v3921
  %v4063 = vmul.f32 %v3630, %v3921
  %v4064 = vmul.f32 %v3632, %v3921
  %v4065 = vmul.f32 %v3635, %v3921
  %v4066 = vmul.f32 %v3637, %v3921
  %v4067 = vmul.f32 %v3640, %v3921
  %v4068 = vmul.f32 %v3642, %v3921
  %v4069 = vmul.f32 %v3645, %v3921
  %v4070 = vmul.f32 %v3647, %v3921
  %v4071 = vmul.f32 %v3650, %v3921
  %v4072 = vmul.f32 %v3652, %v3921
  %v4073 = vmul.f32 %v3655, %v3921
  %v4074 = vmul.f32 %v3657, %v3921
  %v4075 = vmul.f32 %v3660, %v3921
  %v4076 = vmul.f32 %v3662, %v3921
  %v4077 = vmul.f32 %v3665, %v3921
  %v4078 = vmul.f32 %v3667, %v3921
  %v4079 = vmul.f32 %v3670, %v3921
  %v4080 = vmul.f32 %v3672, %v3921
  %v4081 = vmul.f32 %v3675, %v3921
  %v4082 = vmul.f32 %v3677, %v3921
  %v4083 = vmul.f32 %v3680, %v3921
  %v4084 = vmul.f32 %v3682, %v3921
  %v4085 = vmul.f32 %v3685, %v3921
  %v4086 = vmul.f32 %v3687, %v3921
  %v4087 = vmul.f32 %v3690, %v3921
  %v4088 = vmul.f32 %v3692, %v3921
  %v4089 = vmul.f32 %v3695, %v3921
  %v4090 = vmul.f32 %v3697, %v3921
  %v4091 = vmul.f32 %v3700, %v3921
  %v4092 = vmul.f32 %v3702, %v3921
  %v4093 = vmul.f32 %v3705, %v3921
  %v4094 = vmul.f32 %v3707, %v3921
  %v4095 = vmul.f32 %v3710, %v3921
  %v4096 = vmul.f32 %v3712, %v3921
  %v4097 = vmul.f32 %v3715, %v3921
  %v4098 = vmul.f32 %v3717, %v3921
  %v4099 = vmul.f32 %v3720, %v3921
  %v4100 = vmul.f32 %v3722, %v3921
  %v4101 = vmul.f32 %v3725, %v3921
  %v4102 = vmul.f32 %v3727, %v3921
  %v4103 = vmul.f32 %v3730, %v3921
  %v4104 = vmul.f32 %v3732, %v3921
  %v4105 = vmul.f32 %v3735, %v3921
  %v4106 = vmul.f32 %v3737, %v3921
  %v4107 = vmul.f32 %v3740, %v3921
  %v4108 = vmul.f32 %v3742, %v3921
  %v4109 = vmul.f32 %v3745, %v3921
  %v4110 = vmul.f32 %v3747, %v3921
  %v4111 = vmul.f32 %v3750, %v3921
  %v4112 = vmul.f32 %v3752, %v3921
  %v4113 = vmul.f32 %v3755, %v3921
  %v4114 = vmul.f32 %v3757, %v3921
  %v4115 = vmul.f32 %v3760, %v3921
  %v4116 = vmul.f32 %v3762, %v3921
  %v4117 = vmul.f32 %v3765, %v3921
  %v4118 = vmul.f32 %v3767, %v3921
  %v4119 = vmul.f32 %v3770, %v3921
  %v4120 = vmul.f32 %v3772, %v3921
  %v4121 = vmul.f32 %v3775, %v3921
  %v4122 = vmul.f32 %v3777, %v3921
  %v4123 = vmul.f32 %v3780, %v3921
  %v4124 = vmul.f32 %v3782, %v3921
  %v4125 = vmul.f32 %v3785, %v3921
  %v4126 = vmul.f32 %v3787, %v3921
  %v4127 = vmul.f32 %v3790, %v3921
  %v4128 = vmul.f32 %v3792, %v3921
  %v4129 = vmul.f32 %v3795, %v3921
  %v4130 = vmul.f32 %v3797, %v3921
  %v4131 = vmul.f32 %v3800, %v3921
  %v4132 = vmul.f32 %v3802, %v3921
  %v4133 = vmul.f32 %v3805, %v3921
  %v4134 = vmul.f32 %v3807, %v3921
  %v4135 = vmul.f32 %v3810, %v3921
  %v4136 = vmul.f32 %v3812, %v3921
  %v4137 = vmul.f32 %v3815, %v3921
  %v4138 = vmul.f32 %v3817, %v3921
  %v4139 = vmul.f32 %v3820, %v3921
  %v4140 = vmul.f32 %v3822, %v3921
  %v4141 = vmul.f32 %v3825, %v3921
  %v4142 = vmul.f32 %v3827, %v3921
  %v4143 = vmul.f32 %v3830, %v3921
  %v4144 = vmul.f32 %v3832, %v3921
  %v4145 = vmul.f32 %v3835, %v3921
  %v4146 = vmul.f32 %v3837, %v3921
  %v4147 = vmul.f32 %v3840, %v3921
  %v4148 = vmul.f32 %v3842, %v3921
  %v4149 = vmul.f32 %v3845, %v3921
  %v4150 = vmul.f32 %v3847, %v3921
  %v4151 = vmul.f32 %v3850, %v3921
  %v4152 = vmul.f32 %v3852, %v3921
  %v4153 = vmul.f32 %v3855, %v3921
  %v4154 = vmul.f32 %v3857, %v3921
  %v4155 = vmul.f32 %v3860, %v3921
  %v4156 = vmul.f32 %v3862, %v3921
  %v4157 = vmul.f32 %v3865, %v3921
  %v4158 = vmul.f32 %v3867, %v3921
  %v4159 = vmul.f32 %v3870, %v3921
  %v4160 = vmul.f32 %v3872, %v3921
  %v4161 = vmul.f32 %v3875, %v3921
  %v4162 = vmul.f32 %v3877, %v3921
  %v4163 = vmul.f32 %v3880, %v3921
  %v4164 = vmul.f32 %v3882, %v3921
  %v4165 = vmul.f32 %v3885, %v3921
  %v4166 = vmul.f32 %v3887, %v3921
  %v4167 = vmul.f32 %v3890, %v3921
  %v4168 = vmul.f32 %v3892, %v3921
  %v4169 = vmul.f32 %v3895, %v3921
  %v4170 = vmul.f32 %v3897, %v3921
  %v4171 = vmul.f32 %v3900, %v3921
  %v4172 = vmul.f32 %v3902, %v3921
  %v4173 = vmul.f32 %v3905, %v3921
  %v4174 = vmul.f32 %v3907, %v3921
  %v4175 = vmul.f32 %v3910, %v3921
  %v4176 = vmul.f32 %v3912, %v3921
  %v4177 = vmul.f32 %v3915, %v3921
  %v4178 = vmul.f32 %v3917, %v3921
  %v4179 = vld [vmem:[%s6] sm:$0x1]
  %v4181 = vperm.slane %v4179, 0
  %v4183 = vadd.f32 %v3923, %v4181
  %v4184 = vadd.f32 %v3924, %v4181
  %v4185 = vadd.f32 %v3925, %v4181
  %v4186 = vadd.f32 %v3926, %v4181
  %v4187 = vadd.f32 %v3927, %v4181
  %v4188 = vadd.f32 %v3928, %v4181
  %v4189 = vadd.f32 %v3929, %v4181
  %v4190 = vadd.f32 %v3930, %v4181
  %v4191 = vadd.f32 %v3931, %v4181
  %v4192 = vadd.f32 %v3932, %v4181
  %v4193 = vadd.f32 %v3933, %v4181
  %v4194 = vadd.f32 %v3934, %v4181
  %v4195 = vadd.f32 %v3935, %v4181
  %v4196 = vadd.f32 %v3936, %v4181
  %v4197 = vadd.f32 %v3937, %v4181
  %v4198 = vadd.f32 %v3938, %v4181
  %v4199 = vadd.f32 %v3939, %v4181
  %v4200 = vadd.f32 %v3940, %v4181
  %v4201 = vadd.f32 %v3941, %v4181
  %v4202 = vadd.f32 %v3942, %v4181
  %v4203 = vadd.f32 %v3943, %v4181
  %v4204 = vadd.f32 %v3944, %v4181
  %v4205 = vadd.f32 %v3945, %v4181
  %v4206 = vadd.f32 %v3946, %v4181
  %v4207 = vadd.f32 %v3947, %v4181
  %v4208 = vadd.f32 %v3948, %v4181
  %v4209 = vadd.f32 %v3949, %v4181
  %v4210 = vadd.f32 %v3950, %v4181
  %v4211 = vadd.f32 %v3951, %v4181
  %v4212 = vadd.f32 %v3952, %v4181
  %v4213 = vadd.f32 %v3953, %v4181
  %v4214 = vadd.f32 %v3954, %v4181
  %v4215 = vadd.f32 %v3955, %v4181
  %v4216 = vadd.f32 %v3956, %v4181
  %v4217 = vadd.f32 %v3957, %v4181
  %v4218 = vadd.f32 %v3958, %v4181
  %v4219 = vadd.f32 %v3959, %v4181
  %v4220 = vadd.f32 %v3960, %v4181
  %v4221 = vadd.f32 %v3961, %v4181
  %v4222 = vadd.f32 %v3962, %v4181
  %v4223 = vadd.f32 %v3963, %v4181
  %v4224 = vadd.f32 %v3964, %v4181
  %v4225 = vadd.f32 %v3965, %v4181
  %v4226 = vadd.f32 %v3966, %v4181
  %v4227 = vadd.f32 %v3967, %v4181
  %v4228 = vadd.f32 %v3968, %v4181
  %v4229 = vadd.f32 %v3969, %v4181
  %v4230 = vadd.f32 %v3970, %v4181
  %v4231 = vadd.f32 %v3971, %v4181
  %v4232 = vadd.f32 %v3972, %v4181
  %v4233 = vadd.f32 %v3973, %v4181
  %v4234 = vadd.f32 %v3974, %v4181
  %v4235 = vadd.f32 %v3975, %v4181
  %v4236 = vadd.f32 %v3976, %v4181
  %v4237 = vadd.f32 %v3977, %v4181
  %v4238 = vadd.f32 %v3978, %v4181
  %v4239 = vadd.f32 %v3979, %v4181
  %v4240 = vadd.f32 %v3980, %v4181
  %v4241 = vadd.f32 %v3981, %v4181
  %v4242 = vadd.f32 %v3982, %v4181
  %v4243 = vadd.f32 %v3983, %v4181
  %v4244 = vadd.f32 %v3984, %v4181
  %v4245 = vadd.f32 %v3985, %v4181
  %v4246 = vadd.f32 %v3986, %v4181
  %v4247 = vadd.f32 %v3987, %v4181
  %v4248 = vadd.f32 %v3988, %v4181
  %v4249 = vadd.f32 %v3989, %v4181
  %v4250 = vadd.f32 %v3990, %v4181
  %v4251 = vadd.f32 %v3991, %v4181
  %v4252 = vadd.f32 %v3992, %v4181
  %v4253 = vadd.f32 %v3993, %v4181
  %v4254 = vadd.f32 %v3994, %v4181
  %v4255 = vadd.f32 %v3995, %v4181
  %v4256 = vadd.f32 %v3996, %v4181
  %v4257 = vadd.f32 %v3997, %v4181
  %v4258 = vadd.f32 %v3998, %v4181
  %v4259 = vadd.f32 %v3999, %v4181
  %v4260 = vadd.f32 %v4000, %v4181
  %v4261 = vadd.f32 %v4001, %v4181
  %v4262 = vadd.f32 %v4002, %v4181
  %v4263 = vadd.f32 %v4003, %v4181
  %v4264 = vadd.f32 %v4004, %v4181
  %v4265 = vadd.f32 %v4005, %v4181
  %v4266 = vadd.f32 %v4006, %v4181
  %v4267 = vadd.f32 %v4007, %v4181
  %v4268 = vadd.f32 %v4008, %v4181
  %v4269 = vadd.f32 %v4009, %v4181
  %v4270 = vadd.f32 %v4010, %v4181
  %v4271 = vadd.f32 %v4011, %v4181
  %v4272 = vadd.f32 %v4012, %v4181
  %v4273 = vadd.f32 %v4013, %v4181
  %v4274 = vadd.f32 %v4014, %v4181
  %v4275 = vadd.f32 %v4015, %v4181
  %v4276 = vadd.f32 %v4016, %v4181
  %v4277 = vadd.f32 %v4017, %v4181
  %v4278 = vadd.f32 %v4018, %v4181
  %v4279 = vadd.f32 %v4019, %v4181
  %v4280 = vadd.f32 %v4020, %v4181
  %v4281 = vadd.f32 %v4021, %v4181
  %v4282 = vadd.f32 %v4022, %v4181
  %v4283 = vadd.f32 %v4023, %v4181
  %v4284 = vadd.f32 %v4024, %v4181
  %v4285 = vadd.f32 %v4025, %v4181
  %v4286 = vadd.f32 %v4026, %v4181
  %v4287 = vadd.f32 %v4027, %v4181
  %v4288 = vadd.f32 %v4028, %v4181
  %v4289 = vadd.f32 %v4029, %v4181
  %v4290 = vadd.f32 %v4030, %v4181
  %v4291 = vadd.f32 %v4031, %v4181
  %v4292 = vadd.f32 %v4032, %v4181
  %v4293 = vadd.f32 %v4033, %v4181
  %v4294 = vadd.f32 %v4034, %v4181
  %v4295 = vadd.f32 %v4035, %v4181
  %v4296 = vadd.f32 %v4036, %v4181
  %v4297 = vadd.f32 %v4037, %v4181
  %v4298 = vadd.f32 %v4038, %v4181
  %v4299 = vadd.f32 %v4039, %v4181
  %v4300 = vadd.f32 %v4040, %v4181
  %v4301 = vadd.f32 %v4041, %v4181
  %v4302 = vadd.f32 %v4042, %v4181
  %v4303 = vadd.f32 %v4043, %v4181
  %v4304 = vadd.f32 %v4044, %v4181
  %v4305 = vadd.f32 %v4045, %v4181
  %v4306 = vadd.f32 %v4046, %v4181
  %v4307 = vadd.f32 %v4047, %v4181
  %v4308 = vadd.f32 %v4048, %v4181
  %v4309 = vadd.f32 %v4049, %v4181
  %v4310 = vadd.f32 %v4050, %v4181
  %v4311 = vadd.f32 %v4051, %v4181
  %v4312 = vadd.f32 %v4052, %v4181
  %v4313 = vadd.f32 %v4053, %v4181
  %v4314 = vadd.f32 %v4054, %v4181
  %v4315 = vadd.f32 %v4055, %v4181
  %v4316 = vadd.f32 %v4056, %v4181
  %v4317 = vadd.f32 %v4057, %v4181
  %v4318 = vadd.f32 %v4058, %v4181
  %v4319 = vadd.f32 %v4059, %v4181
  %v4320 = vadd.f32 %v4060, %v4181
  %v4321 = vadd.f32 %v4061, %v4181
  %v4322 = vadd.f32 %v4062, %v4181
  %v4323 = vadd.f32 %v4063, %v4181
  %v4324 = vadd.f32 %v4064, %v4181
  %v4325 = vadd.f32 %v4065, %v4181
  %v4326 = vadd.f32 %v4066, %v4181
  %v4327 = vadd.f32 %v4067, %v4181
  %v4328 = vadd.f32 %v4068, %v4181
  %v4329 = vadd.f32 %v4069, %v4181
  %v4330 = vadd.f32 %v4070, %v4181
  %v4331 = vadd.f32 %v4071, %v4181
  %v4332 = vadd.f32 %v4072, %v4181
  %v4333 = vadd.f32 %v4073, %v4181
  %v4334 = vadd.f32 %v4074, %v4181
  %v4335 = vadd.f32 %v4075, %v4181
  %v4336 = vadd.f32 %v4076, %v4181
  %v4337 = vadd.f32 %v4077, %v4181
  %v4338 = vadd.f32 %v4078, %v4181
  %v4339 = vadd.f32 %v4079, %v4181
  %v4340 = vadd.f32 %v4080, %v4181
  %v4341 = vadd.f32 %v4081, %v4181
  %v4342 = vadd.f32 %v4082, %v4181
  %v4343 = vadd.f32 %v4083, %v4181
  %v4344 = vadd.f32 %v4084, %v4181
  %v4345 = vadd.f32 %v4085, %v4181
  %v4346 = vadd.f32 %v4086, %v4181
  %v4347 = vadd.f32 %v4087, %v4181
  %v4348 = vadd.f32 %v4088, %v4181
  %v4349 = vadd.f32 %v4089, %v4181
  %v4350 = vadd.f32 %v4090, %v4181
  %v4351 = vadd.f32 %v4091, %v4181
  %v4352 = vadd.f32 %v4092, %v4181
  %v4353 = vadd.f32 %v4093, %v4181
  %v4354 = vadd.f32 %v4094, %v4181
  %v4355 = vadd.f32 %v4095, %v4181
  %v4356 = vadd.f32 %v4096, %v4181
  %v4357 = vadd.f32 %v4097, %v4181
  %v4358 = vadd.f32 %v4098, %v4181
  %v4359 = vadd.f32 %v4099, %v4181
  %v4360 = vadd.f32 %v4100, %v4181
  %v4361 = vadd.f32 %v4101, %v4181
  %v4362 = vadd.f32 %v4102, %v4181
  %v4363 = vadd.f32 %v4103, %v4181
  %v4364 = vadd.f32 %v4104, %v4181
  %v4365 = vadd.f32 %v4105, %v4181
  %v4366 = vadd.f32 %v4106, %v4181
  %v4367 = vadd.f32 %v4107, %v4181
  %v4368 = vadd.f32 %v4108, %v4181
  %v4369 = vadd.f32 %v4109, %v4181
  %v4370 = vadd.f32 %v4110, %v4181
  %v4371 = vadd.f32 %v4111, %v4181
  %v4372 = vadd.f32 %v4112, %v4181
  %v4373 = vadd.f32 %v4113, %v4181
  %v4374 = vadd.f32 %v4114, %v4181
  %v4375 = vadd.f32 %v4115, %v4181
  %v4376 = vadd.f32 %v4116, %v4181
  %v4377 = vadd.f32 %v4117, %v4181
  %v4378 = vadd.f32 %v4118, %v4181
  %v4379 = vadd.f32 %v4119, %v4181
  %v4380 = vadd.f32 %v4120, %v4181
  %v4381 = vadd.f32 %v4121, %v4181
  %v4382 = vadd.f32 %v4122, %v4181
  %v4383 = vadd.f32 %v4123, %v4181
  %v4384 = vadd.f32 %v4124, %v4181
  %v4385 = vadd.f32 %v4125, %v4181
  %v4386 = vadd.f32 %v4126, %v4181
  %v4387 = vadd.f32 %v4127, %v4181
  %v4388 = vadd.f32 %v4128, %v4181
  %v4389 = vadd.f32 %v4129, %v4181
  %v4390 = vadd.f32 %v4130, %v4181
  %v4391 = vadd.f32 %v4131, %v4181
  %v4392 = vadd.f32 %v4132, %v4181
  %v4393 = vadd.f32 %v4133, %v4181
  %v4394 = vadd.f32 %v4134, %v4181
  %v4395 = vadd.f32 %v4135, %v4181
  %v4396 = vadd.f32 %v4136, %v4181
  %v4397 = vadd.f32 %v4137, %v4181
  %v4398 = vadd.f32 %v4138, %v4181
  %v4399 = vadd.f32 %v4139, %v4181
  %v4400 = vadd.f32 %v4140, %v4181
  %v4401 = vadd.f32 %v4141, %v4181
  %v4402 = vadd.f32 %v4142, %v4181
  %v4403 = vadd.f32 %v4143, %v4181
  %v4404 = vadd.f32 %v4144, %v4181
  %v4405 = vadd.f32 %v4145, %v4181
  %v4406 = vadd.f32 %v4146, %v4181
  %v4407 = vadd.f32 %v4147, %v4181
  %v4408 = vadd.f32 %v4148, %v4181
  %v4409 = vadd.f32 %v4149, %v4181
  %v4410 = vadd.f32 %v4150, %v4181
  %v4411 = vadd.f32 %v4151, %v4181
  %v4412 = vadd.f32 %v4152, %v4181
  %v4413 = vadd.f32 %v4153, %v4181
  %v4414 = vadd.f32 %v4154, %v4181
  %v4415 = vadd.f32 %v4155, %v4181
  %v4416 = vadd.f32 %v4156, %v4181
  %v4417 = vadd.f32 %v4157, %v4181
  %v4418 = vadd.f32 %v4158, %v4181
  %v4419 = vadd.f32 %v4159, %v4181
  %v4420 = vadd.f32 %v4160, %v4181
  %v4421 = vadd.f32 %v4161, %v4181
  %v4422 = vadd.f32 %v4162, %v4181
  %v4423 = vadd.f32 %v4163, %v4181
  %v4424 = vadd.f32 %v4164, %v4181
  %v4425 = vadd.f32 %v4165, %v4181
  %v4426 = vadd.f32 %v4166, %v4181
  %v4427 = vadd.f32 %v4167, %v4181
  %v4428 = vadd.f32 %v4168, %v4181
  %v4429 = vadd.f32 %v4169, %v4181
  %v4430 = vadd.f32 %v4170, %v4181
  %v4431 = vadd.f32 %v4171, %v4181
  %v4432 = vadd.f32 %v4172, %v4181
  %v4433 = vadd.f32 %v4173, %v4181
  %v4434 = vadd.f32 %v4174, %v4181
  %v4435 = vadd.f32 %v4175, %v4181
  %v4436 = vadd.f32 %v4176, %v4181
  %v4437 = vadd.f32 %v4177, %v4181
  %v4438 = vadd.f32 %v4178, %v4181
  %v4439 = vmax.f32 %v4183, 0.0
  %v4440 = vmax.f32 %v4184, 0.0
  %v4441 = vmax.f32 %v4185, 0.0
  %v4442 = vmax.f32 %v4186, 0.0
  %v4443 = vmax.f32 %v4187, 0.0
  %v4444 = vmax.f32 %v4188, 0.0
  %v4445 = vmax.f32 %v4189, 0.0
  %v4446 = vmax.f32 %v4190, 0.0
  %v4447 = vmax.f32 %v4191, 0.0
  %v4448 = vmax.f32 %v4192, 0.0
  %v4449 = vmax.f32 %v4193, 0.0
  %v4450 = vmax.f32 %v4194, 0.0
  %v4451 = vmax.f32 %v4195, 0.0
  %v4452 = vmax.f32 %v4196, 0.0
  %v4453 = vmax.f32 %v4197, 0.0
  %v4454 = vmax.f32 %v4198, 0.0
  %v4455 = vmax.f32 %v4199, 0.0
  %v4456 = vmax.f32 %v4200, 0.0
  %v4457 = vmax.f32 %v4201, 0.0
  %v4458 = vmax.f32 %v4202, 0.0
  %v4459 = vmax.f32 %v4203, 0.0
  %v4460 = vmax.f32 %v4204, 0.0
  %v4461 = vmax.f32 %v4205, 0.0
  %v4462 = vmax.f32 %v4206, 0.0
  %v4463 = vmax.f32 %v4207, 0.0
  %v4464 = vmax.f32 %v4208, 0.0
  %v4465 = vmax.f32 %v4209, 0.0
  %v4466 = vmax.f32 %v4210, 0.0
  %v4467 = vmax.f32 %v4211, 0.0
  %v4468 = vmax.f32 %v4212, 0.0
  %v4469 = vmax.f32 %v4213, 0.0
  %v4470 = vmax.f32 %v4214, 0.0
  %v4471 = vmax.f32 %v4215, 0.0
  %v4472 = vmax.f32 %v4216, 0.0
  %v4473 = vmax.f32 %v4217, 0.0
  %v4474 = vmax.f32 %v4218, 0.0
  %v4475 = vmax.f32 %v4219, 0.0
  %v4476 = vmax.f32 %v4220, 0.0
  %v4477 = vmax.f32 %v4221, 0.0
  %v4478 = vmax.f32 %v4222, 0.0
  %v4479 = vmax.f32 %v4223, 0.0
  %v4480 = vmax.f32 %v4224, 0.0
  %v4481 = vmax.f32 %v4225, 0.0
  %v4482 = vmax.f32 %v4226, 0.0
  %v4483 = vmax.f32 %v4227, 0.0
  %v4484 = vmax.f32 %v4228, 0.0
  %v4485 = vmax.f32 %v4229, 0.0
  %v4486 = vmax.f32 %v4230, 0.0
  %v4487 = vmax.f32 %v4231, 0.0
  %v4488 = vmax.f32 %v4232, 0.0
  %v4489 = vmax.f32 %v4233, 0.0
  %v4490 = vmax.f32 %v4234, 0.0
  %v4491 = vmax.f32 %v4235, 0.0
  %v4492 = vmax.f32 %v4236, 0.0
  %v4493 = vmax.f32 %v4237, 0.0
  %v4494 = vmax.f32 %v4238, 0.0
  %v4495 = vmax.f32 %v4239, 0.0
  %v4496 = vmax.f32 %v4240, 0.0
  %v4497 = vmax.f32 %v4241, 0.0
  %v4498 = vmax.f32 %v4242, 0.0
  %v4499 = vmax.f32 %v4243, 0.0
  %v4500 = vmax.f32 %v4244, 0.0
  %v4501 = vmax.f32 %v4245, 0.0
  %v4502 = vmax.f32 %v4246, 0.0
  %v4503 = vmax.f32 %v4247, 0.0
  %v4504 = vmax.f32 %v4248, 0.0
  %v4505 = vmax.f32 %v4249, 0.0
  %v4506 = vmax.f32 %v4250, 0.0
  %v4507 = vmax.f32 %v4251, 0.0
  %v4508 = vmax.f32 %v4252, 0.0
  %v4509 = vmax.f32 %v4253, 0.0
  %v4510 = vmax.f32 %v4254, 0.0
  %v4511 = vmax.f32 %v4255, 0.0
  %v4512 = vmax.f32 %v4256, 0.0
  %v4513 = vmax.f32 %v4257, 0.0
  %v4514 = vmax.f32 %v4258, 0.0
  %v4515 = vmax.f32 %v4259, 0.0
  %v4516 = vmax.f32 %v4260, 0.0
  %v4517 = vmax.f32 %v4261, 0.0
  %v4518 = vmax.f32 %v4262, 0.0
  %v4519 = vmax.f32 %v4263, 0.0
  %v4520 = vmax.f32 %v4264, 0.0
  %v4521 = vmax.f32 %v4265, 0.0
  %v4522 = vmax.f32 %v4266, 0.0
  %v4523 = vmax.f32 %v4267, 0.0
  %v4524 = vmax.f32 %v4268, 0.0
  %v4525 = vmax.f32 %v4269, 0.0
  %v4526 = vmax.f32 %v4270, 0.0
  %v4527 = vmax.f32 %v4271, 0.0
  %v4528 = vmax.f32 %v4272, 0.0
  %v4529 = vmax.f32 %v4273, 0.0
  %v4530 = vmax.f32 %v4274, 0.0
  %v4531 = vmax.f32 %v4275, 0.0
  %v4532 = vmax.f32 %v4276, 0.0
  %v4533 = vmax.f32 %v4277, 0.0
  %v4534 = vmax.f32 %v4278, 0.0
  %v4535 = vmax.f32 %v4279, 0.0
  %v4536 = vmax.f32 %v4280, 0.0
  %v4537 = vmax.f32 %v4281, 0.0
  %v4538 = vmax.f32 %v4282, 0.0
  %v4539 = vmax.f32 %v4283, 0.0
  %v4540 = vmax.f32 %v4284, 0.0
  %v4541 = vmax.f32 %v4285, 0.0
  %v4542 = vmax.f32 %v4286, 0.0
  %v4543 = vmax.f32 %v4287, 0.0
  %v4544 = vmax.f32 %v4288, 0.0
  %v4545 = vmax.f32 %v4289, 0.0
  %v4546 = vmax.f32 %v4290, 0.0
  %v4547 = vmax.f32 %v4291, 0.0
  %v4548 = vmax.f32 %v4292, 0.0
  %v4549 = vmax.f32 %v4293, 0.0
  %v4550 = vmax.f32 %v4294, 0.0
  %v4551 = vmax.f32 %v4295, 0.0
  %v4552 = vmax.f32 %v4296, 0.0
  %v4553 = vmax.f32 %v4297, 0.0
  %v4554 = vmax.f32 %v4298, 0.0
  %v4555 = vmax.f32 %v4299, 0.0
  %v4556 = vmax.f32 %v4300, 0.0
  %v4557 = vmax.f32 %v4301, 0.0
  %v4558 = vmax.f32 %v4302, 0.0
  %v4559 = vmax.f32 %v4303, 0.0
  %v4560 = vmax.f32 %v4304, 0.0
  %v4561 = vmax.f32 %v4305, 0.0
  %v4562 = vmax.f32 %v4306, 0.0
  %v4563 = vmax.f32 %v4307, 0.0
  %v4564 = vmax.f32 %v4308, 0.0
  %v4565 = vmax.f32 %v4309, 0.0
  %v4566 = vmax.f32 %v4310, 0.0
  %v4567 = vmax.f32 %v4311, 0.0
  %v4568 = vmax.f32 %v4312, 0.0
  %v4569 = vmax.f32 %v4313, 0.0
  %v4570 = vmax.f32 %v4314, 0.0
  %v4571 = vmax.f32 %v4315, 0.0
  %v4572 = vmax.f32 %v4316, 0.0
  %v4573 = vmax.f32 %v4317, 0.0
  %v4574 = vmax.f32 %v4318, 0.0
  %v4575 = vmax.f32 %v4319, 0.0
  %v4576 = vmax.f32 %v4320, 0.0
  %v4577 = vmax.f32 %v4321, 0.0
  %v4578 = vmax.f32 %v4322, 0.0
  %v4579 = vmax.f32 %v4323, 0.0
  %v4580 = vmax.f32 %v4324, 0.0
  %v4581 = vmax.f32 %v4325, 0.0
  %v4582 = vmax.f32 %v4326, 0.0
  %v4583 = vmax.f32 %v4327, 0.0
  %v4584 = vmax.f32 %v4328, 0.0
  %v4585 = vmax.f32 %v4329, 0.0
  %v4586 = vmax.f32 %v4330, 0.0
  %v4587 = vmax.f32 %v4331, 0.0
  %v4588 = vmax.f32 %v4332, 0.0
  %v4589 = vmax.f32 %v4333, 0.0
  %v4590 = vmax.f32 %v4334, 0.0
  %v4591 = vmax.f32 %v4335, 0.0
  %v4592 = vmax.f32 %v4336, 0.0
  %v4593 = vmax.f32 %v4337, 0.0
  %v4594 = vmax.f32 %v4338, 0.0
  %v4595 = vmax.f32 %v4339, 0.0
  %v4596 = vmax.f32 %v4340, 0.0
  %v4597 = vmax.f32 %v4341, 0.0
  %v4598 = vmax.f32 %v4342, 0.0
  %v4599 = vmax.f32 %v4343, 0.0
  %v4600 = vmax.f32 %v4344, 0.0
  %v4601 = vmax.f32 %v4345, 0.0
  %v4602 = vmax.f32 %v4346, 0.0
  %v4603 = vmax.f32 %v4347, 0.0
  %v4604 = vmax.f32 %v4348, 0.0
  %v4605 = vmax.f32 %v4349, 0.0
  %v4606 = vmax.f32 %v4350, 0.0
  %v4607 = vmax.f32 %v4351, 0.0
  %v4608 = vmax.f32 %v4352, 0.0
  %v4609 = vmax.f32 %v4353, 0.0
  %v4610 = vmax.f32 %v4354, 0.0
  %v4611 = vmax.f32 %v4355, 0.0
  %v4612 = vmax.f32 %v4356, 0.0
  %v4613 = vmax.f32 %v4357, 0.0
  %v4614 = vmax.f32 %v4358, 0.0
  %v4615 = vmax.f32 %v4359, 0.0
  %v4616 = vmax.f32 %v4360, 0.0
  %v4617 = vmax.f32 %v4361, 0.0
  %v4618 = vmax.f32 %v4362, 0.0
  %v4619 = vmax.f32 %v4363, 0.0
  %v4620 = vmax.f32 %v4364, 0.0
  %v4621 = vmax.f32 %v4365, 0.0
  %v4622 = vmax.f32 %v4366, 0.0
  %v4623 = vmax.f32 %v4367, 0.0
  %v4624 = vmax.f32 %v4368, 0.0
  %v4625 = vmax.f32 %v4369, 0.0
  %v4626 = vmax.f32 %v4370, 0.0
  %v4627 = vmax.f32 %v4371, 0.0
  %v4628 = vmax.f32 %v4372, 0.0
  %v4629 = vmax.f32 %v4373, 0.0
  %v4630 = vmax.f32 %v4374, 0.0
  %v4631 = vmax.f32 %v4375, 0.0
  %v4632 = vmax.f32 %v4376, 0.0
  %v4633 = vmax.f32 %v4377, 0.0
  %v4634 = vmax.f32 %v4378, 0.0
  %v4635 = vmax.f32 %v4379, 0.0
  %v4636 = vmax.f32 %v4380, 0.0
  %v4637 = vmax.f32 %v4381, 0.0
  %v4638 = vmax.f32 %v4382, 0.0
  %v4639 = vmax.f32 %v4383, 0.0
  %v4640 = vmax.f32 %v4384, 0.0
  %v4641 = vmax.f32 %v4385, 0.0
  %v4642 = vmax.f32 %v4386, 0.0
  %v4643 = vmax.f32 %v4387, 0.0
  %v4644 = vmax.f32 %v4388, 0.0
  %v4645 = vmax.f32 %v4389, 0.0
  %v4646 = vmax.f32 %v4390, 0.0
  %v4647 = vmax.f32 %v4391, 0.0
  %v4648 = vmax.f32 %v4392, 0.0
  %v4649 = vmax.f32 %v4393, 0.0
  %v4650 = vmax.f32 %v4394, 0.0
  %v4651 = vmax.f32 %v4395, 0.0
  %v4652 = vmax.f32 %v4396, 0.0
  %v4653 = vmax.f32 %v4397, 0.0
  %v4654 = vmax.f32 %v4398, 0.0
  %v4655 = vmax.f32 %v4399, 0.0
  %v4656 = vmax.f32 %v4400, 0.0
  %v4657 = vmax.f32 %v4401, 0.0
  %v4658 = vmax.f32 %v4402, 0.0
  %v4659 = vmax.f32 %v4403, 0.0
  %v4660 = vmax.f32 %v4404, 0.0
  %v4661 = vmax.f32 %v4405, 0.0
  %v4662 = vmax.f32 %v4406, 0.0
  %v4663 = vmax.f32 %v4407, 0.0
  %v4664 = vmax.f32 %v4408, 0.0
  %v4665 = vmax.f32 %v4409, 0.0
  %v4666 = vmax.f32 %v4410, 0.0
  %v4667 = vmax.f32 %v4411, 0.0
  %v4668 = vmax.f32 %v4412, 0.0
  %v4669 = vmax.f32 %v4413, 0.0
  %v4670 = vmax.f32 %v4414, 0.0
  %v4671 = vmax.f32 %v4415, 0.0
  %v4672 = vmax.f32 %v4416, 0.0
  %v4673 = vmax.f32 %v4417, 0.0
  %v4674 = vmax.f32 %v4418, 0.0
  %v4675 = vmax.f32 %v4419, 0.0
  %v4676 = vmax.f32 %v4420, 0.0
  %v4677 = vmax.f32 %v4421, 0.0
  %v4678 = vmax.f32 %v4422, 0.0
  %v4679 = vmax.f32 %v4423, 0.0
  %v4680 = vmax.f32 %v4424, 0.0
  %v4681 = vmax.f32 %v4425, 0.0
  %v4682 = vmax.f32 %v4426, 0.0
  %v4683 = vmax.f32 %v4427, 0.0
  %v4684 = vmax.f32 %v4428, 0.0
  %v4685 = vmax.f32 %v4429, 0.0
  %v4686 = vmax.f32 %v4430, 0.0
  %v4687 = vmax.f32 %v4431, 0.0
  %v4688 = vmax.f32 %v4432, 0.0
  %v4689 = vmax.f32 %v4433, 0.0
  %v4690 = vmax.f32 %v4434, 0.0
  %v4691 = vmax.f32 %v4435, 0.0
  %v4692 = vmax.f32 %v4436, 0.0
  %v4693 = vmax.f32 %v4437, 0.0
  %v4694 = vmax.f32 %v4438, 0.0
  %vm4695 = vcmask 523264
  %v4696 = vsel %vm4695, %v4439, -inf
  %v4697 = vsel %vm4695, %v4440, -inf
  %v4698 = vmax.f32 %v4696, %v4697
  %v4699 = vrot.slane %v4698, 4
  %v4700 = vmax.f32 %v4698, %v4699
  %v4701 = vrot.slane %v4700, 2
  %v4702 = vmax.f32 %v4700, %v4701
  %v4703 = vrot.slane %v4702, 1
  %v4704 = vmax.f32 %v4702, %v4703
  %v4705 = vsel %vm4695, %v4441, -inf
  %v4706 = vsel %vm4695, %v4442, -inf
  %v4707 = vmax.f32 %v4705, %v4706
  %v4708 = vrot.slane %v4707, 4
  %v4709 = vmax.f32 %v4707, %v4708
  %v4710 = vrot.slane %v4709, 2
  %v4711 = vmax.f32 %v4709, %v4710
  %v4712 = vrot.slane %v4711, 1
  %v4713 = vmax.f32 %v4711, %v4712
  %v4714 = vsel %vm4695, %v4443, -inf
  %v4715 = vsel %vm4695, %v4444, -inf
  %v4716 = vmax.f32 %v4714, %v4715
  %v4717 = vrot.slane %v4716, 4
  %v4718 = vmax.f32 %v4716, %v4717
  %v4719 = vrot.slane %v4718, 2
  %v4720 = vmax.f32 %v4718, %v4719
  %v4721 = vrot.slane %v4720, 1
  %v4722 = vmax.f32 %v4720, %v4721
  %v4723 = vsel %vm4695, %v4445, -inf
  %v4724 = vsel %vm4695, %v4446, -inf
  %v4725 = vmax.f32 %v4723, %v4724
  %v4726 = vrot.slane %v4725, 4
  %v4727 = vmax.f32 %v4725, %v4726
  %v4728 = vrot.slane %v4727, 2
  %v4729 = vmax.f32 %v4727, %v4728
  %v4730 = vrot.slane %v4729, 1
  %v4731 = vmax.f32 %v4729, %v4730
  %v4732 = vsel %vm4695, %v4447, -inf
  %v4733 = vsel %vm4695, %v4448, -inf
  %v4734 = vmax.f32 %v4732, %v4733
  %v4735 = vrot.slane %v4734, 4
  %v4736 = vmax.f32 %v4734, %v4735
  %v4737 = vrot.slane %v4736, 2
  %v4738 = vmax.f32 %v4736, %v4737
  %v4739 = vrot.slane %v4738, 1
  %v4740 = vmax.f32 %v4738, %v4739
  %v4741 = vsel %vm4695, %v4449, -inf
  %v4742 = vsel %vm4695, %v4450, -inf
  %v4743 = vmax.f32 %v4741, %v4742
  %v4744 = vrot.slane %v4743, 4
  %v4745 = vmax.f32 %v4743, %v4744
  %v4746 = vrot.slane %v4745, 2
  %v4747 = vmax.f32 %v4745, %v4746
  %v4748 = vrot.slane %v4747, 1
  %v4749 = vmax.f32 %v4747, %v4748
  %v4750 = vsel %vm4695, %v4451, -inf
  %v4751 = vsel %vm4695, %v4452, -inf
  %v4752 = vmax.f32 %v4750, %v4751
  %v4753 = vrot.slane %v4752, 4
  %v4754 = vmax.f32 %v4752, %v4753
  %v4755 = vrot.slane %v4754, 2
  %v4756 = vmax.f32 %v4754, %v4755
  %v4757 = vrot.slane %v4756, 1
  %v4758 = vmax.f32 %v4756, %v4757
  %v4759 = vsel %vm4695, %v4453, -inf
  %v4760 = vsel %vm4695, %v4454, -inf
  %v4761 = vmax.f32 %v4759, %v4760
  %v4762 = vrot.slane %v4761, 4
  %v4763 = vmax.f32 %v4761, %v4762
  %v4764 = vrot.slane %v4763, 2
  %v4765 = vmax.f32 %v4763, %v4764
  %v4766 = vrot.slane %v4765, 1
  %v4767 = vmax.f32 %v4765, %v4766
  %v4768 = vsel %vm4695, %v4455, -inf
  %v4769 = vsel %vm4695, %v4456, -inf
  %v4770 = vmax.f32 %v4768, %v4769
  %v4771 = vrot.slane %v4770, 4
  %v4772 = vmax.f32 %v4770, %v4771
  %v4773 = vrot.slane %v4772, 2
  %v4774 = vmax.f32 %v4772, %v4773
  %v4775 = vrot.slane %v4774, 1
  %v4776 = vmax.f32 %v4774, %v4775
  %v4777 = vsel %vm4695, %v4457, -inf
  %v4778 = vsel %vm4695, %v4458, -inf
  %v4779 = vmax.f32 %v4777, %v4778
  %v4780 = vrot.slane %v4779, 4
  %v4781 = vmax.f32 %v4779, %v4780
  %v4782 = vrot.slane %v4781, 2
  %v4783 = vmax.f32 %v4781, %v4782
  %v4784 = vrot.slane %v4783, 1
  %v4785 = vmax.f32 %v4783, %v4784
  %v4786 = vsel %vm4695, %v4459, -inf
  %v4787 = vsel %vm4695, %v4460, -inf
  %v4788 = vmax.f32 %v4786, %v4787
  %v4789 = vrot.slane %v4788, 4
  %v4790 = vmax.f32 %v4788, %v4789
  %v4791 = vrot.slane %v4790, 2
  %v4792 = vmax.f32 %v4790, %v4791
  %v4793 = vrot.slane %v4792, 1
  %v4794 = vmax.f32 %v4792, %v4793
  %v4795 = vsel %vm4695, %v4461, -inf
  %v4796 = vsel %vm4695, %v4462, -inf
  %v4797 = vmax.f32 %v4795, %v4796
  %v4798 = vrot.slane %v4797, 4
  %v4799 = vmax.f32 %v4797, %v4798
  %v4800 = vrot.slane %v4799, 2
  %v4801 = vmax.f32 %v4799, %v4800
  %v4802 = vrot.slane %v4801, 1
  %v4803 = vmax.f32 %v4801, %v4802
  %v4804 = vsel %vm4695, %v4463, -inf
  %v4805 = vsel %vm4695, %v4464, -inf
  %v4806 = vmax.f32 %v4804, %v4805
  %v4807 = vrot.slane %v4806, 4
  %v4808 = vmax.f32 %v4806, %v4807
  %v4809 = vrot.slane %v4808, 2
  %v4810 = vmax.f32 %v4808, %v4809
  %v4811 = vrot.slane %v4810, 1
  %v4812 = vmax.f32 %v4810, %v4811
  %v4813 = vsel %vm4695, %v4465, -inf
  %v4814 = vsel %vm4695, %v4466, -inf
  %v4815 = vmax.f32 %v4813, %v4814
  %v4816 = vrot.slane %v4815, 4
  %v4817 = vmax.f32 %v4815, %v4816
  %v4818 = vrot.slane %v4817, 2
  %v4819 = vmax.f32 %v4817, %v4818
  %v4820 = vrot.slane %v4819, 1
  %v4821 = vmax.f32 %v4819, %v4820
  %v4822 = vsel %vm4695, %v4467, -inf
  %v4823 = vsel %vm4695, %v4468, -inf
  %v4824 = vmax.f32 %v4822, %v4823
  %v4825 = vrot.slane %v4824, 4
  %v4826 = vmax.f32 %v4824, %v4825
  %v4827 = vrot.slane %v4826, 2
  %v4828 = vmax.f32 %v4826, %v4827
  %v4829 = vrot.slane %v4828, 1
  %v4830 = vmax.f32 %v4828, %v4829
  %v4831 = vsel %vm4695, %v4469, -inf
  %v4832 = vsel %vm4695, %v4470, -inf
  %v4833 = vmax.f32 %v4831, %v4832
  %v4834 = vrot.slane %v4833, 4
  %v4835 = vmax.f32 %v4833, %v4834
  %v4836 = vrot.slane %v4835, 2
  %v4837 = vmax.f32 %v4835, %v4836
  %v4838 = vrot.slane %v4837, 1
  %v4839 = vmax.f32 %v4837, %v4838
  %v4840 = vsel %vm4695, %v4471, -inf
  %v4841 = vsel %vm4695, %v4472, -inf
  %v4842 = vmax.f32 %v4840, %v4841
  %v4843 = vrot.slane %v4842, 4
  %v4844 = vmax.f32 %v4842, %v4843
  %v4845 = vrot.slane %v4844, 2
  %v4846 = vmax.f32 %v4844, %v4845
  %v4847 = vrot.slane %v4846, 1
  %v4848 = vmax.f32 %v4846, %v4847
  %v4849 = vsel %vm4695, %v4473, -inf
  %v4850 = vsel %vm4695, %v4474, -inf
  %v4851 = vmax.f32 %v4849, %v4850
  %v4852 = vrot.slane %v4851, 4
  %v4853 = vmax.f32 %v4851, %v4852
  %v4854 = vrot.slane %v4853, 2
  %v4855 = vmax.f32 %v4853, %v4854
  %v4856 = vrot.slane %v4855, 1
  %v4857 = vmax.f32 %v4855, %v4856
  %v4858 = vsel %vm4695, %v4475, -inf
  %v4859 = vsel %vm4695, %v4476, -inf
  %v4860 = vmax.f32 %v4858, %v4859
  %v4861 = vrot.slane %v4860, 4
  %v4862 = vmax.f32 %v4860, %v4861
  %v4863 = vrot.slane %v4862, 2
  %v4864 = vmax.f32 %v4862, %v4863
  %v4865 = vrot.slane %v4864, 1
  %v4866 = vmax.f32 %v4864, %v4865
  %v4867 = vsel %vm4695, %v4477, -inf
  %v4868 = vsel %vm4695, %v4478, -inf
  %v4869 = vmax.f32 %v4867, %v4868
  %v4870 = vrot.slane %v4869, 4
  %v4871 = vmax.f32 %v4869, %v4870
  %v4872 = vrot.slane %v4871, 2
  %v4873 = vmax.f32 %v4871, %v4872
  %v4874 = vrot.slane %v4873, 1
  %v4875 = vmax.f32 %v4873, %v4874
  %v4876 = vsel %vm4695, %v4479, -inf
  %v4877 = vsel %vm4695, %v4480, -inf
  %v4878 = vmax.f32 %v4876, %v4877
  %v4879 = vrot.slane %v4878, 4
  %v4880 = vmax.f32 %v4878, %v4879
  %v4881 = vrot.slane %v4880, 2
  %v4882 = vmax.f32 %v4880, %v4881
  %v4883 = vrot.slane %v4882, 1
  %v4884 = vmax.f32 %v4882, %v4883
  %v4885 = vsel %vm4695, %v4481, -inf
  %v4886 = vsel %vm4695, %v4482, -inf
  %v4887 = vmax.f32 %v4885, %v4886
  %v4888 = vrot.slane %v4887, 4
  %v4889 = vmax.f32 %v4887, %v4888
  %v4890 = vrot.slane %v4889, 2
  %v4891 = vmax.f32 %v4889, %v4890
  %v4892 = vrot.slane %v4891, 1
  %v4893 = vmax.f32 %v4891, %v4892
  %v4894 = vsel %vm4695, %v4483, -inf
  %v4895 = vsel %vm4695, %v4484, -inf
  %v4896 = vmax.f32 %v4894, %v4895
  %v4897 = vrot.slane %v4896, 4
  %v4898 = vmax.f32 %v4896, %v4897
  %v4899 = vrot.slane %v4898, 2
  %v4900 = vmax.f32 %v4898, %v4899
  %v4901 = vrot.slane %v4900, 1
  %v4902 = vmax.f32 %v4900, %v4901
  %v4903 = vsel %vm4695, %v4485, -inf
  %v4904 = vsel %vm4695, %v4486, -inf
  %v4905 = vmax.f32 %v4903, %v4904
  %v4906 = vrot.slane %v4905, 4
  %v4907 = vmax.f32 %v4905, %v4906
  %v4908 = vrot.slane %v4907, 2
  %v4909 = vmax.f32 %v4907, %v4908
  %v4910 = vrot.slane %v4909, 1
  %v4911 = vmax.f32 %v4909, %v4910
  %v4912 = vsel %vm4695, %v4487, -inf
  %v4913 = vsel %vm4695, %v4488, -inf
  %v4914 = vmax.f32 %v4912, %v4913
  %v4915 = vrot.slane %v4914, 4
  %v4916 = vmax.f32 %v4914, %v4915
  %v4917 = vrot.slane %v4916, 2
  %v4918 = vmax.f32 %v4916, %v4917
  %v4919 = vrot.slane %v4918, 1
  %v4920 = vmax.f32 %v4918, %v4919
  %v4921 = vsel %vm4695, %v4489, -inf
  %v4922 = vsel %vm4695, %v4490, -inf
  %v4923 = vmax.f32 %v4921, %v4922
  %v4924 = vrot.slane %v4923, 4
  %v4925 = vmax.f32 %v4923, %v4924
  %v4926 = vrot.slane %v4925, 2
  %v4927 = vmax.f32 %v4925, %v4926
  %v4928 = vrot.slane %v4927, 1
  %v4929 = vmax.f32 %v4927, %v4928
  %v4930 = vsel %vm4695, %v4491, -inf
  %v4931 = vsel %vm4695, %v4492, -inf
  %v4932 = vmax.f32 %v4930, %v4931
  %v4933 = vrot.slane %v4932, 4
  %v4934 = vmax.f32 %v4932, %v4933
  %v4935 = vrot.slane %v4934, 2
  %v4936 = vmax.f32 %v4934, %v4935
  %v4937 = vrot.slane %v4936, 1
  %v4938 = vmax.f32 %v4936, %v4937
  %v4939 = vsel %vm4695, %v4493, -inf
  %v4940 = vsel %vm4695, %v4494, -inf
  %v4941 = vmax.f32 %v4939, %v4940
  %v4942 = vrot.slane %v4941, 4
  %v4943 = vmax.f32 %v4941, %v4942
  %v4944 = vrot.slane %v4943, 2
  %v4945 = vmax.f32 %v4943, %v4944
  %v4946 = vrot.slane %v4945, 1
  %v4947 = vmax.f32 %v4945, %v4946
  %v4948 = vsel %vm4695, %v4495, -inf
  %v4949 = vsel %vm4695, %v4496, -inf
  %v4950 = vmax.f32 %v4948, %v4949
  %v4951 = vrot.slane %v4950, 4
  %v4952 = vmax.f32 %v4950, %v4951
  %v4953 = vrot.slane %v4952, 2
  %v4954 = vmax.f32 %v4952, %v4953
  %v4955 = vrot.slane %v4954, 1
  %v4956 = vmax.f32 %v4954, %v4955
  %v4957 = vsel %vm4695, %v4497, -inf
  %v4958 = vsel %vm4695, %v4498, -inf
  %v4959 = vmax.f32 %v4957, %v4958
  %v4960 = vrot.slane %v4959, 4
  %v4961 = vmax.f32 %v4959, %v4960
  %v4962 = vrot.slane %v4961, 2
  %v4963 = vmax.f32 %v4961, %v4962
  %v4964 = vrot.slane %v4963, 1
  %v4965 = vmax.f32 %v4963, %v4964
  %v4966 = vsel %vm4695, %v4499, -inf
  %v4967 = vsel %vm4695, %v4500, -inf
  %v4968 = vmax.f32 %v4966, %v4967
  %v4969 = vrot.slane %v4968, 4
  %v4970 = vmax.f32 %v4968, %v4969
  %v4971 = vrot.slane %v4970, 2
  %v4972 = vmax.f32 %v4970, %v4971
  %v4973 = vrot.slane %v4972, 1
  %v4974 = vmax.f32 %v4972, %v4973
  %v4975 = vsel %vm4695, %v4501, -inf
  %v4976 = vsel %vm4695, %v4502, -inf
  %v4977 = vmax.f32 %v4975, %v4976
  %v4978 = vrot.slane %v4977, 4
  %v4979 = vmax.f32 %v4977, %v4978
  %v4980 = vrot.slane %v4979, 2
  %v4981 = vmax.f32 %v4979, %v4980
  %v4982 = vrot.slane %v4981, 1
  %v4983 = vmax.f32 %v4981, %v4982
  %v4984 = vsel %vm4695, %v4503, -inf
  %v4985 = vsel %vm4695, %v4504, -inf
  %v4986 = vmax.f32 %v4984, %v4985
  %v4987 = vrot.slane %v4986, 4
  %v4988 = vmax.f32 %v4986, %v4987
  %v4989 = vrot.slane %v4988, 2
  %v4990 = vmax.f32 %v4988, %v4989
  %v4991 = vrot.slane %v4990, 1
  %v4992 = vmax.f32 %v4990, %v4991
  %v4993 = vsel %vm4695, %v4505, -inf
  %v4994 = vsel %vm4695, %v4506, -inf
  %v4995 = vmax.f32 %v4993, %v4994
  %v4996 = vrot.slane %v4995, 4
  %v4997 = vmax.f32 %v4995, %v4996
  %v4998 = vrot.slane %v4997, 2
  %v4999 = vmax.f32 %v4997, %v4998
  %v5000 = vrot.slane %v4999, 1
  %v5001 = vmax.f32 %v4999, %v5000
  %v5002 = vsel %vm4695, %v4507, -inf
  %v5003 = vsel %vm4695, %v4508, -inf
  %v5004 = vmax.f32 %v5002, %v5003
  %v5005 = vrot.slane %v5004, 4
  %v5006 = vmax.f32 %v5004, %v5005
  %v5007 = vrot.slane %v5006, 2
  %v5008 = vmax.f32 %v5006, %v5007
  %v5009 = vrot.slane %v5008, 1
  %v5010 = vmax.f32 %v5008, %v5009
  %v5011 = vsel %vm4695, %v4509, -inf
  %v5012 = vsel %vm4695, %v4510, -inf
  %v5013 = vmax.f32 %v5011, %v5012
  %v5014 = vrot.slane %v5013, 4
  %v5015 = vmax.f32 %v5013, %v5014
  %v5016 = vrot.slane %v5015, 2
  %v5017 = vmax.f32 %v5015, %v5016
  %v5018 = vrot.slane %v5017, 1
  %v5019 = vmax.f32 %v5017, %v5018
  %v5020 = vsel %vm4695, %v4511, -inf
  %v5021 = vsel %vm4695, %v4512, -inf
  %v5022 = vmax.f32 %v5020, %v5021
  %v5023 = vrot.slane %v5022, 4
  %v5024 = vmax.f32 %v5022, %v5023
  %v5025 = vrot.slane %v5024, 2
  %v5026 = vmax.f32 %v5024, %v5025
  %v5027 = vrot.slane %v5026, 1
  %v5028 = vmax.f32 %v5026, %v5027
  %v5029 = vsel %vm4695, %v4513, -inf
  %v5030 = vsel %vm4695, %v4514, -inf
  %v5031 = vmax.f32 %v5029, %v5030
  %v5032 = vrot.slane %v5031, 4
  %v5033 = vmax.f32 %v5031, %v5032
  %v5034 = vrot.slane %v5033, 2
  %v5035 = vmax.f32 %v5033, %v5034
  %v5036 = vrot.slane %v5035, 1
  %v5037 = vmax.f32 %v5035, %v5036
  %v5038 = vsel %vm4695, %v4515, -inf
  %v5039 = vsel %vm4695, %v4516, -inf
  %v5040 = vmax.f32 %v5038, %v5039
  %v5041 = vrot.slane %v5040, 4
  %v5042 = vmax.f32 %v5040, %v5041
  %v5043 = vrot.slane %v5042, 2
  %v5044 = vmax.f32 %v5042, %v5043
  %v5045 = vrot.slane %v5044, 1
  %v5046 = vmax.f32 %v5044, %v5045
  %v5047 = vsel %vm4695, %v4517, -inf
  %v5048 = vsel %vm4695, %v4518, -inf
  %v5049 = vmax.f32 %v5047, %v5048
  %v5050 = vrot.slane %v5049, 4
  %v5051 = vmax.f32 %v5049, %v5050
  %v5052 = vrot.slane %v5051, 2
  %v5053 = vmax.f32 %v5051, %v5052
  %v5054 = vrot.slane %v5053, 1
  %v5055 = vmax.f32 %v5053, %v5054
  %v5056 = vsel %vm4695, %v4519, -inf
  %v5057 = vsel %vm4695, %v4520, -inf
  %v5058 = vmax.f32 %v5056, %v5057
  %v5059 = vrot.slane %v5058, 4
  %v5060 = vmax.f32 %v5058, %v5059
  %v5061 = vrot.slane %v5060, 2
  %v5062 = vmax.f32 %v5060, %v5061
  %v5063 = vrot.slane %v5062, 1
  %v5064 = vmax.f32 %v5062, %v5063
  %v5065 = vsel %vm4695, %v4521, -inf
  %v5066 = vsel %vm4695, %v4522, -inf
  %v5067 = vmax.f32 %v5065, %v5066
  %v5068 = vrot.slane %v5067, 4
  %v5069 = vmax.f32 %v5067, %v5068
  %v5070 = vrot.slane %v5069, 2
  %v5071 = vmax.f32 %v5069, %v5070
  %v5072 = vrot.slane %v5071, 1
  %v5073 = vmax.f32 %v5071, %v5072
  %v5074 = vsel %vm4695, %v4523, -inf
  %v5075 = vsel %vm4695, %v4524, -inf
  %v5076 = vmax.f32 %v5074, %v5075
  %v5077 = vrot.slane %v5076, 4
  %v5078 = vmax.f32 %v5076, %v5077
  %v5079 = vrot.slane %v5078, 2
  %v5080 = vmax.f32 %v5078, %v5079
  %v5081 = vrot.slane %v5080, 1
  %v5082 = vmax.f32 %v5080, %v5081
  %v5083 = vsel %vm4695, %v4525, -inf
  %v5084 = vsel %vm4695, %v4526, -inf
  %v5085 = vmax.f32 %v5083, %v5084
  %v5086 = vrot.slane %v5085, 4
  %v5087 = vmax.f32 %v5085, %v5086
  %v5088 = vrot.slane %v5087, 2
  %v5089 = vmax.f32 %v5087, %v5088
  %v5090 = vrot.slane %v5089, 1
  %v5091 = vmax.f32 %v5089, %v5090
  %v5092 = vsel %vm4695, %v4527, -inf
  %v5093 = vsel %vm4695, %v4528, -inf
  %v5094 = vmax.f32 %v5092, %v5093
  %v5095 = vrot.slane %v5094, 4
  %v5096 = vmax.f32 %v5094, %v5095
  %v5097 = vrot.slane %v5096, 2
  %v5098 = vmax.f32 %v5096, %v5097
  %v5099 = vrot.slane %v5098, 1
  %v5100 = vmax.f32 %v5098, %v5099
  %v5101 = vsel %vm4695, %v4529, -inf
  %v5102 = vsel %vm4695, %v4530, -inf
  %v5103 = vmax.f32 %v5101, %v5102
  %v5104 = vrot.slane %v5103, 4
  %v5105 = vmax.f32 %v5103, %v5104
  %v5106 = vrot.slane %v5105, 2
  %v5107 = vmax.f32 %v5105, %v5106
  %v5108 = vrot.slane %v5107, 1
  %v5109 = vmax.f32 %v5107, %v5108
  %v5110 = vsel %vm4695, %v4531, -inf
  %v5111 = vsel %vm4695, %v4532, -inf
  %v5112 = vmax.f32 %v5110, %v5111
  %v5113 = vrot.slane %v5112, 4
  %v5114 = vmax.f32 %v5112, %v5113
  %v5115 = vrot.slane %v5114, 2
  %v5116 = vmax.f32 %v5114, %v5115
  %v5117 = vrot.slane %v5116, 1
  %v5118 = vmax.f32 %v5116, %v5117
  %v5119 = vsel %vm4695, %v4533, -inf
  %v5120 = vsel %vm4695, %v4534, -inf
  %v5121 = vmax.f32 %v5119, %v5120
  %v5122 = vrot.slane %v5121, 4
  %v5123 = vmax.f32 %v5121, %v5122
  %v5124 = vrot.slane %v5123, 2
  %v5125 = vmax.f32 %v5123, %v5124
  %v5126 = vrot.slane %v5125, 1
  %v5127 = vmax.f32 %v5125, %v5126
  %v5128 = vsel %vm4695, %v4535, -inf
  %v5129 = vsel %vm4695, %v4536, -inf
  %v5130 = vmax.f32 %v5128, %v5129
  %v5131 = vrot.slane %v5130, 4
  %v5132 = vmax.f32 %v5130, %v5131
  %v5133 = vrot.slane %v5132, 2
  %v5134 = vmax.f32 %v5132, %v5133
  %v5135 = vrot.slane %v5134, 1
  %v5136 = vmax.f32 %v5134, %v5135
  %v5137 = vsel %vm4695, %v4537, -inf
  %v5138 = vsel %vm4695, %v4538, -inf
  %v5139 = vmax.f32 %v5137, %v5138
  %v5140 = vrot.slane %v5139, 4
  %v5141 = vmax.f32 %v5139, %v5140
  %v5142 = vrot.slane %v5141, 2
  %v5143 = vmax.f32 %v5141, %v5142
  %v5144 = vrot.slane %v5143, 1
  %v5145 = vmax.f32 %v5143, %v5144
  %v5146 = vsel %vm4695, %v4539, -inf
  %v5147 = vsel %vm4695, %v4540, -inf
  %v5148 = vmax.f32 %v5146, %v5147
  %v5149 = vrot.slane %v5148, 4
  %v5150 = vmax.f32 %v5148, %v5149
  %v5151 = vrot.slane %v5150, 2
  %v5152 = vmax.f32 %v5150, %v5151
  %v5153 = vrot.slane %v5152, 1
  %v5154 = vmax.f32 %v5152, %v5153
  %v5155 = vsel %vm4695, %v4541, -inf
  %v5156 = vsel %vm4695, %v4542, -inf
  %v5157 = vmax.f32 %v5155, %v5156
  %v5158 = vrot.slane %v5157, 4
  %v5159 = vmax.f32 %v5157, %v5158
  %v5160 = vrot.slane %v5159, 2
  %v5161 = vmax.f32 %v5159, %v5160
  %v5162 = vrot.slane %v5161, 1
  %v5163 = vmax.f32 %v5161, %v5162
  %v5164 = vsel %vm4695, %v4543, -inf
  %v5165 = vsel %vm4695, %v4544, -inf
  %v5166 = vmax.f32 %v5164, %v5165
  %v5167 = vrot.slane %v5166, 4
  %v5168 = vmax.f32 %v5166, %v5167
  %v5169 = vrot.slane %v5168, 2
  %v5170 = vmax.f32 %v5168, %v5169
  %v5171 = vrot.slane %v5170, 1
  %v5172 = vmax.f32 %v5170, %v5171
  %v5173 = vsel %vm4695, %v4545, -inf
  %v5174 = vsel %vm4695, %v4546, -inf
  %v5175 = vmax.f32 %v5173, %v5174
  %v5176 = vrot.slane %v5175, 4
  %v5177 = vmax.f32 %v5175, %v5176
  %v5178 = vrot.slane %v5177, 2
  %v5179 = vmax.f32 %v5177, %v5178
  %v5180 = vrot.slane %v5179, 1
  %v5181 = vmax.f32 %v5179, %v5180
  %v5182 = vsel %vm4695, %v4547, -inf
  %v5183 = vsel %vm4695, %v4548, -inf
  %v5184 = vmax.f32 %v5182, %v5183
  %v5185 = vrot.slane %v5184, 4
  %v5186 = vmax.f32 %v5184, %v5185
  %v5187 = vrot.slane %v5186, 2
  %v5188 = vmax.f32 %v5186, %v5187
  %v5189 = vrot.slane %v5188, 1
  %v5190 = vmax.f32 %v5188, %v5189
  %v5191 = vsel %vm4695, %v4549, -inf
  %v5192 = vsel %vm4695, %v4550, -inf
  %v5193 = vmax.f32 %v5191, %v5192
  %v5194 = vrot.slane %v5193, 4
  %v5195 = vmax.f32 %v5193, %v5194
  %v5196 = vrot.slane %v5195, 2
  %v5197 = vmax.f32 %v5195, %v5196
  %v5198 = vrot.slane %v5197, 1
  %v5199 = vmax.f32 %v5197, %v5198
  %v5200 = vsel %vm4695, %v4551, -inf
  %v5201 = vsel %vm4695, %v4552, -inf
  %v5202 = vmax.f32 %v5200, %v5201
  %v5203 = vrot.slane %v5202, 4
  %v5204 = vmax.f32 %v5202, %v5203
  %v5205 = vrot.slane %v5204, 2
  %v5206 = vmax.f32 %v5204, %v5205
  %v5207 = vrot.slane %v5206, 1
  %v5208 = vmax.f32 %v5206, %v5207
  %v5209 = vsel %vm4695, %v4553, -inf
  %v5210 = vsel %vm4695, %v4554, -inf
  %v5211 = vmax.f32 %v5209, %v5210
  %v5212 = vrot.slane %v5211, 4
  %v5213 = vmax.f32 %v5211, %v5212
  %v5214 = vrot.slane %v5213, 2
  %v5215 = vmax.f32 %v5213, %v5214
  %v5216 = vrot.slane %v5215, 1
  %v5217 = vmax.f32 %v5215, %v5216
  %v5218 = vsel %vm4695, %v4555, -inf
  %v5219 = vsel %vm4695, %v4556, -inf
  %v5220 = vmax.f32 %v5218, %v5219
  %v5221 = vrot.slane %v5220, 4
  %v5222 = vmax.f32 %v5220, %v5221
  %v5223 = vrot.slane %v5222, 2
  %v5224 = vmax.f32 %v5222, %v5223
  %v5225 = vrot.slane %v5224, 1
  %v5226 = vmax.f32 %v5224, %v5225
  %v5227 = vsel %vm4695, %v4557, -inf
  %v5228 = vsel %vm4695, %v4558, -inf
  %v5229 = vmax.f32 %v5227, %v5228
  %v5230 = vrot.slane %v5229, 4
  %v5231 = vmax.f32 %v5229, %v5230
  %v5232 = vrot.slane %v5231, 2
  %v5233 = vmax.f32 %v5231, %v5232
  %v5234 = vrot.slane %v5233, 1
  %v5235 = vmax.f32 %v5233, %v5234
  %v5236 = vsel %vm4695, %v4559, -inf
  %v5237 = vsel %vm4695, %v4560, -inf
  %v5238 = vmax.f32 %v5236, %v5237
  %v5239 = vrot.slane %v5238, 4
  %v5240 = vmax.f32 %v5238, %v5239
  %v5241 = vrot.slane %v5240, 2
  %v5242 = vmax.f32 %v5240, %v5241
  %v5243 = vrot.slane %v5242, 1
  %v5244 = vmax.f32 %v5242, %v5243
  %v5245 = vsel %vm4695, %v4561, -inf
  %v5246 = vsel %vm4695, %v4562, -inf
  %v5247 = vmax.f32 %v5245, %v5246
  %v5248 = vrot.slane %v5247, 4
  %v5249 = vmax.f32 %v5247, %v5248
  %v5250 = vrot.slane %v5249, 2
  %v5251 = vmax.f32 %v5249, %v5250
  %v5252 = vrot.slane %v5251, 1
  %v5253 = vmax.f32 %v5251, %v5252
  %v5254 = vsel %vm4695, %v4563, -inf
  %v5255 = vsel %vm4695, %v4564, -inf
  %v5256 = vmax.f32 %v5254, %v5255
  %v5257 = vrot.slane %v5256, 4
  %v5258 = vmax.f32 %v5256, %v5257
  %v5259 = vrot.slane %v5258, 2
  %v5260 = vmax.f32 %v5258, %v5259
  %v5261 = vrot.slane %v5260, 1
  %v5262 = vmax.f32 %v5260, %v5261
  %v5263 = vsel %vm4695, %v4565, -inf
  %v5264 = vsel %vm4695, %v4566, -inf
  %v5265 = vmax.f32 %v5263, %v5264
  %v5266 = vrot.slane %v5265, 4
  %v5267 = vmax.f32 %v5265, %v5266
  %v5268 = vrot.slane %v5267, 2
  %v5269 = vmax.f32 %v5267, %v5268
  %v5270 = vrot.slane %v5269, 1
  %v5271 = vmax.f32 %v5269, %v5270
  %v5272 = vsel %vm4695, %v4567, -inf
  %v5273 = vsel %vm4695, %v4568, -inf
  %v5274 = vmax.f32 %v5272, %v5273
  %v5275 = vrot.slane %v5274, 4
  %v5276 = vmax.f32 %v5274, %v5275
  %v5277 = vrot.slane %v5276, 2
  %v5278 = vmax.f32 %v5276, %v5277
  %v5279 = vrot.slane %v5278, 1
  %v5280 = vmax.f32 %v5278, %v5279
  %v5281 = vsel %vm4695, %v4569, -inf
  %v5282 = vsel %vm4695, %v4570, -inf
  %v5283 = vmax.f32 %v5281, %v5282
  %v5284 = vrot.slane %v5283, 4
  %v5285 = vmax.f32 %v5283, %v5284
  %v5286 = vrot.slane %v5285, 2
  %v5287 = vmax.f32 %v5285, %v5286
  %v5288 = vrot.slane %v5287, 1
  %v5289 = vmax.f32 %v5287, %v5288
  %v5290 = vsel %vm4695, %v4571, -inf
  %v5291 = vsel %vm4695, %v4572, -inf
  %v5292 = vmax.f32 %v5290, %v5291
  %v5293 = vrot.slane %v5292, 4
  %v5294 = vmax.f32 %v5292, %v5293
  %v5295 = vrot.slane %v5294, 2
  %v5296 = vmax.f32 %v5294, %v5295
  %v5297 = vrot.slane %v5296, 1
  %v5298 = vmax.f32 %v5296, %v5297
  %v5299 = vsel %vm4695, %v4573, -inf
  %v5300 = vsel %vm4695, %v4574, -inf
  %v5301 = vmax.f32 %v5299, %v5300
  %v5302 = vrot.slane %v5301, 4
  %v5303 = vmax.f32 %v5301, %v5302
  %v5304 = vrot.slane %v5303, 2
  %v5305 = vmax.f32 %v5303, %v5304
  %v5306 = vrot.slane %v5305, 1
  %v5307 = vmax.f32 %v5305, %v5306
  %v5308 = vsel %vm4695, %v4575, -inf
  %v5309 = vsel %vm4695, %v4576, -inf
  %v5310 = vmax.f32 %v5308, %v5309
  %v5311 = vrot.slane %v5310, 4
  %v5312 = vmax.f32 %v5310, %v5311
  %v5313 = vrot.slane %v5312, 2
  %v5314 = vmax.f32 %v5312, %v5313
  %v5315 = vrot.slane %v5314, 1
  %v5316 = vmax.f32 %v5314, %v5315
  %v5317 = vsel %vm4695, %v4577, -inf
  %v5318 = vsel %vm4695, %v4578, -inf
  %v5319 = vmax.f32 %v5317, %v5318
  %v5320 = vrot.slane %v5319, 4
  %v5321 = vmax.f32 %v5319, %v5320
  %v5322 = vrot.slane %v5321, 2
  %v5323 = vmax.f32 %v5321, %v5322
  %v5324 = vrot.slane %v5323, 1
  %v5325 = vmax.f32 %v5323, %v5324
  %v5326 = vsel %vm4695, %v4579, -inf
  %v5327 = vsel %vm4695, %v4580, -inf
  %v5328 = vmax.f32 %v5326, %v5327
  %v5329 = vrot.slane %v5328, 4
  %v5330 = vmax.f32 %v5328, %v5329
  %v5331 = vrot.slane %v5330, 2
  %v5332 = vmax.f32 %v5330, %v5331
  %v5333 = vrot.slane %v5332, 1
  %v5334 = vmax.f32 %v5332, %v5333
  %v5335 = vsel %vm4695, %v4581, -inf
  %v5336 = vsel %vm4695, %v4582, -inf
  %v5337 = vmax.f32 %v5335, %v5336
  %v5338 = vrot.slane %v5337, 4
  %v5339 = vmax.f32 %v5337, %v5338
  %v5340 = vrot.slane %v5339, 2
  %v5341 = vmax.f32 %v5339, %v5340
  %v5342 = vrot.slane %v5341, 1
  %v5343 = vmax.f32 %v5341, %v5342
  %v5344 = vsel %vm4695, %v4583, -inf
  %v5345 = vsel %vm4695, %v4584, -inf
  %v5346 = vmax.f32 %v5344, %v5345
  %v5347 = vrot.slane %v5346, 4
  %v5348 = vmax.f32 %v5346, %v5347
  %v5349 = vrot.slane %v5348, 2
  %v5350 = vmax.f32 %v5348, %v5349
  %v5351 = vrot.slane %v5350, 1
  %v5352 = vmax.f32 %v5350, %v5351
  %v5353 = vsel %vm4695, %v4585, -inf
  %v5354 = vsel %vm4695, %v4586, -inf
  %v5355 = vmax.f32 %v5353, %v5354
  %v5356 = vrot.slane %v5355, 4
  %v5357 = vmax.f32 %v5355, %v5356
  %v5358 = vrot.slane %v5357, 2
  %v5359 = vmax.f32 %v5357, %v5358
  %v5360 = vrot.slane %v5359, 1
  %v5361 = vmax.f32 %v5359, %v5360
  %v5362 = vsel %vm4695, %v4587, -inf
  %v5363 = vsel %vm4695, %v4588, -inf
  %v5364 = vmax.f32 %v5362, %v5363
  %v5365 = vrot.slane %v5364, 4
  %v5366 = vmax.f32 %v5364, %v5365
  %v5367 = vrot.slane %v5366, 2
  %v5368 = vmax.f32 %v5366, %v5367
  %v5369 = vrot.slane %v5368, 1
  %v5370 = vmax.f32 %v5368, %v5369
  %v5371 = vsel %vm4695, %v4589, -inf
  %v5372 = vsel %vm4695, %v4590, -inf
  %v5373 = vmax.f32 %v5371, %v5372
  %v5374 = vrot.slane %v5373, 4
  %v5375 = vmax.f32 %v5373, %v5374
  %v5376 = vrot.slane %v5375, 2
  %v5377 = vmax.f32 %v5375, %v5376
  %v5378 = vrot.slane %v5377, 1
  %v5379 = vmax.f32 %v5377, %v5378
  %v5380 = vsel %vm4695, %v4591, -inf
  %v5381 = vsel %vm4695, %v4592, -inf
  %v5382 = vmax.f32 %v5380, %v5381
  %v5383 = vrot.slane %v5382, 4
  %v5384 = vmax.f32 %v5382, %v5383
  %v5385 = vrot.slane %v5384, 2
  %v5386 = vmax.f32 %v5384, %v5385
  %v5387 = vrot.slane %v5386, 1
  %v5388 = vmax.f32 %v5386, %v5387
  %v5389 = vsel %vm4695, %v4593, -inf
  %v5390 = vsel %vm4695, %v4594, -inf
  %v5391 = vmax.f32 %v5389, %v5390
  %v5392 = vrot.slane %v5391, 4
  %v5393 = vmax.f32 %v5391, %v5392
  %v5394 = vrot.slane %v5393, 2
  %v5395 = vmax.f32 %v5393, %v5394
  %v5396 = vrot.slane %v5395, 1
  %v5397 = vmax.f32 %v5395, %v5396
  %v5398 = vsel %vm4695, %v4595, -inf
  %v5399 = vsel %vm4695, %v4596, -inf
  %v5400 = vmax.f32 %v5398, %v5399
  %v5401 = vrot.slane %v5400, 4
  %v5402 = vmax.f32 %v5400, %v5401
  %v5403 = vrot.slane %v5402, 2
  %v5404 = vmax.f32 %v5402, %v5403
  %v5405 = vrot.slane %v5404, 1
  %v5406 = vmax.f32 %v5404, %v5405
  %v5407 = vsel %vm4695, %v4597, -inf
  %v5408 = vsel %vm4695, %v4598, -inf
  %v5409 = vmax.f32 %v5407, %v5408
  %v5410 = vrot.slane %v5409, 4
  %v5411 = vmax.f32 %v5409, %v5410
  %v5412 = vrot.slane %v5411, 2
  %v5413 = vmax.f32 %v5411, %v5412
  %v5414 = vrot.slane %v5413, 1
  %v5415 = vmax.f32 %v5413, %v5414
  %v5416 = vsel %vm4695, %v4599, -inf
  %v5417 = vsel %vm4695, %v4600, -inf
  %v5418 = vmax.f32 %v5416, %v5417
  %v5419 = vrot.slane %v5418, 4
  %v5420 = vmax.f32 %v5418, %v5419
  %v5421 = vrot.slane %v5420, 2
  %v5422 = vmax.f32 %v5420, %v5421
  %v5423 = vrot.slane %v5422, 1
  %v5424 = vmax.f32 %v5422, %v5423
  %v5425 = vsel %vm4695, %v4601, -inf
  %v5426 = vsel %vm4695, %v4602, -inf
  %v5427 = vmax.f32 %v5425, %v5426
  %v5428 = vrot.slane %v5427, 4
  %v5429 = vmax.f32 %v5427, %v5428
  %v5430 = vrot.slane %v5429, 2
  %v5431 = vmax.f32 %v5429, %v5430
  %v5432 = vrot.slane %v5431, 1
  %v5433 = vmax.f32 %v5431, %v5432
  %v5434 = vsel %vm4695, %v4603, -inf
  %v5435 = vsel %vm4695, %v4604, -inf
  %v5436 = vmax.f32 %v5434, %v5435
  %v5437 = vrot.slane %v5436, 4
  %v5438 = vmax.f32 %v5436, %v5437
  %v5439 = vrot.slane %v5438, 2
  %v5440 = vmax.f32 %v5438, %v5439
  %v5441 = vrot.slane %v5440, 1
  %v5442 = vmax.f32 %v5440, %v5441
  %v5443 = vsel %vm4695, %v4605, -inf
  %v5444 = vsel %vm4695, %v4606, -inf
  %v5445 = vmax.f32 %v5443, %v5444
  %v5446 = vrot.slane %v5445, 4
  %v5447 = vmax.f32 %v5445, %v5446
  %v5448 = vrot.slane %v5447, 2
  %v5449 = vmax.f32 %v5447, %v5448
  %v5450 = vrot.slane %v5449, 1
  %v5451 = vmax.f32 %v5449, %v5450
  %v5452 = vsel %vm4695, %v4607, -inf
  %v5453 = vsel %vm4695, %v4608, -inf
  %v5454 = vmax.f32 %v5452, %v5453
  %v5455 = vrot.slane %v5454, 4
  %v5456 = vmax.f32 %v5454, %v5455
  %v5457 = vrot.slane %v5456, 2
  %v5458 = vmax.f32 %v5456, %v5457
  %v5459 = vrot.slane %v5458, 1
  %v5460 = vmax.f32 %v5458, %v5459
  %v5461 = vsel %vm4695, %v4609, -inf
  %v5462 = vsel %vm4695, %v4610, -inf
  %v5463 = vmax.f32 %v5461, %v5462
  %v5464 = vrot.slane %v5463, 4
  %v5465 = vmax.f32 %v5463, %v5464
  %v5466 = vrot.slane %v5465, 2
  %v5467 = vmax.f32 %v5465, %v5466
  %v5468 = vrot.slane %v5467, 1
  %v5469 = vmax.f32 %v5467, %v5468
  %v5470 = vsel %vm4695, %v4611, -inf
  %v5471 = vsel %vm4695, %v4612, -inf
  %v5472 = vmax.f32 %v5470, %v5471
  %v5473 = vrot.slane %v5472, 4
  %v5474 = vmax.f32 %v5472, %v5473
  %v5475 = vrot.slane %v5474, 2
  %v5476 = vmax.f32 %v5474, %v5475
  %v5477 = vrot.slane %v5476, 1
  %v5478 = vmax.f32 %v5476, %v5477
  %v5479 = vsel %vm4695, %v4613, -inf
  %v5480 = vsel %vm4695, %v4614, -inf
  %v5481 = vmax.f32 %v5479, %v5480
  %v5482 = vrot.slane %v5481, 4
  %v5483 = vmax.f32 %v5481, %v5482
  %v5484 = vrot.slane %v5483, 2
  %v5485 = vmax.f32 %v5483, %v5484
  %v5486 = vrot.slane %v5485, 1
  %v5487 = vmax.f32 %v5485, %v5486
  %v5488 = vsel %vm4695, %v4615, -inf
  %v5489 = vsel %vm4695, %v4616, -inf
  %v5490 = vmax.f32 %v5488, %v5489
  %v5491 = vrot.slane %v5490, 4
  %v5492 = vmax.f32 %v5490, %v5491
  %v5493 = vrot.slane %v5492, 2
  %v5494 = vmax.f32 %v5492, %v5493
  %v5495 = vrot.slane %v5494, 1
  %v5496 = vmax.f32 %v5494, %v5495
  %v5497 = vsel %vm4695, %v4617, -inf
  %v5498 = vsel %vm4695, %v4618, -inf
  %v5499 = vmax.f32 %v5497, %v5498
  %v5500 = vrot.slane %v5499, 4
  %v5501 = vmax.f32 %v5499, %v5500
  %v5502 = vrot.slane %v5501, 2
  %v5503 = vmax.f32 %v5501, %v5502
  %v5504 = vrot.slane %v5503, 1
  %v5505 = vmax.f32 %v5503, %v5504
  %v5506 = vsel %vm4695, %v4619, -inf
  %v5507 = vsel %vm4695, %v4620, -inf
  %v5508 = vmax.f32 %v5506, %v5507
  %v5509 = vrot.slane %v5508, 4
  %v5510 = vmax.f32 %v5508, %v5509
  %v5511 = vrot.slane %v5510, 2
  %v5512 = vmax.f32 %v5510, %v5511
  %v5513 = vrot.slane %v5512, 1
  %v5514 = vmax.f32 %v5512, %v5513
  %v5515 = vsel %vm4695, %v4621, -inf
  %v5516 = vsel %vm4695, %v4622, -inf
  %v5517 = vmax.f32 %v5515, %v5516
  %v5518 = vrot.slane %v5517, 4
  %v5519 = vmax.f32 %v5517, %v5518
  %v5520 = vrot.slane %v5519, 2
  %v5521 = vmax.f32 %v5519, %v5520
  %v5522 = vrot.slane %v5521, 1
  %v5523 = vmax.f32 %v5521, %v5522
  %v5524 = vsel %vm4695, %v4623, -inf
  %v5525 = vsel %vm4695, %v4624, -inf
  %v5526 = vmax.f32 %v5524, %v5525
  %v5527 = vrot.slane %v5526, 4
  %v5528 = vmax.f32 %v5526, %v5527
  %v5529 = vrot.slane %v5528, 2
  %v5530 = vmax.f32 %v5528, %v5529
  %v5531 = vrot.slane %v5530, 1
  %v5532 = vmax.f32 %v5530, %v5531
  %v5533 = vsel %vm4695, %v4625, -inf
  %v5534 = vsel %vm4695, %v4626, -inf
  %v5535 = vmax.f32 %v5533, %v5534
  %v5536 = vrot.slane %v5535, 4
  %v5537 = vmax.f32 %v5535, %v5536
  %v5538 = vrot.slane %v5537, 2
  %v5539 = vmax.f32 %v5537, %v5538
  %v5540 = vrot.slane %v5539, 1
  %v5541 = vmax.f32 %v5539, %v5540
  %v5542 = vsel %vm4695, %v4627, -inf
  %v5543 = vsel %vm4695, %v4628, -inf
  %v5544 = vmax.f32 %v5542, %v5543
  %v5545 = vrot.slane %v5544, 4
  %v5546 = vmax.f32 %v5544, %v5545
  %v5547 = vrot.slane %v5546, 2
  %v5548 = vmax.f32 %v5546, %v5547
  %v5549 = vrot.slane %v5548, 1
  %v5550 = vmax.f32 %v5548, %v5549
  %v5551 = vsel %vm4695, %v4629, -inf
  %v5552 = vsel %vm4695, %v4630, -inf
  %v5553 = vmax.f32 %v5551, %v5552
  %v5554 = vrot.slane %v5553, 4
  %v5555 = vmax.f32 %v5553, %v5554
  %v5556 = vrot.slane %v5555, 2
  %v5557 = vmax.f32 %v5555, %v5556
  %v5558 = vrot.slane %v5557, 1
  %v5559 = vmax.f32 %v5557, %v5558
  %v5560 = vsel %vm4695, %v4631, -inf
  %v5561 = vsel %vm4695, %v4632, -inf
  %v5562 = vmax.f32 %v5560, %v5561
  %v5563 = vrot.slane %v5562, 4
  %v5564 = vmax.f32 %v5562, %v5563
  %v5565 = vrot.slane %v5564, 2
  %v5566 = vmax.f32 %v5564, %v5565
  %v5567 = vrot.slane %v5566, 1
  %v5568 = vmax.f32 %v5566, %v5567
  %v5569 = vsel %vm4695, %v4633, -inf
  %v5570 = vsel %vm4695, %v4634, -inf
  %v5571 = vmax.f32 %v5569, %v5570
  %v5572 = vrot.slane %v5571, 4
  %v5573 = vmax.f32 %v5571, %v5572
  %v5574 = vrot.slane %v5573, 2
  %v5575 = vmax.f32 %v5573, %v5574
  %v5576 = vrot.slane %v5575, 1
  %v5577 = vmax.f32 %v5575, %v5576
  %v5578 = vsel %vm4695, %v4635, -inf
  %v5579 = vsel %vm4695, %v4636, -inf
  %v5580 = vmax.f32 %v5578, %v5579
  %v5581 = vrot.slane %v5580, 4
  %v5582 = vmax.f32 %v5580, %v5581
  %v5583 = vrot.slane %v5582, 2
  %v5584 = vmax.f32 %v5582, %v5583
  %v5585 = vrot.slane %v5584, 1
  %v5586 = vmax.f32 %v5584, %v5585
  %v5587 = vsel %vm4695, %v4637, -inf
  %v5588 = vsel %vm4695, %v4638, -inf
  %v5589 = vmax.f32 %v5587, %v5588
  %v5590 = vrot.slane %v5589, 4
  %v5591 = vmax.f32 %v5589, %v5590
  %v5592 = vrot.slane %v5591, 2
  %v5593 = vmax.f32 %v5591, %v5592
  %v5594 = vrot.slane %v5593, 1
  %v5595 = vmax.f32 %v5593, %v5594
  %v5596 = vsel %vm4695, %v4639, -inf
  %v5597 = vsel %vm4695, %v4640, -inf
  %v5598 = vmax.f32 %v5596, %v5597
  %v5599 = vrot.slane %v5598, 4
  %v5600 = vmax.f32 %v5598, %v5599
  %v5601 = vrot.slane %v5600, 2
  %v5602 = vmax.f32 %v5600, %v5601
  %v5603 = vrot.slane %v5602, 1
  %v5604 = vmax.f32 %v5602, %v5603
  %v5605 = vsel %vm4695, %v4641, -inf
  %v5606 = vsel %vm4695, %v4642, -inf
  %v5607 = vmax.f32 %v5605, %v5606
  %v5608 = vrot.slane %v5607, 4
  %v5609 = vmax.f32 %v5607, %v5608
  %v5610 = vrot.slane %v5609, 2
  %v5611 = vmax.f32 %v5609, %v5610
  %v5612 = vrot.slane %v5611, 1
  %v5613 = vmax.f32 %v5611, %v5612
  %v5614 = vsel %vm4695, %v4643, -inf
  %v5615 = vsel %vm4695, %v4644, -inf
  %v5616 = vmax.f32 %v5614, %v5615
  %v5617 = vrot.slane %v5616, 4
  %v5618 = vmax.f32 %v5616, %v5617
  %v5619 = vrot.slane %v5618, 2
  %v5620 = vmax.f32 %v5618, %v5619
  %v5621 = vrot.slane %v5620, 1
  %v5622 = vmax.f32 %v5620, %v5621
  %v5623 = vsel %vm4695, %v4645, -inf
  %v5624 = vsel %vm4695, %v4646, -inf
  %v5625 = vmax.f32 %v5623, %v5624
  %v5626 = vrot.slane %v5625, 4
  %v5627 = vmax.f32 %v5625, %v5626
  %v5628 = vrot.slane %v5627, 2
  %v5629 = vmax.f32 %v5627, %v5628
  %v5630 = vrot.slane %v5629, 1
  %v5631 = vmax.f32 %v5629, %v5630
  %v5632 = vsel %vm4695, %v4647, -inf
  %v5633 = vsel %vm4695, %v4648, -inf
  %v5634 = vmax.f32 %v5632, %v5633
  %v5635 = vrot.slane %v5634, 4
  %v5636 = vmax.f32 %v5634, %v5635
  %v5637 = vrot.slane %v5636, 2
  %v5638 = vmax.f32 %v5636, %v5637
  %v5639 = vrot.slane %v5638, 1
  %v5640 = vmax.f32 %v5638, %v5639
  %v5641 = vsel %vm4695, %v4649, -inf
  %v5642 = vsel %vm4695, %v4650, -inf
  %v5643 = vmax.f32 %v5641, %v5642
  %v5644 = vrot.slane %v5643, 4
  %v5645 = vmax.f32 %v5643, %v5644
  %v5646 = vrot.slane %v5645, 2
  %v5647 = vmax.f32 %v5645, %v5646
  %v5648 = vrot.slane %v5647, 1
  %v5649 = vmax.f32 %v5647, %v5648
  %v5650 = vsel %vm4695, %v4651, -inf
  %v5651 = vsel %vm4695, %v4652, -inf
  %v5652 = vmax.f32 %v5650, %v5651
  %v5653 = vrot.slane %v5652, 4
  %v5654 = vmax.f32 %v5652, %v5653
  %v5655 = vrot.slane %v5654, 2
  %v5656 = vmax.f32 %v5654, %v5655
  %v5657 = vrot.slane %v5656, 1
  %v5658 = vmax.f32 %v5656, %v5657
  %v5659 = vsel %vm4695, %v4653, -inf
  %v5660 = vsel %vm4695, %v4654, -inf
  %v5661 = vmax.f32 %v5659, %v5660
  %v5662 = vrot.slane %v5661, 4
  %v5663 = vmax.f32 %v5661, %v5662
  %v5664 = vrot.slane %v5663, 2
  %v5665 = vmax.f32 %v5663, %v5664
  %v5666 = vrot.slane %v5665, 1
  %v5667 = vmax.f32 %v5665, %v5666
  %v5668 = vsel %vm4695, %v4655, -inf
  %v5669 = vsel %vm4695, %v4656, -inf
  %v5670 = vmax.f32 %v5668, %v5669
  %v5671 = vrot.slane %v5670, 4
  %v5672 = vmax.f32 %v5670, %v5671
  %v5673 = vrot.slane %v5672, 2
  %v5674 = vmax.f32 %v5672, %v5673
  %v5675 = vrot.slane %v5674, 1
  %v5676 = vmax.f32 %v5674, %v5675
  %v5677 = vsel %vm4695, %v4657, -inf
  %v5678 = vsel %vm4695, %v4658, -inf
  %v5679 = vmax.f32 %v5677, %v5678
  %v5680 = vrot.slane %v5679, 4
  %v5681 = vmax.f32 %v5679, %v5680
  %v5682 = vrot.slane %v5681, 2
  %v5683 = vmax.f32 %v5681, %v5682
  %v5684 = vrot.slane %v5683, 1
  %v5685 = vmax.f32 %v5683, %v5684
  %v5686 = vsel %vm4695, %v4659, -inf
  %v5687 = vsel %vm4695, %v4660, -inf
  %v5688 = vmax.f32 %v5686, %v5687
  %v5689 = vrot.slane %v5688, 4
  %v5690 = vmax.f32 %v5688, %v5689
  %v5691 = vrot.slane %v5690, 2
  %v5692 = vmax.f32 %v5690, %v5691
  %v5693 = vrot.slane %v5692, 1
  %v5694 = vmax.f32 %v5692, %v5693
  %v5695 = vsel %vm4695, %v4661, -inf
  %v5696 = vsel %vm4695, %v4662, -inf
  %v5697 = vmax.f32 %v5695, %v5696
  %v5698 = vrot.slane %v5697, 4
  %v5699 = vmax.f32 %v5697, %v5698
  %v5700 = vrot.slane %v5699, 2
  %v5701 = vmax.f32 %v5699, %v5700
  %v5702 = vrot.slane %v5701, 1
  %v5703 = vmax.f32 %v5701, %v5702
  %v5704 = vsel %vm4695, %v4663, -inf
  %v5705 = vsel %vm4695, %v4664, -inf
  %v5706 = vmax.f32 %v5704, %v5705
  %v5707 = vrot.slane %v5706, 4
  %v5708 = vmax.f32 %v5706, %v5707
  %v5709 = vrot.slane %v5708, 2
  %v5710 = vmax.f32 %v5708, %v5709
  %v5711 = vrot.slane %v5710, 1
  %v5712 = vmax.f32 %v5710, %v5711
  %v5713 = vsel %vm4695, %v4665, -inf
  %v5714 = vsel %vm4695, %v4666, -inf
  %v5715 = vmax.f32 %v5713, %v5714
  %v5716 = vrot.slane %v5715, 4
  %v5717 = vmax.f32 %v5715, %v5716
  %v5718 = vrot.slane %v5717, 2
  %v5719 = vmax.f32 %v5717, %v5718
  %v5720 = vrot.slane %v5719, 1
  %v5721 = vmax.f32 %v5719, %v5720
  %v5722 = vsel %vm4695, %v4667, -inf
  %v5723 = vsel %vm4695, %v4668, -inf
  %v5724 = vmax.f32 %v5722, %v5723
  %v5725 = vrot.slane %v5724, 4
  %v5726 = vmax.f32 %v5724, %v5725
  %v5727 = vrot.slane %v5726, 2
  %v5728 = vmax.f32 %v5726, %v5727
  %v5729 = vrot.slane %v5728, 1
  %v5730 = vmax.f32 %v5728, %v5729
  %v5731 = vsel %vm4695, %v4669, -inf
  %v5732 = vsel %vm4695, %v4670, -inf
  %v5733 = vmax.f32 %v5731, %v5732
  %v5734 = vrot.slane %v5733, 4
  %v5735 = vmax.f32 %v5733, %v5734
  %v5736 = vrot.slane %v5735, 2
  %v5737 = vmax.f32 %v5735, %v5736
  %v5738 = vrot.slane %v5737, 1
  %v5739 = vmax.f32 %v5737, %v5738
  %v5740 = vsel %vm4695, %v4671, -inf
  %v5741 = vsel %vm4695, %v4672, -inf
  %v5742 = vmax.f32 %v5740, %v5741
  %v5743 = vrot.slane %v5742, 4
  %v5744 = vmax.f32 %v5742, %v5743
  %v5745 = vrot.slane %v5744, 2
  %v5746 = vmax.f32 %v5744, %v5745
  %v5747 = vrot.slane %v5746, 1
  %v5748 = vmax.f32 %v5746, %v5747
  %v5749 = vsel %vm4695, %v4673, -inf
  %v5750 = vsel %vm4695, %v4674, -inf
  %v5751 = vmax.f32 %v5749, %v5750
  %v5752 = vrot.slane %v5751, 4
  %v5753 = vmax.f32 %v5751, %v5752
  %v5754 = vrot.slane %v5753, 2
  %v5755 = vmax.f32 %v5753, %v5754
  %v5756 = vrot.slane %v5755, 1
  %v5757 = vmax.f32 %v5755, %v5756
  %v5758 = vsel %vm4695, %v4675, -inf
  %v5759 = vsel %vm4695, %v4676, -inf
  %v5760 = vmax.f32 %v5758, %v5759
  %v5761 = vrot.slane %v5760, 4
  %v5762 = vmax.f32 %v5760, %v5761
  %v5763 = vrot.slane %v5762, 2
  %v5764 = vmax.f32 %v5762, %v5763
  %v5765 = vrot.slane %v5764, 1
  %v5766 = vmax.f32 %v5764, %v5765
  %v5767 = vsel %vm4695, %v4677, -inf
  %v5768 = vsel %vm4695, %v4678, -inf
  %v5769 = vmax.f32 %v5767, %v5768
  %v5770 = vrot.slane %v5769, 4
  %v5771 = vmax.f32 %v5769, %v5770
  %v5772 = vrot.slane %v5771, 2
  %v5773 = vmax.f32 %v5771, %v5772
  %v5774 = vrot.slane %v5773, 1
  %v5775 = vmax.f32 %v5773, %v5774
  %v5776 = vsel %vm4695, %v4679, -inf
  %v5777 = vsel %vm4695, %v4680, -inf
  %v5778 = vmax.f32 %v5776, %v5777
  %v5779 = vrot.slane %v5778, 4
  %v5780 = vmax.f32 %v5778, %v5779
  %v5781 = vrot.slane %v5780, 2
  %v5782 = vmax.f32 %v5780, %v5781
  %v5783 = vrot.slane %v5782, 1
  %v5784 = vmax.f32 %v5782, %v5783
  %v5785 = vsel %vm4695, %v4681, -inf
  %v5786 = vsel %vm4695, %v4682, -inf
  %v5787 = vmax.f32 %v5785, %v5786
  %v5788 = vrot.slane %v5787, 4
  %v5789 = vmax.f32 %v5787, %v5788
  %v5790 = vrot.slane %v5789, 2
  %v5791 = vmax.f32 %v5789, %v5790
  %v5792 = vrot.slane %v5791, 1
  %v5793 = vmax.f32 %v5791, %v5792
  %v5794 = vsel %vm4695, %v4683, -inf
  %v5795 = vsel %vm4695, %v4684, -inf
  %v5796 = vmax.f32 %v5794, %v5795
  %v5797 = vrot.slane %v5796, 4
  %v5798 = vmax.f32 %v5796, %v5797
  %v5799 = vrot.slane %v5798, 2
  %v5800 = vmax.f32 %v5798, %v5799
  %v5801 = vrot.slane %v5800, 1
  %v5802 = vmax.f32 %v5800, %v5801
  %v5803 = vsel %vm4695, %v4685, -inf
  %v5804 = vsel %vm4695, %v4686, -inf
  %v5805 = vmax.f32 %v5803, %v5804
  %v5806 = vrot.slane %v5805, 4
  %v5807 = vmax.f32 %v5805, %v5806
  %v5808 = vrot.slane %v5807, 2
  %v5809 = vmax.f32 %v5807, %v5808
  %v5810 = vrot.slane %v5809, 1
  %v5811 = vmax.f32 %v5809, %v5810
  %v5812 = vsel %vm4695, %v4687, -inf
  %v5813 = vsel %vm4695, %v4688, -inf
  %v5814 = vmax.f32 %v5812, %v5813
  %v5815 = vrot.slane %v5814, 4
  %v5816 = vmax.f32 %v5814, %v5815
  %v5817 = vrot.slane %v5816, 2
  %v5818 = vmax.f32 %v5816, %v5817
  %v5819 = vrot.slane %v5818, 1
  %v5820 = vmax.f32 %v5818, %v5819
  %v5821 = vsel %vm4695, %v4689, -inf
  %v5822 = vsel %vm4695, %v4690, -inf
  %v5823 = vmax.f32 %v5821, %v5822
  %v5824 = vrot.slane %v5823, 4
  %v5825 = vmax.f32 %v5823, %v5824
  %v5826 = vrot.slane %v5825, 2
  %v5827 = vmax.f32 %v5825, %v5826
  %v5828 = vrot.slane %v5827, 1
  %v5829 = vmax.f32 %v5827, %v5828
  %v5830 = vsel %vm4695, %v4691, -inf
  %v5831 = vsel %vm4695, %v4692, -inf
  %v5832 = vmax.f32 %v5830, %v5831
  %v5833 = vrot.slane %v5832, 4
  %v5834 = vmax.f32 %v5832, %v5833
  %v5835 = vrot.slane %v5834, 2
  %v5836 = vmax.f32 %v5834, %v5835
  %v5837 = vrot.slane %v5836, 1
  %v5838 = vmax.f32 %v5836, %v5837
  %v5839 = vsel %vm4695, %v4693, -inf
  %v5840 = vsel %vm4695, %v4694, -inf
  %v5841 = vmax.f32 %v5839, %v5840
  %v5842 = vrot.slane %v5841, 4
  %v5843 = vmax.f32 %v5841, %v5842
  %v5844 = vrot.slane %v5843, 2
  %v5845 = vmax.f32 %v5843, %v5844
  %v5846 = vrot.slane %v5845, 1
  %v5847 = vmax.f32 %v5845, %v5846
  %vm5976 = vcmask 1041409
  %v5977 = vsel %vm5976, %v4713, %v4704
  %vm5978 = vcmask 1042434
  %v5979 = vsel %vm5978, %v4722, %v5977
  %vm5980 = vcmask 1043459
  %v5981 = vsel %vm5980, %v4731, %v5979
  %vm5982 = vcmask 1044484
  %v5983 = vsel %vm5982, %v4740, %v5981
  %vm5984 = vcmask 1045509
  %v5985 = vsel %vm5984, %v4749, %v5983
  %vm5986 = vcmask 1046534
  %v5987 = vsel %vm5986, %v4758, %v5985
  %vm5988 = vcmask 1047559
  %v5989 = vsel %vm5988, %v4767, %v5987
  %v5990 = vsel %vm5976, %v4785, %v4776
  %v5991 = vsel %vm5978, %v4794, %v5990
  %v5992 = vsel %vm5980, %v4803, %v5991
  %v5993 = vsel %vm5982, %v4812, %v5992
  %v5994 = vsel %vm5984, %v4821, %v5993
  %v5995 = vsel %vm5986, %v4830, %v5994
  %v5996 = vsel %vm5988, %v4839, %v5995
  %v5997 = vsel %vm5976, %v4857, %v4848
  %v5998 = vsel %vm5978, %v4866, %v5997
  %v5999 = vsel %vm5980, %v4875, %v5998
  %v6000 = vsel %vm5982, %v4884, %v5999
  %v6001 = vsel %vm5984, %v4893, %v6000
  %v6002 = vsel %vm5986, %v4902, %v6001
  %v6003 = vsel %vm5988, %v4911, %v6002
  %v6004 = vsel %vm5976, %v4929, %v4920
  %v6005 = vsel %vm5978, %v4938, %v6004
  %v6006 = vsel %vm5980, %v4947, %v6005
  %v6007 = vsel %vm5982, %v4956, %v6006
  %v6008 = vsel %vm5984, %v4965, %v6007
  %v6009 = vsel %vm5986, %v4974, %v6008
  %v6010 = vsel %vm5988, %v4983, %v6009
  %v6011 = vsel %vm5976, %v5001, %v4992
  %v6012 = vsel %vm5978, %v5010, %v6011
  %v6013 = vsel %vm5980, %v5019, %v6012
  %v6014 = vsel %vm5982, %v5028, %v6013
  %v6015 = vsel %vm5984, %v5037, %v6014
  %v6016 = vsel %vm5986, %v5046, %v6015
  %v6017 = vsel %vm5988, %v5055, %v6016
  %v6018 = vsel %vm5976, %v5073, %v5064
  %v6019 = vsel %vm5978, %v5082, %v6018
  %v6020 = vsel %vm5980, %v5091, %v6019
  %v6021 = vsel %vm5982, %v5100, %v6020
  %v6022 = vsel %vm5984, %v5109, %v6021
  %v6023 = vsel %vm5986, %v5118, %v6022
  %v6024 = vsel %vm5988, %v5127, %v6023
  %v6025 = vsel %vm5976, %v5145, %v5136
  %v6026 = vsel %vm5978, %v5154, %v6025
  %v6027 = vsel %vm5980, %v5163, %v6026
  %v6028 = vsel %vm5982, %v5172, %v6027
  %v6029 = vsel %vm5984, %v5181, %v6028
  %v6030 = vsel %vm5986, %v5190, %v6029
  %v6031 = vsel %vm5988, %v5199, %v6030
  %v6032 = vsel %vm5976, %v5217, %v5208
  %v6033 = vsel %vm5978, %v5226, %v6032
  %v6034 = vsel %vm5980, %v5235, %v6033
  %v6035 = vsel %vm5982, %v5244, %v6034
  %v6036 = vsel %vm5984, %v5253, %v6035
  %v6037 = vsel %vm5986, %v5262, %v6036
  %v6038 = vsel %vm5988, %v5271, %v6037
  %v6039 = vsel %vm5976, %v5289, %v5280
  %v6040 = vsel %vm5978, %v5298, %v6039
  %v6041 = vsel %vm5980, %v5307, %v6040
  %v6042 = vsel %vm5982, %v5316, %v6041
  %v6043 = vsel %vm5984, %v5325, %v6042
  %v6044 = vsel %vm5986, %v5334, %v6043
  %v6045 = vsel %vm5988, %v5343, %v6044
  %v6046 = vsel %vm5976, %v5361, %v5352
  %v6047 = vsel %vm5978, %v5370, %v6046
  %v6048 = vsel %vm5980, %v5379, %v6047
  %v6049 = vsel %vm5982, %v5388, %v6048
  %v6050 = vsel %vm5984, %v5397, %v6049
  %v6051 = vsel %vm5986, %v5406, %v6050
  %v6052 = vsel %vm5988, %v5415, %v6051
  %v6053 = vsel %vm5976, %v5433, %v5424
  %v6054 = vsel %vm5978, %v5442, %v6053
  %v6055 = vsel %vm5980, %v5451, %v6054
  %v6056 = vsel %vm5982, %v5460, %v6055
  %v6057 = vsel %vm5984, %v5469, %v6056
  %v6058 = vsel %vm5986, %v5478, %v6057
  %v6059 = vsel %vm5988, %v5487, %v6058
  %v6060 = vsel %vm5976, %v5505, %v5496
  %v6061 = vsel %vm5978, %v5514, %v6060
  %v6062 = vsel %vm5980, %v5523, %v6061
  %v6063 = vsel %vm5982, %v5532, %v6062
  %v6064 = vsel %vm5984, %v5541, %v6063
  %v6065 = vsel %vm5986, %v5550, %v6064
  %v6066 = vsel %vm5988, %v5559, %v6065
  %v6067 = vsel %vm5976, %v5577, %v5568
  %v6068 = vsel %vm5978, %v5586, %v6067
  %v6069 = vsel %vm5980, %v5595, %v6068
  %v6070 = vsel %vm5982, %v5604, %v6069
  %v6071 = vsel %vm5984, %v5613, %v6070
  %v6072 = vsel %vm5986, %v5622, %v6071
  %v6073 = vsel %vm5988, %v5631, %v6072
  %v6074 = vsel %vm5976, %v5649, %v5640
  %v6075 = vsel %vm5978, %v5658, %v6074
  %v6076 = vsel %vm5980, %v5667, %v6075
  %v6077 = vsel %vm5982, %v5676, %v6076
  %v6078 = vsel %vm5984, %v5685, %v6077
  %v6079 = vsel %vm5986, %v5694, %v6078
  %v6080 = vsel %vm5988, %v5703, %v6079
  %v6081 = vsel %vm5976, %v5721, %v5712
  %v6082 = vsel %vm5978, %v5730, %v6081
  %v6083 = vsel %vm5980, %v5739, %v6082
  %v6084 = vsel %vm5982, %v5748, %v6083
  %v6085 = vsel %vm5984, %v5757, %v6084
  %v6086 = vsel %vm5986, %v5766, %v6085
  %v6087 = vsel %vm5988, %v5775, %v6086
  %v6088 = vsel %vm5976, %v5793, %v5784
  %v6089 = vsel %vm5978, %v5802, %v6088
  %v6090 = vsel %vm5980, %v5811, %v6089
  %v6091 = vsel %vm5982, %v5820, %v6090
  %v6092 = vsel %vm5984, %v5829, %v6091
  %v6093 = vsel %vm5986, %v5838, %v6092
  %v6094 = vsel %vm5988, %v5847, %v6093
  %6111 = vxpose.xlu0.b32.start [1/16] %v5989, 128
  %6112 = vxpose.xlu0.b32.cont [2/16] %v5996, 128
  %6113 = vxpose.xlu0.b32.cont [3/16] %v6003, 128
  %6114 = vxpose.xlu0.b32.cont [4/16] %v6010, 128
  %6115 = vxpose.xlu0.b32.cont [5/16] %v6017, 128
  %6116 = vxpose.xlu0.b32.cont [6/16] %v6024, 128
  %6117 = vxpose.xlu0.b32.cont [7/16] %v6031, 128
  %6118 = vxpose.xlu0.b32.cont [8/16] %v6038, 128
  %6119 = vxpose.xlu0.b32.cont [9/16] %v6045, 128
  %6120 = vxpose.xlu0.b32.cont [10/16] %v6052, 128
  %6121 = vxpose.xlu0.b32.cont [11/16] %v6059, 128
  %6122 = vxpose.xlu0.b32.cont [12/16] %v6066, 128
  %6123 = vxpose.xlu0.b32.cont [13/16] %v6073, 128
  %6124 = vxpose.xlu0.b32.cont [14/16] %v6080, 128
  %6125 = vxpose.xlu0.b32.cont [15/16] %v6087, 128
  %6126 = vxpose.xlu0.b32.end [16/16] %v6094, 128
  %v6127 = vpop.trf.xlu0
  %v6128 = vpop.trf.xlu0
  %v6129 = vpop.trf.xlu0
  %v6130 = vpop.trf.xlu0
  %v6131 = vpop.trf.xlu0
  %v6132 = vpop.trf.xlu0
  %v6133 = vpop.trf.xlu0
  %v6134 = vpop.trf.xlu0
  %v6135 = vpop.trf.xlu0
  %v6136 = vpop.trf.xlu0
  %v6137 = vpop.trf.xlu0
  %v6138 = vpop.trf.xlu0
  %v6139 = vpop.trf.xlu0
  %v6140 = vpop.trf.xlu0
  %v6141 = vpop.trf.xlu0
  %v6142 = vpop.trf.xlu0
  %6143 = vst [vmem:[%s7] sm:$0xff] %v6127
  %6144 = vst [vmem:[%s7 + $0x8] sm:$0xff] %v6128
  %6145 = vst [vmem:[%s7 + $0x10] sm:$0xff] %v6129
  %6146 = vst [vmem:[%s7 + $0x18] sm:$0xff] %v6130
  %6147 = vst [vmem:[%s7 + $0x20] sm:$0xff] %v6131
  %6148 = vst [vmem:[%s7 + $0x28] sm:$0xff] %v6132
  %6149 = vst [vmem:[%s7 + $0x30] sm:$0xff] %v6133
  %6150 = vst [vmem:[%s7 + $0x38] sm:$0xff] %v6134
  // Predicated region
  $region30: #{surface_abstraction_forward.1} parent=0 // pred_check
    _
  $region31: #{surface_abstraction_forward.1} parent=0 // pred_check_branch
    %6152 = sbr.rel (0) target = $region33
  $region32: #{surface_abstraction_forward.1} parent=0 // pred_region
    _
  $region33: #{surface_abstraction_forward.1} parent=0 // pred_fallthru
    _
  // Predicated region
  $region34: #{surface_abstraction_forward.1} parent=0 // pred_check
    _
  $region35: #{surface_abstraction_forward.1} parent=0 // pred_check_branch
    %6154 = sbr.rel (0) target = $region37
  $region36: #{surface_abstraction_forward.1} parent=0 // pred_region
    _
  $region37: #{surface_abstraction_forward.1} parent=0 // pred_fallthru
    _

</llo_original>
